<compile_context>
chip_gen: v7x
topology: tpu7x:2x2x1
jax: 0.10.0
libtpu: 0.0.40
codegen_flags: <defaults>
</compile_context>

<pallas_src>
import math

import jax
import jax.numpy as jnp
from jax import lax
from jax.experimental import pallas as pl
from jax.experimental.pallas import tpu as pltpu

# ----------------------------- model hyper-params -----------------------------
BS = 2          # batch size
N_ANT = 8       # number of agents (sequence length)
IN_DIM = 32     # input feature dim
HIDDEN = 32     # hidden dim (also GRU state dim)
OUT_DIM = 16    # output dim of final linear
NUM_HEAD = 4
DH = HIDDEN                 # per-head dim (DGN convention)
PROJ = NUM_HEAD * DH        # 128
WITH_NONLIN = True          # with_non_linearity flag of the module
M_TOTAL = BS * N_ANT        # 16 rows after the bs*n_ant flatten

_SCALE = 1.0 / math.sqrt(DH)

# ----------------------- packed slab layout (all 128-aligned) -----------------------
HEAD_BLK = 128
QKV_COLS = 3 * NUM_HEAD * HEAD_BLK          # 1536 (12 per-head 128-lane blocks)

SEG_A = 0                                    # stage 1: attn-1 QKV (padded) + GRU w_hh
SEG_A_HH = SEG_A + QKV_COLS                  # 1536
SEG_A_END = SEG_A_HH + HEAD_BLK              # 1664
SEG_B = SEG_A_END                            # stage 2: wo1 @ attn-2 QKV (padded)
SEG_B_END = SEG_B + QKV_COLS                 # 3200
SEG_C = SEG_B_END                            # stage 3: [wo2 | wo2 @ w_ih]
SEG_C_END = SEG_C + HEAD_BLK                 # 3328
SEG_D = SEG_C_END                            # stage 4: final linear (padded to 128)
SEG_D_END = SEG_D + HEAD_BLK                 # 3456
W_COLS = SEG_D_END
W_ROWS = HEAD_BLK                            # 128 (rows 64:128 of segment A are zero)

ACT_COLS = HEAD_BLK                          # (16, 128) activation slab
ACT_X = 0                                    # lanes  0:32  -> x
ACT_H0 = 32                                  # lanes 32:64  -> h0
ACT_MASK = 64                                # lanes 64:80  -> block-diag additive mask

PARAM_ORDER = [
    "wq1", "bq1", "wk1", "bk1", "wv1", "bv1", "wo1", "bo1",
    "wq2", "bq2", "wk2", "bk2", "wv2", "bv2", "wo2", "bo2",
    "w_ih", "b_ih", "w_hh", "b_hh",
    "wl", "bl",
]

PARAM_SHAPES = {
    "wq1": (IN_DIM, PROJ), "bq1": (1, PROJ),
    "wk1": (IN_DIM, PROJ), "bk1": (1, PROJ),
    "wv1": (IN_DIM, PROJ), "bv1": (1, PROJ),
    "wo1": (PROJ, HIDDEN), "bo1": (1, HIDDEN),
    "wq2": (HIDDEN, PROJ), "bq2": (1, PROJ),
    "wk2": (HIDDEN, PROJ), "bk2": (1, PROJ),
    "wv2": (HIDDEN, PROJ), "bv2": (1, PROJ),
    "wo2": (PROJ, HIDDEN), "bo2": (1, HIDDEN),
    "w_ih": (HIDDEN, 3 * HIDDEN), "b_ih": (1, 3 * HIDDEN),
    "w_hh": (HIDDEN, 3 * HIDDEN), "b_hh": (1, 3 * HIDDEN),
    "wl": (HIDDEN, OUT_DIM), "bl": (1, OUT_DIM),
}


# ------------------------------- Pallas kernel -------------------------------
def _mha_heads(qkv, neg_mask):
    """qkv: (M, >=1536) f32 with per-head 128-lane zero-padded blocks
    (q heads: blocks 0..3, k heads: 4..7, v heads: 8..11 with data at lanes h*32:(h+1)*32).
    Returns the lane-concatenated head outputs as a (M, 128) bf16 value."""
    out = None
    for h in range(NUM_HEAD):                       # static unroll over heads
        qh = qkv[:, h * HEAD_BLK:(h + 1) * HEAD_BLK].astype(jnp.bfloat16)
        kh = qkv[:, (NUM_HEAD + h) * HEAD_BLK:(NUM_HEAD + h + 1) * HEAD_BLK].astype(jnp.bfloat16)
        vh = qkv[:, (2 * NUM_HEAD + h) * HEAD_BLK:(2 * NUM_HEAD + h + 1) * HEAD_BLK].astype(jnp.bfloat16)
        # q @ k^T without explicit transpose; zero-padded lanes contribute exactly 0.
        s = lax.dot_general(qh, kh, (((1,), (1,)), ((), ())),
                            preferred_element_type=jnp.float32)
        s = s * _SCALE + neg_mask
        s = s - jnp.max(s, axis=-1, keepdims=True)
        p = jnp.exp(s)
        p = p * pl.reciprocal(jnp.sum(p, axis=-1, keepdims=True), approx=True)
        oh = jnp.dot(p.astype(jnp.bfloat16), vh, preferred_element_type=jnp.float32)
        out = oh if out is None else out + oh       # lane-disjoint: sum == concat of heads
    return out.astype(jnp.bfloat16)                 # (M, 128)


def drgn_kernel(act_ref, w_ref, b_ref, out_ref, hid_ref):
    act = act_ref[...]                               # (16, 128) f32
    act_bf = act.astype(jnp.bfloat16)
    neg_mask = act[:, ACT_MASK:ACT_MASK + M_TOTAL]   # (16, 16) additive mask (f32)
    h0 = act[:, ACT_H0:ACT_H0 + HIDDEN]              # (16, 32) f32

    # ---- stage 1: one matmul -> attn-1 QKV (padded head blocks) + GRU gh = h0 @ w_hh ----
    s1 = jnp.dot(act_bf, w_ref[:, SEG_A:SEG_A_END],
                 preferred_element_type=jnp.float32) + b_ref[:, SEG_A:SEG_A_END]
    o1 = _mha_heads(s1, neg_mask)                    # (16, 128) bf16 = concat of attn-1 heads

    # ---- stage 2: attn-2 QKV with wo1 folded in (qkv2 = o1 @ (wo1 @ wqkv2) + fused bias) ----
    s2 = jnp.dot(o1, w_ref[:, SEG_B:SEG_B_END],
                 preferred_element_type=jnp.float32) + b_ref[:, SEG_B:SEG_B_END]
    o2 = _mha_heads(s2, neg_mask)                    # (16, 128) bf16 = concat of attn-2 heads

    # ---- stage 3: [h2 | gi] in one matmul (weights [wo2 | wo2 @ w_ih]) ----
    s3 = jnp.dot(o2, w_ref[:, SEG_C:SEG_C_END],
                 preferred_element_type=jnp.float32) + b_ref[:, SEG_C:SEG_C_END]

    # ---- GRU gates (PyTorch GRUCell gate order r, z, n) ----
    r = jax.nn.sigmoid(s3[:, HIDDEN:2 * HIDDEN] + s1[:, SEG_A_HH:SEG_A_HH + HIDDEN])
    z = jax.nn.sigmoid(s3[:, 2 * HIDDEN:3 * HIDDEN]
                       + s1[:, SEG_A_HH + HIDDEN:SEG_A_HH + 2 * HIDDEN])
    n = jnp.tanh(s3[:, 3 * HIDDEN:4 * HIDDEN]
                 + r * s1[:, SEG_A_HH + 2 * HIDDEN:SEG_A_HH + 3 * HIDDEN])
    h3 = (1.0 - z) * n + z * h0                      # (16, 32) f32 = next hidden state

    # ---- stage 4: final linear (wl padded to 128 lanes) + optional ReLU ----
    h4 = jnp.dot(h3.astype(jnp.bfloat16), w_ref[0:HIDDEN, SEG_D:SEG_D_END],
                 preferred_element_type=jnp.float32) + b_ref[:, SEG_D:SEG_D_END]
    if WITH_NONLIN:
        h4 = jnp.maximum(h4, 0.0)

    out_ref[...] = h4                                # (16, 128) lane-dense store; h4 at lanes 0:16
    hid_ref[...] = h3                                # (16, 32)


# ----------------------- one-time parameter packing (hoisted) -----------------------
def _pad_qkv(wq, wk, wv):
    """(in_dim, 128) q/k/v weights -> (in_dim, 1536) with per-head 128-lane blocks."""
    in_dim = wq.shape[0]
    out = jnp.zeros((in_dim, QKV_COLS), jnp.float32)
    for h in range(NUM_HEAD):
        out = out.at[:, h * HEAD_BLK:h * HEAD_BLK + DH].set(wq[:, h * DH:(h + 1) * DH])
        out = out.at[:, (NUM_HEAD + h) * HEAD_BLK:(NUM_HEAD + h) * HEAD_BLK + DH].set(
            wk[:, h * DH:(h + 1) * DH])
        base = (2 * NUM_HEAD + h) * HEAD_BLK + h * DH
        out = out.at[:, base:base + DH].set(wv[:, h * DH:(h + 1) * DH])
    return out


def _pad_qkv_bias(bq, bk, bv):
    out = jnp.zeros((1, QKV_COLS), jnp.float32)
    for h in range(NUM_HEAD):
        out = out.at[:, h * HEAD_BLK:h * HEAD_BLK + DH].set(bq[:, h * DH:(h + 1) * DH])
        out = out.at[:, (NUM_HEAD + h) * HEAD_BLK:(NUM_HEAD + h) * HEAD_BLK + DH].set(
            bk[:, h * DH:(h + 1) * DH])
        base = (2 * NUM_HEAD + h) * HEAD_BLK + h * DH
        out = out.at[:, base:base + DH].set(bv[:, h * DH:(h + 1) * DH])
    return out


def pack_params(p):
    """Pack all 22 params into one (128, 3456) bf16 weight slab and one (16, 3456) f32
    pre-broadcast bias slab. Called ONCE at setup (hoisted out of the per-call path).
    All padding columns/rows are true zeros so the fused/padded matmuls are exact."""
    w = jnp.zeros((W_ROWS, W_COLS), jnp.float32)
    b = jnp.zeros((1, W_COLS), jnp.float32)

    # segment A: block-diagonal [wqkv1 padded ; w_hh] for LHS = [x | h0 | mask | 0]
    qkv1 = _pad_qkv(p["wq1"], p["wk1"], p["wv1"])                      # (32, 1536)
    w = w.at[0:IN_DIM, SEG_A:SEG_A + QKV_COLS].set(qkv1)
    w = w.at[IN_DIM:IN_DIM + HIDDEN, SEG_A_HH:SEG_A_HH + 3 * HIDDEN].set(p["w_hh"])
    b = b.at[:, SEG_A:SEG_A + QKV_COLS].set(_pad_qkv_bias(p["bq1"], p["bk1"], p["bv1"]))
    b = b.at[:, SEG_A_HH:SEG_A_HH + 3 * HIDDEN].set(p["b_hh"])

    # segment B: wo1 folded into attn-2 QKV (exact algebraic fusion, f32 precompute)
    qkv2 = _pad_qkv(p["wq2"], p["wk2"], p["wv2"])                      # (32, 1536)
    w = w.at[:, SEG_B:SEG_B + QKV_COLS].set(p["wo1"] @ qkv2)           # (128, 1536)
    b = b.at[:, SEG_B:SEG_B + QKV_COLS].set(
        p["bo1"] @ qkv2 + _pad_qkv_bias(p["bq2"], p["bk2"], p["bv2"]))

    # segment C: [wo2 | wo2 @ w_ih]  ->  [h2 | gi] in one matmul
    w = w.at[:, SEG_C:SEG_C + HIDDEN].set(p["wo2"])
    w = w.at[:, SEG_C + HIDDEN:SEG_C + 4 * HIDDEN].set(p["wo2"] @ p["w_ih"])
    b = b.at[:, SEG_C:SEG_C + HIDDEN].set(p["bo2"])
    b = b.at[:, SEG_C + HIDDEN:SEG_C + 4 * HIDDEN].set(p["bo2"] @ p["w_ih"] + p["b_ih"])

    # segment D: final linear, padded to a full 128-lane block (dense output store)
    w = w.at[0:HIDDEN, SEG_D:SEG_D + OUT_DIM].set(p["wl"])
    b = b.at[:, SEG_D:SEG_D + OUT_DIM].set(p["bl"])

    w_slab = w.astype(jnp.bfloat16)
    b_slab = jnp.broadcast_to(b, (M_TOTAL, W_COLS)).astype(jnp.float32)  # pre-broadcast rows
    return w_slab, b_slab


# ------------------------------- jitted wrapper -------------------------------
@jax.jit
def drgn_forward(x, mask, hidden_state, w_slab, b_slab):
    """x: (BS,N_ANT,IN_DIM); mask: (BS,N_ANT,N_ANT) {0,1}; hidden_state: (BS,N_ANT,HIDDEN)."""
    x_flat = x.reshape(M_TOTAL, IN_DIM).astype(jnp.float32)
    h0_flat = hidden_state.reshape(M_TOTAL, HIDDEN).astype(jnp.float32)

    # vectorized block-diagonal additive mask: 0 where attending, -1e9 elsewhere
    add = jnp.where(mask > 0, 0.0, -1e9).astype(jnp.float32)           # (BS, N_ANT, N_ANT)
    same_batch = jnp.eye(BS, dtype=bool)[:, None, :, None]             # (BS,1,BS,1)
    neg_mask = jnp.where(same_batch, add[:, :, None, :], -1e9)
    neg_mask = neg_mask.reshape(M_TOTAL, M_TOTAL)

    # single lane-packed activation slab: [x | h0 | mask | 0] -> one input DMA
    act = jnp.concatenate(
        [x_flat, h0_flat, neg_mask,
         jnp.zeros((M_TOTAL, ACT_COLS - IN_DIM - HIDDEN - M_TOTAL), jnp.float32)],
        axis=1)                                                        # (16, 128)

    # TODO(synk): if this block runs many times (RNN unroll / many envs), batch the calls
    # behind a leading "parallel" grid axis with constant index_maps for the weight/bias
    # slabs (VMEM-resident weights, both v7x TensorCores used) instead of one call per step.
    out_pad, hid = pl.pallas_call(
        drgn_kernel,
        out_shape=(jax.ShapeDtypeStruct((M_TOTAL, HEAD_BLK), jnp.float32),
                   jax.ShapeDtypeStruct((M_TOTAL, HIDDEN), jnp.float32)),
        in_specs=[pl.BlockSpec(memory_space=pltpu.MemorySpace.VMEM)] * 3,
        out_specs=(pl.BlockSpec(memory_space=pltpu.MemorySpace.VMEM),
                   pl.BlockSpec(memory_space=pltpu.MemorySpace.VMEM)),
    )(act, w_slab, b_slab)

    out = out_pad[:, :OUT_DIM].reshape(BS, N_ANT, OUT_DIM)
    next_hidden = hid.reshape(BS, N_ANT, HIDDEN)
    return out, next_hidden


# --------------------- pure-JAX reference (straightforward math, bf16 weights) ---------------------
def _ref_mha(x, mask, wq, bq, wk, bk, wv, bv, wo, bo):
    xb = x.astype(jnp.bfloat16)
    neg = jnp.where(mask > 0, 0.0, -1e9)
    q = jnp.dot(xb, wq.astype(jnp.bfloat16), preferred_element_type=jnp.float32) + bq
    k = jnp.dot(xb, wk.astype(jnp.bfloat16), preferred_element_type=jnp.float32) + bk
    v = jnp.dot(xb, wv.astype(jnp.bfloat16), preferred_element_type=jnp.float32) + bv
    heads = []
    for h in range(NUM_HEAD):
        lo = h * DH
        qh, kh, vh = q[:, lo:lo + DH], k[:, lo:lo + DH], v[:, lo:lo + DH]
        s = jnp.dot(qh.astype(jnp.bfloat16), kh.astype(jnp.bfloat16).T,
                    preferred_element_type=jnp.float32) * _SCALE + neg
        s = s - jnp.max(s, axis=-1, keepdims=True)
        p = jnp.exp(s)
        p = p / jnp.sum(p, axis=-1, keepdims=True)
        heads.append(jnp.dot(p.astype(jnp.bfloat16), vh.astype(jnp.bfloat16),
                             preferred_element_type=jnp.float32))
    o = jnp.concatenate(heads, axis=1).astype(jnp.bfloat16)
    return jnp.dot(o, wo.astype(jnp.bfloat16), preferred_element_type=jnp.float32) + bo


def _forward_single(x, mask, h0, p):
    h1 = _ref_mha(x, mask, p["wq1"], p["bq1"], p["wk1"], p["bk1"],
                  p["wv1"], p["bv1"], p["wo1"], p["bo1"])
    h2 = _ref_mha(h1, mask, p["wq2"], p["bq2"], p["wk2"], p["bk2"],
                  p["wv2"], p["bv2"], p["wo2"], p["bo2"])
    gi = jnp.dot(h2.astype(jnp.bfloat16), p["w_ih"].astype(jnp.bfloat16),
                 preferred_element_type=jnp.float32) + p["b_ih"]
    gh = jnp.dot(h0.astype(jnp.bfloat16), p["w_hh"].astype(jnp.bfloat16),
                 preferred_element_type=jnp.float32) + p["b_hh"]
    r = jax.nn.sigmoid(gi[:, 0:HIDDEN] + gh[:, 0:HIDDEN])
    z = jax.nn.sigmoid(gi[:, HIDDEN:2 * HIDDEN] + gh[:, HIDDEN:2 * HIDDEN])
    n = jnp.tanh(gi[:, 2 * HIDDEN:3 * HIDDEN] + r * gh[:, 2 * HIDDEN:3 * HIDDEN])
    h3 = (1.0 - z) * n + z * h0
    h4 = jnp.dot(h3.astype(jnp.bfloat16), p["wl"].astype(jnp.bfloat16),
                 preferred_element_type=jnp.float32) + p["bl"]
    if WITH_NONLIN:
        h4 = jnp.maximum(h4, 0.0)
    return h4, h3


# ------------------------------- setup / main -------------------------------
def init_params(key):
    params = {}
    for i, name in enumerate(PARAM_ORDER):
        shape = PARAM_SHAPES[name]
        k = jax.random.fold_in(key, i)
        bound = 1.0 / math.sqrt(shape[0]) if name.startswith("w") else 0.1
        params[name] = jax.random.uniform(
            k, shape, minval=-bound, maxval=bound, dtype=jnp.float32)
    return params


if __name__ == "__main__":
    key = jax.random.PRNGKey(0)
    k_x, k_m, k_h, k_p = jax.random.split(key, 4)

    x = jax.random.normal(k_x, (BS, N_ANT, IN_DIM), dtype=jnp.float32)
    # adjacency-style mask: 1 = attend, 0 = masked; keep the diagonal connected
    mask = (jax.random.uniform(k_m, (BS, N_ANT, N_ANT)) > 0.3).astype(jnp.float32)
    mask = jnp.maximum(mask, jnp.eye(N_ANT, dtype=jnp.float32)[None])
    hidden_state = jax.random.normal(k_h, (BS, N_ANT, HIDDEN), dtype=jnp.float32)

    params = init_params(k_p)
    # parameter packing hoisted out of the per-call path (done exactly once)
    w_slab, b_slab = pack_params(params)
    w_slab = jax.block_until_ready(w_slab)
    b_slab = jax.block_until_ready(b_slab)

    out, next_hidden = drgn_forward(x, mask, hidden_state, w_slab, b_slab)
    out = jax.block_until_ready(out)
    next_hidden = jax.block_until_ready(next_hidden)

    # pure-JAX reference: straightforward (non-fused) math with bf16 weights/operands.
    # Tolerance covers bf16 rounding plus the exact-in-f32 fused-weight precomputation.
    ref_out, ref_next = jax.vmap(
        lambda xx, mm, hh: _forward_single(xx, mm, hh, params))(x, mask, hidden_state)

    assert out.shape == (BS, N_ANT, OUT_DIM)
    assert next_hidden.shape == (BS, N_ANT, HIDDEN)
    assert jnp.allclose(out, ref_out, rtol=2e-2, atol=2e-2)
    assert jnp.allclose(next_hidden, ref_next, rtol=2e-2, atol=2e-2)

    print("KERNEL_OK")
</pallas_src>

<mosaic_0001>
module attributes {stable_mosaic.version = 11 : i64} {
  func.func @drgn_kernel(%arg0: memref<16x128xf32, #tpu.memory_space<vmem>>, %arg1: memref<128x3456xbf16, #tpu.memory_space<vmem>>, %arg2: memref<16x3456xf32, #tpu.memory_space<vmem>>, %arg3: memref<16x128xf32, #tpu.memory_space<vmem>>, %arg4: memref<16x32xf32, #tpu.memory_space<vmem>>) attributes {dimension_semantics = [], scalar_prefetch = 0 : i64, scratch_operands = 0 : i64, tpu.core_type = #tpu.core_type<tc>} {
    %c0 = arith.constant 0 : index
    %c0_0 = arith.constant 0 : index
    %0 = vector.load %arg0[%c0, %c0_0] : memref<16x128xf32, #tpu.memory_space<vmem>>, vector<16x128xf32>
    %1 = arith.truncf %0 : vector<16x128xf32> to vector<16x128xbf16>
    %2 = vector.extract_strided_slice %0 {offsets = [0, 64], sizes = [16, 16], strides = [1, 1]} : vector<16x128xf32> to vector<16x16xf32>
    %3 = vector.extract_strided_slice %0 {offsets = [0, 32], sizes = [16, 32], strides = [1, 1]} : vector<16x128xf32> to vector<16x32xf32>
    %c0_1 = arith.constant 0 : index
    %c0_2 = arith.constant 0 : index
    %4 = vector.load %arg1[%c0_1, %c0_2] : memref<128x3456xbf16, #tpu.memory_space<vmem>>, vector<128x1664xbf16>
    %cst = arith.constant dense<0.000000e+00> : vector<16x1664xf32>
    %5 = tpu.matmul %1, %4, %cst {dimension_numbers = #tpu.dot_dimension_numbers<[1], [0], [0], [1], [0, 0, 1, 1], [], []>} : vector<16x128xbf16>, vector<128x1664xbf16>, vector<16x1664xf32> -> vector<16x1664xf32>
    %c0_3 = arith.constant 0 : index
    %c0_4 = arith.constant 0 : index
    %6 = vector.load %arg2[%c0_3, %c0_4] : memref<16x3456xf32, #tpu.memory_space<vmem>>, vector<16x1664xf32>
    %7 = arith.addf %5, %6 : vector<16x1664xf32>
    %8 = vector.extract_strided_slice %7 {offsets = [0, 0], sizes = [16, 128], strides = [1, 1]} : vector<16x1664xf32> to vector<16x128xf32>
    %9 = arith.truncf %8 : vector<16x128xf32> to vector<16x128xbf16>
    %10 = vector.extract_strided_slice %7 {offsets = [0, 512], sizes = [16, 128], strides = [1, 1]} : vector<16x1664xf32> to vector<16x128xf32>
    %11 = arith.truncf %10 : vector<16x128xf32> to vector<16x128xbf16>
    %12 = vector.extract_strided_slice %7 {offsets = [0, 1024], sizes = [16, 128], strides = [1, 1]} : vector<16x1664xf32> to vector<16x128xf32>
    %13 = arith.truncf %12 : vector<16x128xf32> to vector<16x128xbf16>
    %cst_5 = arith.constant dense<0.000000e+00> : vector<16x16xf32>
    %14 = tpu.matmul %9, %11, %cst_5 {dimension_numbers = #tpu.dot_dimension_numbers<[1], [1], [0], [0], [0, 0, 1, 0], [], []>} : vector<16x128xbf16>, vector<16x128xbf16>, vector<16x16xf32> -> vector<16x16xf32>
    %cst_6 = arith.constant 0.176776692 : f32
    %15 = vector.broadcast %cst_6 : f32 to vector<16x16xf32>
    %16 = arith.mulf %14, %15 : vector<16x16xf32>
    %17 = arith.addf %16, %2 : vector<16x16xf32>
    %cst_7 = arith.constant dense<0xFF800000> : vector<16xf32>
    %18 = vector.multi_reduction <maximumf>, %17, %cst_7 [1] : vector<16x16xf32> to vector<16xf32>
    %19 = vector.shape_cast %18 : vector<16xf32> to vector<16x1xf32>
    %20 = vector.broadcast %19 : vector<16x1xf32> to vector<16x16xf32>
    %21 = arith.subf %17, %20 : vector<16x16xf32>
    %22 = math.exp %21 : vector<16x16xf32>
    %cst_8 = arith.constant dense<0.000000e+00> : vector<16xf32>
    %23 = vector.multi_reduction <add>, %22, %cst_8 [1] : vector<16x16xf32> to vector<16xf32>
    %24 = vector.shape_cast %23 : vector<16xf32> to vector<16x1xf32>
    %25 = tpu.reciprocal %24 {approx = true} : vector<16x1xf32> -> vector<16x1xf32>
    %26 = vector.broadcast %25 : vector<16x1xf32> to vector<16x16xf32>
    %27 = arith.mulf %22, %26 : vector<16x16xf32>
    %28 = arith.truncf %27 : vector<16x16xf32> to vector<16x16xbf16>
    %cst_9 = arith.constant dense<0.000000e+00> : vector<16x128xf32>
    %29 = tpu.matmul %28, %13, %cst_9 {dimension_numbers = #tpu.dot_dimension_numbers<[1], [0], [0], [1], [0, 0, 1, 1], [], []>} : vector<16x16xbf16>, vector<16x128xbf16>, vector<16x128xf32> -> vector<16x128xf32>
    %30 = vector.extract_strided_slice %7 {offsets = [0, 128], sizes = [16, 128], strides = [1, 1]} : vector<16x1664xf32> to vector<16x128xf32>
    %31 = arith.truncf %30 : vector<16x128xf32> to vector<16x128xbf16>
    %32 = vector.extract_strided_slice %7 {offsets = [0, 640], sizes = [16, 128], strides = [1, 1]} : vector<16x1664xf32> to vector<16x128xf32>
    %33 = arith.truncf %32 : vector<16x128xf32> to vector<16x128xbf16>
    %34 = vector.extract_strided_slice %7 {offsets = [0, 1152], sizes = [16, 128], strides = [1, 1]} : vector<16x1664xf32> to vector<16x128xf32>
    %35 = arith.truncf %34 : vector<16x128xf32> to vector<16x128xbf16>
    %cst_10 = arith.constant dense<0.000000e+00> : vector<16x16xf32>
    %36 = tpu.matmul %31, %33, %cst_10 {dimension_numbers = #tpu.dot_dimension_numbers<[1], [1], [0], [0], [0, 0, 1, 0], [], []>} : vector<16x128xbf16>, vector<16x128xbf16>, vector<16x16xf32> -> vector<16x16xf32>
    %cst_11 = arith.constant 0.176776692 : f32
    %37 = vector.broadcast %cst_11 : f32 to vector<16x16xf32>
    %38 = arith.mulf %36, %37 : vector<16x16xf32>
    %39 = arith.addf %38, %2 : vector<16x16xf32>
    %cst_12 = arith.constant dense<0xFF800000> : vector<16xf32>
    %40 = vector.multi_reduction <maximumf>, %39, %cst_12 [1] : vector<16x16xf32> to vector<16xf32>
    %41 = vector.shape_cast %40 : vector<16xf32> to vector<16x1xf32>
    %42 = vector.broadcast %41 : vector<16x1xf32> to vector<16x16xf32>
    %43 = arith.subf %39, %42 : vector<16x16xf32>
    %44 = math.exp %43 : vector<16x16xf32>
    %cst_13 = arith.constant dense<0.000000e+00> : vector<16xf32>
    %45 = vector.multi_reduction <add>, %44, %cst_13 [1] : vector<16x16xf32> to vector<16xf32>
    %46 = vector.shape_cast %45 : vector<16xf32> to vector<16x1xf32>
    %47 = tpu.reciprocal %46 {approx = true} : vector<16x1xf32> -> vector<16x1xf32>
    %48 = vector.broadcast %47 : vector<16x1xf32> to vector<16x16xf32>
    %49 = arith.mulf %44, %48 : vector<16x16xf32>
    %50 = arith.truncf %49 : vector<16x16xf32> to vector<16x16xbf16>
    %cst_14 = arith.constant dense<0.000000e+00> : vector<16x128xf32>
    %51 = tpu.matmul %50, %35, %cst_14 {dimension_numbers = #tpu.dot_dimension_numbers<[1], [0], [0], [1], [0, 0, 1, 1], [], []>} : vector<16x16xbf16>, vector<16x128xbf16>, vector<16x128xf32> -> vector<16x128xf32>
    %52 = arith.addf %29, %51 : vector<16x128xf32>
    %53 = vector.extract_strided_slice %7 {offsets = [0, 256], sizes = [16, 128], strides = [1, 1]} : vector<16x1664xf32> to vector<16x128xf32>
    %54 = arith.truncf %53 : vector<16x128xf32> to vector<16x128xbf16>
    %55 = vector.extract_strided_slice %7 {offsets = [0, 768], sizes = [16, 128], strides = [1, 1]} : vector<16x1664xf32> to vector<16x128xf32>
    %56 = arith.truncf %55 : vector<16x128xf32> to vector<16x128xbf16>
    %57 = vector.extract_strided_slice %7 {offsets = [0, 1280], sizes = [16, 128], strides = [1, 1]} : vector<16x1664xf32> to vector<16x128xf32>
    %58 = arith.truncf %57 : vector<16x128xf32> to vector<16x128xbf16>
    %cst_15 = arith.constant dense<0.000000e+00> : vector<16x16xf32>
    %59 = tpu.matmul %54, %56, %cst_15 {dimension_numbers = #tpu.dot_dimension_numbers<[1], [1], [0], [0], [0, 0, 1, 0], [], []>} : vector<16x128xbf16>, vector<16x128xbf16>, vector<16x16xf32> -> vector<16x16xf32>
    %cst_16 = arith.constant 0.176776692 : f32
    %60 = vector.broadcast %cst_16 : f32 to vector<16x16xf32>
    %61 = arith.mulf %59, %60 : vector<16x16xf32>
    %62 = arith.addf %61, %2 : vector<16x16xf32>
    %cst_17 = arith.constant dense<0xFF800000> : vector<16xf32>
    %63 = vector.multi_reduction <maximumf>, %62, %cst_17 [1] : vector<16x16xf32> to vector<16xf32>
    %64 = vector.shape_cast %63 : vector<16xf32> to vector<16x1xf32>
    %65 = vector.broadcast %64 : vector<16x1xf32> to vector<16x16xf32>
    %66 = arith.subf %62, %65 : vector<16x16xf32>
    %67 = math.exp %66 : vector<16x16xf32>
    %cst_18 = arith.constant dense<0.000000e+00> : vector<16xf32>
    %68 = vector.multi_reduction <add>, %67, %cst_18 [1] : vector<16x16xf32> to vector<16xf32>
    %69 = vector.shape_cast %68 : vector<16xf32> to vector<16x1xf32>
    %70 = tpu.reciprocal %69 {approx = true} : vector<16x1xf32> -> vector<16x1xf32>
    %71 = vector.broadcast %70 : vector<16x1xf32> to vector<16x16xf32>
    %72 = arith.mulf %67, %71 : vector<16x16xf32>
    %73 = arith.truncf %72 : vector<16x16xf32> to vector<16x16xbf16>
    %cst_19 = arith.constant dense<0.000000e+00> : vector<16x128xf32>
    %74 = tpu.matmul %73, %58, %cst_19 {dimension_numbers = #tpu.dot_dimension_numbers<[1], [0], [0], [1], [0, 0, 1, 1], [], []>} : vector<16x16xbf16>, vector<16x128xbf16>, vector<16x128xf32> -> vector<16x128xf32>
    %75 = arith.addf %52, %74 : vector<16x128xf32>
    %76 = vector.extract_strided_slice %7 {offsets = [0, 384], sizes = [16, 128], strides = [1, 1]} : vector<16x1664xf32> to vector<16x128xf32>
    %77 = arith.truncf %76 : vector<16x128xf32> to vector<16x128xbf16>
    %78 = vector.extract_strided_slice %7 {offsets = [0, 896], sizes = [16, 128], strides = [1, 1]} : vector<16x1664xf32> to vector<16x128xf32>
    %79 = arith.truncf %78 : vector<16x128xf32> to vector<16x128xbf16>
    %80 = vector.extract_strided_slice %7 {offsets = [0, 1408], sizes = [16, 128], strides = [1, 1]} : vector<16x1664xf32> to vector<16x128xf32>
    %81 = arith.truncf %80 : vector<16x128xf32> to vector<16x128xbf16>
    %cst_20 = arith.constant dense<0.000000e+00> : vector<16x16xf32>
    %82 = tpu.matmul %77, %79, %cst_20 {dimension_numbers = #tpu.dot_dimension_numbers<[1], [1], [0], [0], [0, 0, 1, 0], [], []>} : vector<16x128xbf16>, vector<16x128xbf16>, vector<16x16xf32> -> vector<16x16xf32>
    %cst_21 = arith.constant 0.176776692 : f32
    %83 = vector.broadcast %cst_21 : f32 to vector<16x16xf32>
    %84 = arith.mulf %82, %83 : vector<16x16xf32>
    %85 = arith.addf %84, %2 : vector<16x16xf32>
    %cst_22 = arith.constant dense<0xFF800000> : vector<16xf32>
    %86 = vector.multi_reduction <maximumf>, %85, %cst_22 [1] : vector<16x16xf32> to vector<16xf32>
    %87 = vector.shape_cast %86 : vector<16xf32> to vector<16x1xf32>
    %88 = vector.broadcast %87 : vector<16x1xf32> to vector<16x16xf32>
    %89 = arith.subf %85, %88 : vector<16x16xf32>
    %90 = math.exp %89 : vector<16x16xf32>
    %cst_23 = arith.constant dense<0.000000e+00> : vector<16xf32>
    %91 = vector.multi_reduction <add>, %90, %cst_23 [1] : vector<16x16xf32> to vector<16xf32>
    %92 = vector.shape_cast %91 : vector<16xf32> to vector<16x1xf32>
    %93 = tpu.reciprocal %92 {approx = true} : vector<16x1xf32> -> vector<16x1xf32>
    %94 = vector.broadcast %93 : vector<16x1xf32> to vector<16x16xf32>
    %95 = arith.mulf %90, %94 : vector<16x16xf32>
    %96 = arith.truncf %95 : vector<16x16xf32> to vector<16x16xbf16>
    %cst_24 = arith.constant dense<0.000000e+00> : vector<16x128xf32>
    %97 = tpu.matmul %96, %81, %cst_24 {dimension_numbers = #tpu.dot_dimension_numbers<[1], [0], [0], [1], [0, 0, 1, 1], [], []>} : vector<16x16xbf16>, vector<16x128xbf16>, vector<16x128xf32> -> vector<16x128xf32>
    %98 = arith.addf %75, %97 : vector<16x128xf32>
    %99 = arith.truncf %98 : vector<16x128xf32> to vector<16x128xbf16>
    %c0_25 = arith.constant 0 : index
    %c1664 = arith.constant 1664 : index
    %100 = vector.load %arg1[%c0_25, %c1664] : memref<128x3456xbf16, #tpu.memory_space<vmem>>, vector<128x1536xbf16>
    %cst_26 = arith.constant dense<0.000000e+00> : vector<16x1536xf32>
    %101 = tpu.matmul %99, %100, %cst_26 {dimension_numbers = #tpu.dot_dimension_numbers<[1], [0], [0], [1], [0, 0, 1, 1], [], []>} : vector<16x128xbf16>, vector<128x1536xbf16>, vector<16x1536xf32> -> vector<16x1536xf32>
    %c0_27 = arith.constant 0 : index
    %c1664_28 = arith.constant 1664 : index
    %102 = vector.load %arg2[%c0_27, %c1664_28] : memref<16x3456xf32, #tpu.memory_space<vmem>>, vector<16x1536xf32>
    %103 = arith.addf %101, %102 : vector<16x1536xf32>
    %104 = vector.extract_strided_slice %103 {offsets = [0, 0], sizes = [16, 128], strides = [1, 1]} : vector<16x1536xf32> to vector<16x128xf32>
    %105 = arith.truncf %104 : vector<16x128xf32> to vector<16x128xbf16>
    %106 = vector.extract_strided_slice %103 {offsets = [0, 512], sizes = [16, 128], strides = [1, 1]} : vector<16x1536xf32> to vector<16x128xf32>
    %107 = arith.truncf %106 : vector<16x128xf32> to vector<16x128xbf16>
    %108 = vector.extract_strided_slice %103 {offsets = [0, 1024], sizes = [16, 128], strides = [1, 1]} : vector<16x1536xf32> to vector<16x128xf32>
    %109 = arith.truncf %108 : vector<16x128xf32> to vector<16x128xbf16>
    %cst_29 = arith.constant dense<0.000000e+00> : vector<16x16xf32>
    %110 = tpu.matmul %105, %107, %cst_29 {dimension_numbers = #tpu.dot_dimension_numbers<[1], [1], [0], [0], [0, 0, 1, 0], [], []>} : vector<16x128xbf16>, vector<16x128xbf16>, vector<16x16xf32> -> vector<16x16xf32>
    %cst_30 = arith.constant 0.176776692 : f32
    %111 = vector.broadcast %cst_30 : f32 to vector<16x16xf32>
    %112 = arith.mulf %110, %111 : vector<16x16xf32>
    %113 = arith.addf %112, %2 : vector<16x16xf32>
    %cst_31 = arith.constant dense<0xFF800000> : vector<16xf32>
    %114 = vector.multi_reduction <maximumf>, %113, %cst_31 [1] : vector<16x16xf32> to vector<16xf32>
    %115 = vector.shape_cast %114 : vector<16xf32> to vector<16x1xf32>
    %116 = vector.broadcast %115 : vector<16x1xf32> to vector<16x16xf32>
    %117 = arith.subf %113, %116 : vector<16x16xf32>
    %118 = math.exp %117 : vector<16x16xf32>
    %cst_32 = arith.constant dense<0.000000e+00> : vector<16xf32>
    %119 = vector.multi_reduction <add>, %118, %cst_32 [1] : vector<16x16xf32> to vector<16xf32>
    %120 = vector.shape_cast %119 : vector<16xf32> to vector<16x1xf32>
    %121 = tpu.reciprocal %120 {approx = true} : vector<16x1xf32> -> vector<16x1xf32>
    %122 = vector.broadcast %121 : vector<16x1xf32> to vector<16x16xf32>
    %123 = arith.mulf %118, %122 : vector<16x16xf32>
    %124 = arith.truncf %123 : vector<16x16xf32> to vector<16x16xbf16>
    %cst_33 = arith.constant dense<0.000000e+00> : vector<16x128xf32>
    %125 = tpu.matmul %124, %109, %cst_33 {dimension_numbers = #tpu.dot_dimension_numbers<[1], [0], [0], [1], [0, 0, 1, 1], [], []>} : vector<16x16xbf16>, vector<16x128xbf16>, vector<16x128xf32> -> vector<16x128xf32>
    %126 = vector.extract_strided_slice %103 {offsets = [0, 128], sizes = [16, 128], strides = [1, 1]} : vector<16x1536xf32> to vector<16x128xf32>
    %127 = arith.truncf %126 : vector<16x128xf32> to vector<16x128xbf16>
    %128 = vector.extract_strided_slice %103 {offsets = [0, 640], sizes = [16, 128], strides = [1, 1]} : vector<16x1536xf32> to vector<16x128xf32>
    %129 = arith.truncf %128 : vector<16x128xf32> to vector<16x128xbf16>
    %130 = vector.extract_strided_slice %103 {offsets = [0, 1152], sizes = [16, 128], strides = [1, 1]} : vector<16x1536xf32> to vector<16x128xf32>
    %131 = arith.truncf %130 : vector<16x128xf32> to vector<16x128xbf16>
    %cst_34 = arith.constant dense<0.000000e+00> : vector<16x16xf32>
    %132 = tpu.matmul %127, %129, %cst_34 {dimension_numbers = #tpu.dot_dimension_numbers<[1], [1], [0], [0], [0, 0, 1, 0], [], []>} : vector<16x128xbf16>, vector<16x128xbf16>, vector<16x16xf32> -> vector<16x16xf32>
    %cst_35 = arith.constant 0.176776692 : f32
    %133 = vector.broadcast %cst_35 : f32 to vector<16x16xf32>
    %134 = arith.mulf %132, %133 : vector<16x16xf32>
    %135 = arith.addf %134, %2 : vector<16x16xf32>
    %cst_36 = arith.constant dense<0xFF800000> : vector<16xf32>
    %136 = vector.multi_reduction <maximumf>, %135, %cst_36 [1] : vector<16x16xf32> to vector<16xf32>
    %137 = vector.shape_cast %136 : vector<16xf32> to vector<16x1xf32>
    %138 = vector.broadcast %137 : vector<16x1xf32> to vector<16x16xf32>
    %139 = arith.subf %135, %138 : vector<16x16xf32>
    %140 = math.exp %139 : vector<16x16xf32>
    %cst_37 = arith.constant dense<0.000000e+00> : vector<16xf32>
    %141 = vector.multi_reduction <add>, %140, %cst_37 [1] : vector<16x16xf32> to vector<16xf32>
    %142 = vector.shape_cast %141 : vector<16xf32> to vector<16x1xf32>
    %143 = tpu.reciprocal %142 {approx = true} : vector<16x1xf32> -> vector<16x1xf32>
    %144 = vector.broadcast %143 : vector<16x1xf32> to vector<16x16xf32>
    %145 = arith.mulf %140, %144 : vector<16x16xf32>
    %146 = arith.truncf %145 : vector<16x16xf32> to vector<16x16xbf16>
    %cst_38 = arith.constant dense<0.000000e+00> : vector<16x128xf32>
    %147 = tpu.matmul %146, %131, %cst_38 {dimension_numbers = #tpu.dot_dimension_numbers<[1], [0], [0], [1], [0, 0, 1, 1], [], []>} : vector<16x16xbf16>, vector<16x128xbf16>, vector<16x128xf32> -> vector<16x128xf32>
    %148 = arith.addf %125, %147 : vector<16x128xf32>
    %149 = vector.extract_strided_slice %103 {offsets = [0, 256], sizes = [16, 128], strides = [1, 1]} : vector<16x1536xf32> to vector<16x128xf32>
    %150 = arith.truncf %149 : vector<16x128xf32> to vector<16x128xbf16>
    %151 = vector.extract_strided_slice %103 {offsets = [0, 768], sizes = [16, 128], strides = [1, 1]} : vector<16x1536xf32> to vector<16x128xf32>
    %152 = arith.truncf %151 : vector<16x128xf32> to vector<16x128xbf16>
    %153 = vector.extract_strided_slice %103 {offsets = [0, 1280], sizes = [16, 128], strides = [1, 1]} : vector<16x1536xf32> to vector<16x128xf32>
    %154 = arith.truncf %153 : vector<16x128xf32> to vector<16x128xbf16>
    %cst_39 = arith.constant dense<0.000000e+00> : vector<16x16xf32>
    %155 = tpu.matmul %150, %152, %cst_39 {dimension_numbers = #tpu.dot_dimension_numbers<[1], [1], [0], [0], [0, 0, 1, 0], [], []>} : vector<16x128xbf16>, vector<16x128xbf16>, vector<16x16xf32> -> vector<16x16xf32>
    %cst_40 = arith.constant 0.176776692 : f32
    %156 = vector.broadcast %cst_40 : f32 to vector<16x16xf32>
    %157 = arith.mulf %155, %156 : vector<16x16xf32>
    %158 = arith.addf %157, %2 : vector<16x16xf32>
    %cst_41 = arith.constant dense<0xFF800000> : vector<16xf32>
    %159 = vector.multi_reduction <maximumf>, %158, %cst_41 [1] : vector<16x16xf32> to vector<16xf32>
    %160 = vector.shape_cast %159 : vector<16xf32> to vector<16x1xf32>
    %161 = vector.broadcast %160 : vector<16x1xf32> to vector<16x16xf32>
    %162 = arith.subf %158, %161 : vector<16x16xf32>
    %163 = math.exp %162 : vector<16x16xf32>
    %cst_42 = arith.constant dense<0.000000e+00> : vector<16xf32>
    %164 = vector.multi_reduction <add>, %163, %cst_42 [1] : vector<16x16xf32> to vector<16xf32>
    %165 = vector.shape_cast %164 : vector<16xf32> to vector<16x1xf32>
    %166 = tpu.reciprocal %165 {approx = true} : vector<16x1xf32> -> vector<16x1xf32>
    %167 = vector.broadcast %166 : vector<16x1xf32> to vector<16x16xf32>
    %168 = arith.mulf %163, %167 : vector<16x16xf32>
    %169 = arith.truncf %168 : vector<16x16xf32> to vector<16x16xbf16>
    %cst_43 = arith.constant dense<0.000000e+00> : vector<16x128xf32>
    %170 = tpu.matmul %169, %154, %cst_43 {dimension_numbers = #tpu.dot_dimension_numbers<[1], [0], [0], [1], [0, 0, 1, 1], [], []>} : vector<16x16xbf16>, vector<16x128xbf16>, vector<16x128xf32> -> vector<16x128xf32>
    %171 = arith.addf %148, %170 : vector<16x128xf32>
    %172 = vector.extract_strided_slice %103 {offsets = [0, 384], sizes = [16, 128], strides = [1, 1]} : vector<16x1536xf32> to vector<16x128xf32>
    %173 = arith.truncf %172 : vector<16x128xf32> to vector<16x128xbf16>
    %174 = vector.extract_strided_slice %103 {offsets = [0, 896], sizes = [16, 128], strides = [1, 1]} : vector<16x1536xf32> to vector<16x128xf32>
    %175 = arith.truncf %174 : vector<16x128xf32> to vector<16x128xbf16>
    %176 = vector.extract_strided_slice %103 {offsets = [0, 1408], sizes = [16, 128], strides = [1, 1]} : vector<16x1536xf32> to vector<16x128xf32>
    %177 = arith.truncf %176 : vector<16x128xf32> to vector<16x128xbf16>
    %cst_44 = arith.constant dense<0.000000e+00> : vector<16x16xf32>
    %178 = tpu.matmul %173, %175, %cst_44 {dimension_numbers = #tpu.dot_dimension_numbers<[1], [1], [0], [0], [0, 0, 1, 0], [], []>} : vector<16x128xbf16>, vector<16x128xbf16>, vector<16x16xf32> -> vector<16x16xf32>
    %cst_45 = arith.constant 0.176776692 : f32
    %179 = vector.broadcast %cst_45 : f32 to vector<16x16xf32>
    %180 = arith.mulf %178, %179 : vector<16x16xf32>
    %181 = arith.addf %180, %2 : vector<16x16xf32>
    %cst_46 = arith.constant dense<0xFF800000> : vector<16xf32>
    %182 = vector.multi_reduction <maximumf>, %181, %cst_46 [1] : vector<16x16xf32> to vector<16xf32>
    %183 = vector.shape_cast %182 : vector<16xf32> to vector<16x1xf32>
    %184 = vector.broadcast %183 : vector<16x1xf32> to vector<16x16xf32>
    %185 = arith.subf %181, %184 : vector<16x16xf32>
    %186 = math.exp %185 : vector<16x16xf32>
    %cst_47 = arith.constant dense<0.000000e+00> : vector<16xf32>
    %187 = vector.multi_reduction <add>, %186, %cst_47 [1] : vector<16x16xf32> to vector<16xf32>
    %188 = vector.shape_cast %187 : vector<16xf32> to vector<16x1xf32>
    %189 = tpu.reciprocal %188 {approx = true} : vector<16x1xf32> -> vector<16x1xf32>
    %190 = vector.broadcast %189 : vector<16x1xf32> to vector<16x16xf32>
    %191 = arith.mulf %186, %190 : vector<16x16xf32>
    %192 = arith.truncf %191 : vector<16x16xf32> to vector<16x16xbf16>
    %cst_48 = arith.constant dense<0.000000e+00> : vector<16x128xf32>
    %193 = tpu.matmul %192, %177, %cst_48 {dimension_numbers = #tpu.dot_dimension_numbers<[1], [0], [0], [1], [0, 0, 1, 1], [], []>} : vector<16x16xbf16>, vector<16x128xbf16>, vector<16x128xf32> -> vector<16x128xf32>
    %194 = arith.addf %171, %193 : vector<16x128xf32>
    %195 = arith.truncf %194 : vector<16x128xf32> to vector<16x128xbf16>
    %c0_49 = arith.constant 0 : index
    %c3200 = arith.constant 3200 : index
    %196 = vector.load %arg1[%c0_49, %c3200] : memref<128x3456xbf16, #tpu.memory_space<vmem>>, vector<128x128xbf16>
    %cst_50 = arith.constant dense<0.000000e+00> : vector<16x128xf32>
    %197 = tpu.matmul %195, %196, %cst_50 {dimension_numbers = #tpu.dot_dimension_numbers<[1], [0], [0], [1], [0, 0, 1, 1], [], []>} : vector<16x128xbf16>, vector<128x128xbf16>, vector<16x128xf32> -> vector<16x128xf32>
    %c0_51 = arith.constant 0 : index
    %c3200_52 = arith.constant 3200 : index
    %198 = vector.load %arg2[%c0_51, %c3200_52] : memref<16x3456xf32, #tpu.memory_space<vmem>>, vector<16x128xf32>
    %199 = arith.addf %197, %198 : vector<16x128xf32>
    %200 = vector.extract_strided_slice %199 {offsets = [0, 32], sizes = [16, 32], strides = [1, 1]} : vector<16x128xf32> to vector<16x32xf32>
    %201 = vector.extract_strided_slice %7 {offsets = [0, 1536], sizes = [16, 32], strides = [1, 1]} : vector<16x1664xf32> to vector<16x32xf32>
    %202 = arith.addf %200, %201 : vector<16x32xf32>
    %203 = arith.negf %202 : vector<16x32xf32>
    %204 = math.exp %203 : vector<16x32xf32>
    %cst_53 = arith.constant 1.000000e+00 : f32
    %205 = vector.broadcast %cst_53 : f32 to vector<16x32xf32>
    %206 = arith.addf %205, %204 : vector<16x32xf32>
    %207 = arith.divf %205, %206 : vector<16x32xf32>
    %208 = vector.extract_strided_slice %199 {offsets = [0, 64], sizes = [16, 32], strides = [1, 1]} : vector<16x128xf32> to vector<16x32xf32>
    %209 = vector.extract_strided_slice %7 {offsets = [0, 1568], sizes = [16, 32], strides = [1, 1]} : vector<16x1664xf32> to vector<16x32xf32>
    %210 = arith.addf %208, %209 : vector<16x32xf32>
    %211 = arith.negf %210 : vector<16x32xf32>
    %212 = math.exp %211 : vector<16x32xf32>
    %cst_54 = arith.constant 1.000000e+00 : f32
    %213 = vector.broadcast %cst_54 : f32 to vector<16x32xf32>
    %214 = arith.addf %213, %212 : vector<16x32xf32>
    %215 = arith.divf %213, %214 : vector<16x32xf32>
    %216 = vector.extract_strided_slice %199 {offsets = [0, 96], sizes = [16, 32], strides = [1, 1]} : vector<16x128xf32> to vector<16x32xf32>
    %217 = vector.extract_strided_slice %7 {offsets = [0, 1600], sizes = [16, 32], strides = [1, 1]} : vector<16x1664xf32> to vector<16x32xf32>
    %218 = arith.mulf %207, %217 : vector<16x32xf32>
    %219 = arith.addf %216, %218 : vector<16x32xf32>
    %220 = math.tanh %219 : vector<16x32xf32>
    %cst_55 = arith.constant 1.000000e+00 : f32
    %221 = vector.broadcast %cst_55 : f32 to vector<16x32xf32>
    %222 = arith.subf %221, %215 : vector<16x32xf32>
    %223 = arith.mulf %222, %220 : vector<16x32xf32>
    %224 = arith.mulf %215, %3 : vector<16x32xf32>
    %225 = arith.addf %223, %224 : vector<16x32xf32>
    %226 = arith.truncf %225 : vector<16x32xf32> to vector<16x32xbf16>
    %c0_56 = arith.constant 0 : index
    %c3328 = arith.constant 3328 : index
    %227 = vector.load %arg1[%c0_56, %c3328] : memref<128x3456xbf16, #tpu.memory_space<vmem>>, vector<32x128xbf16>
    %cst_57 = arith.constant dense<0.000000e+00> : vector<16x128xf32>
    %228 = tpu.matmul %226, %227, %cst_57 {dimension_numbers = #tpu.dot_dimension_numbers<[1], [0], [0], [1], [0, 0, 1, 1], [], []>} : vector<16x32xbf16>, vector<32x128xbf16>, vector<16x128xf32> -> vector<16x128xf32>
    %c0_58 = arith.constant 0 : index
    %c3328_59 = arith.constant 3328 : index
    %229 = vector.load %arg2[%c0_58, %c3328_59] : memref<16x3456xf32, #tpu.memory_space<vmem>>, vector<16x128xf32>
    %230 = arith.addf %228, %229 : vector<16x128xf32>
    %cst_60 = arith.constant 0.000000e+00 : f32
    %231 = vector.broadcast %cst_60 : f32 to vector<16x128xf32>
    %232 = arith.maximumf %230, %231 : vector<16x128xf32>
    %c0_61 = arith.constant 0 : index
    %c0_62 = arith.constant 0 : index
    %233 = vector.load %arg3[%c0_61, %c0_62] : memref<16x128xf32, #tpu.memory_space<vmem>>, vector<16x128xf32>
    tpu.vector_store %arg3[%c0_61, %c0_62], %232 {strides = array<i32>} : memref<16x128xf32, #tpu.memory_space<vmem>>, vector<16x128xf32>,
    %c0_63 = arith.constant 0 : index
    %c0_64 = arith.constant 0 : index
    %234 = vector.load %arg4[%c0_63, %c0_64] : memref<16x32xf32, #tpu.memory_space<vmem>>, vector<16x32xf32>
    tpu.vector_store %arg4[%c0_63, %c0_64], %225 {strides = array<i32>} : memref<16x32xf32, #tpu.memory_space<vmem>>, vector<16x32xf32>,
    return
  }
}

</mosaic_0001>

<llo_original>
// kernel: drgn_forward.1
$region0: #{drgn_forward.1}
  #allocation0 [shape = 'u32[]', space=smem, size = 0x4, offset = 0x4, fixed_abs, tag = 'smem constant byte address 0x4 - core index']
  #allocation1 [shape = 'u32[144,128]{1,0:T(1,128)}', space=vmem, size = 0x12000, scoped, tag = 'internal scratch']
  %s0 = inlined_call_operand.vmem [shape: f32[16,128], index: 0, kind: input, shape index: {}]
  %s1 = inlined_call_operand.hbm [shape: bf16[128,3456], index: 1, kind: input, shape index: {}]
  %s2 = inlined_call_operand.hbm [shape: f32[16,3456], index: 2, kind: input, shape index: {}]
  %s3 = inlined_call_operand.vmem [shape: f32[16,128], index: 3, kind: output, shape index: {0}]
  %s4 = inlined_call_operand.hbm [shape: f32[16,32], index: 4, kind: output, shape index: {1}]
  %5 = xla_tuple %s3, %s4
  %s6 = sld [smem:[#allocation0]]
  $region38: #{drgn_forward.1} parent=0
    _
  %s8 = ssub.s32 1, %s6
  %s9 = scalar_select 0, %s8, %s6
  $region1: #{drgn_forward.1} parent=0
    #allocation2 [shape = 'u8[884736]{0}', space=vmem, size = 0xd8000, scoped, tag = 'input window, operand 1, single buffered']
    #allocation3 [shape = 's32[1]{0}', space=sflag, size = 0x4, scoped, tag = 'scoped memory for drgn_forward.1']
    #allocation4 [shape = 's32[1]{0}', space=sflag, size = 0x4, scoped, tag = 'scoped memory for drgn_forward.1']
    #allocation5 [shape = 'u8[221184]{0}', space=vmem, size = 0x36000, scoped, tag = 'input window, operand 2, single buffered']
    #allocation6 [shape = 's32[1]{0}', space=sflag, size = 0x4, scoped, tag = 'scoped memory for drgn_forward.1']
    #allocation7 [shape = 'u8[8192]{0}', space=vmem, size = 0x2000, scoped, tag = 'output window, operand 1, single buffered']
    %10 = vsyncpa [#allocation3], 0
    %11 = vsyncpa [#allocation6], 0
    %12 = vsyncpa [#allocation4], 0
    // Predicated region
    $region2: #{drgn_forward.1} parent=1 // pred_check
      _
    $region3: #{drgn_forward.1} parent=1 // pred_check_branch
      %14 = sbr.rel (0) target = $region5
    $region4: #{drgn_forward.1} parent=1 // pred_region
      _
    $region5: #{drgn_forward.1} parent=1 // pred_fallthru
      _
    // Predicated region
    $region6: #{drgn_forward.1} parent=1 // pred_check
      _
    $region7: #{drgn_forward.1} parent=1 // pred_check_branch
      %16 = sbr.rel (0) target = $region9
    $region8: #{drgn_forward.1} parent=1 // pred_region
      %s18 = ssub.s32 27648, 27648
      %19 = vsyncadd [#allocation3], %s18
      %s20 = sshll.u32 [#allocation2], 4
      %s21 = int_to_ptr.vmem [resolvable:$true] %s20
      %26 = dma.hbm_to_vmem [thread:$0]  %s1, 27648, %s21, [#allocation3], 1728, 1728, 108
    $region9: #{drgn_forward.1} parent=1 // pred_fallthru
      _
    // Predicated region
    $region10: #{drgn_forward.1} parent=1 // pred_check
      _
    $region11: #{drgn_forward.1} parent=1 // pred_check_branch
      %28 = sbr.rel (0) target = $region13
    $region12: #{drgn_forward.1} parent=1 // pred_region
      %s30 = ssub.s32 6912, 6912
      %31 = vsyncadd [#allocation6], %s30
      %s32 = sshll.u32 [#allocation5], 4
      %s33 = int_to_ptr.vmem [resolvable:$true] %s32
      %38 = dma.hbm_to_vmem [thread:$0]  %s2, 6912, %s33, [#allocation6], 3456, 3456, 216
    $region13: #{drgn_forward.1} parent=1 // pred_fallthru
      _
    // Predicated region
    $region14: #{drgn_forward.1} parent=1 // pred_check
      _
    $region15: #{drgn_forward.1} parent=1 // pred_check_branch
      %40 = sbr.rel (0) target = $region17
    $region16: #{drgn_forward.1} parent=1 // pred_region
      %41 = dma.done [#allocation3], 27648
    $region17: #{drgn_forward.1} parent=1 // pred_fallthru
      _
    // Predicated region
    $region18: #{drgn_forward.1} parent=1 // pred_check
      _
    $region19: #{drgn_forward.1} parent=1 // pred_check_branch
      %43 = sbr.rel (0) target = $region21
    $region20: #{drgn_forward.1} parent=1 // pred_region
      %44 = dma.done [#allocation6], 6912
    $region21: #{drgn_forward.1} parent=1 // pred_fallthru
      _
    %v46 = vld [vmem:[%s0] sm:$0xff]
    %v47 = vld [vmem:[%s0 + $0x8] sm:$0xff]
    %v48 = vpack.c.bf16 %v47, %v46
    %v49 = vld [vmem:[#allocation2] sm:$0xff]
    %v50 = vld [vmem:[#allocation2 + $0x8] sm:$0xff]
    %v51 = vld [vmem:[#allocation2 + $0x10] sm:$0xff]
    %v52 = vld [vmem:[#allocation2 + $0x18] sm:$0xff]
    %v53 = vld [vmem:[#allocation2 + $0x20] sm:$0xff]
    %v54 = vld [vmem:[#allocation2 + $0x28] sm:$0xff]
    %v55 = vld [vmem:[#allocation2 + $0x30] sm:$0xf]
    %v56 = vld [vmem:[#allocation2 + $0x6c] sm:$0xff]
    %v57 = vld [vmem:[#allocation2 + $0x74] sm:$0xff]
    %v58 = vld [vmem:[#allocation2 + $0x7c] sm:$0xff]
    %v59 = vld [vmem:[#allocation2 + $0x84] sm:$0xff]
    %v60 = vld [vmem:[#allocation2 + $0x8c] sm:$0xff]
    %v61 = vld [vmem:[#allocation2 + $0x94] sm:$0xff]
    %v62 = vld [vmem:[#allocation2 + $0x9c] sm:$0xf]
    %v63 = vld [vmem:[#allocation2 + $0xd8] sm:$0xff]
    %v64 = vld [vmem:[#allocation2 + $0xe0] sm:$0xff]
    %v65 = vld [vmem:[#allocation2 + $0xe8] sm:$0xff]
    %v66 = vld [vmem:[#allocation2 + $0xf0] sm:$0xff]
    %v67 = vld [vmem:[#allocation2 + $0xf8] sm:$0xff]
    %v68 = vld [vmem:[#allocation2 + $0x100] sm:$0xff]
    %v69 = vld [vmem:[#allocation2 + $0x108] sm:$0xf]
    %v70 = vld [vmem:[#allocation2 + $0x144] sm:$0xff]
    %v71 = vld [vmem:[#allocation2 + $0x14c] sm:$0xff]
    %v72 = vld [vmem:[#allocation2 + $0x154] sm:$0xff]
    %v73 = vld [vmem:[#allocation2 + $0x15c] sm:$0xff]
    %v74 = vld [vmem:[#allocation2 + $0x164] sm:$0xff]
    %v75 = vld [vmem:[#allocation2 + $0x16c] sm:$0xff]
    %v76 = vld [vmem:[#allocation2 + $0x174] sm:$0xf]
    %v77 = vld [vmem:[#allocation2 + $0x1b0] sm:$0xff]
    %v78 = vld [vmem:[#allocation2 + $0x1b8] sm:$0xff]
    %v79 = vld [vmem:[#allocation2 + $0x1c0] sm:$0xff]
    %v80 = vld [vmem:[#allocation2 + $0x1c8] sm:$0xff]
    %v81 = vld [vmem:[#allocation2 + $0x1d0] sm:$0xff]
    %v82 = vld [vmem:[#allocation2 + $0x1d8] sm:$0xff]
    %v83 = vld [vmem:[#allocation2 + $0x1e0] sm:$0xf]
    %v84 = vld [vmem:[#allocation2 + $0x21c] sm:$0xff]
    %v85 = vld [vmem:[#allocation2 + $0x224] sm:$0xff]
    %v86 = vld [vmem:[#allocation2 + $0x22c] sm:$0xff]
    %v87 = vld [vmem:[#allocation2 + $0x234] sm:$0xff]
    %v88 = vld [vmem:[#allocation2 + $0x23c] sm:$0xff]
    %v89 = vld [vmem:[#allocation2 + $0x244] sm:$0xff]
    %v90 = vld [vmem:[#allocation2 + $0x24c] sm:$0xf]
    %v91 = vld [vmem:[#allocation2 + $0x288] sm:$0xff]
    %v92 = vld [vmem:[#allocation2 + $0x290] sm:$0xff]
    %v93 = vld [vmem:[#allocation2 + $0x298] sm:$0xff]
    %v94 = vld [vmem:[#allocation2 + $0x2a0] sm:$0xff]
    %v95 = vld [vmem:[#allocation2 + $0x2a8] sm:$0xff]
    %v96 = vld [vmem:[#allocation2 + $0x2b0] sm:$0xff]
    %v97 = vld [vmem:[#allocation2 + $0x2b8] sm:$0xf]
    %v98 = vld [vmem:[#allocation2 + $0x2f4] sm:$0xff]
    %v99 = vld [vmem:[#allocation2 + $0x2fc] sm:$0xff]
    %v100 = vld [vmem:[#allocation2 + $0x304] sm:$0xff]
    %v101 = vld [vmem:[#allocation2 + $0x30c] sm:$0xff]
    %v102 = vld [vmem:[#allocation2 + $0x314] sm:$0xff]
    %v103 = vld [vmem:[#allocation2 + $0x31c] sm:$0xff]
    %v104 = vld [vmem:[#allocation2 + $0x324] sm:$0xf]
    %v105 = vld [vmem:[#allocation2 + $0x360] sm:$0xff]
    %v106 = vld [vmem:[#allocation2 + $0x368] sm:$0xff]
    %v107 = vld [vmem:[#allocation2 + $0x370] sm:$0xff]
    %v108 = vld [vmem:[#allocation2 + $0x378] sm:$0xff]
    %v109 = vld [vmem:[#allocation2 + $0x380] sm:$0xff]
    %v110 = vld [vmem:[#allocation2 + $0x388] sm:$0xff]
    %v111 = vld [vmem:[#allocation2 + $0x390] sm:$0xf]
    %v112 = vld [vmem:[#allocation2 + $0x3cc] sm:$0xff]
    %v113 = vld [vmem:[#allocation2 + $0x3d4] sm:$0xff]
    %v114 = vld [vmem:[#allocation2 + $0x3dc] sm:$0xff]
    %v115 = vld [vmem:[#allocation2 + $0x3e4] sm:$0xff]
    %v116 = vld [vmem:[#allocation2 + $0x3ec] sm:$0xff]
    %v117 = vld [vmem:[#allocation2 + $0x3f4] sm:$0xff]
    %v118 = vld [vmem:[#allocation2 + $0x3fc] sm:$0xf]
    %v119 = vld [vmem:[#allocation2 + $0x438] sm:$0xff]
    %v120 = vld [vmem:[#allocation2 + $0x440] sm:$0xff]
    %v121 = vld [vmem:[#allocation2 + $0x448] sm:$0xff]
    %v122 = vld [vmem:[#allocation2 + $0x450] sm:$0xff]
    %v123 = vld [vmem:[#allocation2 + $0x458] sm:$0xff]
    %v124 = vld [vmem:[#allocation2 + $0x460] sm:$0xff]
    %v125 = vld [vmem:[#allocation2 + $0x468] sm:$0xf]
    %v126 = vld [vmem:[#allocation2 + $0x4a4] sm:$0xff]
    %v127 = vld [vmem:[#allocation2 + $0x4ac] sm:$0xff]
    %v128 = vld [vmem:[#allocation2 + $0x4b4] sm:$0xff]
    %v129 = vld [vmem:[#allocation2 + $0x4bc] sm:$0xff]
    %v130 = vld [vmem:[#allocation2 + $0x4c4] sm:$0xff]
    %v131 = vld [vmem:[#allocation2 + $0x4cc] sm:$0xff]
    %v132 = vld [vmem:[#allocation2 + $0x4d4] sm:$0xf]
    %v133 = vld [vmem:[#allocation2 + $0x510] sm:$0xff]
    %v134 = vld [vmem:[#allocation2 + $0x518] sm:$0xff]
    %v135 = vld [vmem:[#allocation2 + $0x520] sm:$0xff]
    %v136 = vld [vmem:[#allocation2 + $0x528] sm:$0xff]
    %v137 = vld [vmem:[#allocation2 + $0x530] sm:$0xff]
    %v138 = vld [vmem:[#allocation2 + $0x538] sm:$0xff]
    %v139 = vld [vmem:[#allocation2 + $0x540] sm:$0xf]
    %v140 = vld [vmem:[#allocation2 + $0x57c] sm:$0xff]
    %v141 = vld [vmem:[#allocation2 + $0x584] sm:$0xff]
    %v142 = vld [vmem:[#allocation2 + $0x58c] sm:$0xff]
    %v143 = vld [vmem:[#allocation2 + $0x594] sm:$0xff]
    %v144 = vld [vmem:[#allocation2 + $0x59c] sm:$0xff]
    %v145 = vld [vmem:[#allocation2 + $0x5a4] sm:$0xff]
    %v146 = vld [vmem:[#allocation2 + $0x5ac] sm:$0xf]
    %v147 = vld [vmem:[#allocation2 + $0x5e8] sm:$0xff]
    %v148 = vld [vmem:[#allocation2 + $0x5f0] sm:$0xff]
    %v149 = vld [vmem:[#allocation2 + $0x5f8] sm:$0xff]
    %v150 = vld [vmem:[#allocation2 + $0x600] sm:$0xff]
    %v151 = vld [vmem:[#allocation2 + $0x608] sm:$0xff]
    %v152 = vld [vmem:[#allocation2 + $0x610] sm:$0xff]
    %v153 = vld [vmem:[#allocation2 + $0x618] sm:$0xf]
    %v154 = vld [vmem:[#allocation2 + $0x654] sm:$0xff]
    %v155 = vld [vmem:[#allocation2 + $0x65c] sm:$0xff]
    %v156 = vld [vmem:[#allocation2 + $0x664] sm:$0xff]
    %v157 = vld [vmem:[#allocation2 + $0x66c] sm:$0xff]
    %v158 = vld [vmem:[#allocation2 + $0x674] sm:$0xff]
    %v159 = vld [vmem:[#allocation2 + $0x67c] sm:$0xff]
    %v160 = vld [vmem:[#allocation2 + $0x684] sm:$0xf]
    %v161 = vld [vmem:[#allocation5] sm:$0xff]
    %v162 = vld [vmem:[#allocation5 + $0x8] sm:$0xff]
    %v163 = vld [vmem:[#allocation5 + $0x10] sm:$0xff]
    %v164 = vld [vmem:[#allocation5 + $0x18] sm:$0xff]
    %v165 = vld [vmem:[#allocation5 + $0x20] sm:$0xff]
    %v166 = vld [vmem:[#allocation5 + $0x28] sm:$0xff]
    %v167 = vld [vmem:[#allocation5 + $0x30] sm:$0xff]
    %v168 = vld [vmem:[#allocation5 + $0x38] sm:$0xff]
    %v169 = vld [vmem:[#allocation5 + $0x40] sm:$0xff]
    %v170 = vld [vmem:[#allocation5 + $0x48] sm:$0xff]
    %v171 = vld [vmem:[#allocation5 + $0x50] sm:$0xff]
    %v172 = vld [vmem:[#allocation5 + $0x58] sm:$0xff]
    %v173 = vld [vmem:[#allocation5 + $0x60] sm:$0xff]
    %v174 = vld [vmem:[#allocation5 + $0xd8] sm:$0xff]
    %v175 = vld [vmem:[#allocation5 + $0xe0] sm:$0xff]
    %v176 = vld [vmem:[#allocation5 + $0xe8] sm:$0xff]
    %v177 = vld [vmem:[#allocation5 + $0xf0] sm:$0xff]
    %v178 = vld [vmem:[#allocation5 + $0xf8] sm:$0xff]
    %v179 = vld [vmem:[#allocation5 + $0x100] sm:$0xff]
    %v180 = vld [vmem:[#allocation5 + $0x108] sm:$0xff]
    %v181 = vld [vmem:[#allocation5 + $0x110] sm:$0xff]
    %v182 = vld [vmem:[#allocation5 + $0x118] sm:$0xff]
    %v183 = vld [vmem:[#allocation5 + $0x120] sm:$0xff]
    %v184 = vld [vmem:[#allocation5 + $0x128] sm:$0xff]
    %v185 = vld [vmem:[#allocation5 + $0x130] sm:$0xff]
    %v186 = vld [vmem:[#allocation5 + $0x138] sm:$0xff]
    %v299 = vunpack.c.l.b16 %v49
    %v300 = vunpack.c.h.b16 %v49
    %v301 = vunpack.c.l.b16 %v50
    %v302 = vunpack.c.h.b16 %v50
    %v303 = vunpack.c.l.b16 %v51
    %v304 = vunpack.c.h.b16 %v51
    %v305 = vunpack.c.l.b16 %v52
    %v306 = vunpack.c.h.b16 %v52
    %v307 = vunpack.c.l.b16 %v53
    %v308 = vunpack.c.h.b16 %v53
    %v309 = vunpack.c.l.b16 %v54
    %v310 = vunpack.c.h.b16 %v54
    %v311 = vunpack.c.l.b16 %v55
    %v312 = vunpack.c.l.b16 %v56
    %v313 = vunpack.c.h.b16 %v56
    %v314 = vunpack.c.l.b16 %v57
    %v315 = vunpack.c.h.b16 %v57
    %v316 = vunpack.c.l.b16 %v58
    %v317 = vunpack.c.h.b16 %v58
    %v318 = vunpack.c.l.b16 %v59
    %v319 = vunpack.c.h.b16 %v59
    %v320 = vunpack.c.l.b16 %v60
    %v321 = vunpack.c.h.b16 %v60
    %v322 = vunpack.c.l.b16 %v61
    %v323 = vunpack.c.h.b16 %v61
    %v324 = vunpack.c.l.b16 %v62
    %v325 = vunpack.c.l.b16 %v63
    %v326 = vunpack.c.h.b16 %v63
    %v327 = vunpack.c.l.b16 %v64
    %v328 = vunpack.c.h.b16 %v64
    %v329 = vunpack.c.l.b16 %v65
    %v330 = vunpack.c.h.b16 %v65
    %v331 = vunpack.c.l.b16 %v66
    %v332 = vunpack.c.h.b16 %v66
    %v333 = vunpack.c.l.b16 %v67
    %v334 = vunpack.c.h.b16 %v67
    %v335 = vunpack.c.l.b16 %v68
    %v336 = vunpack.c.h.b16 %v68
    %v337 = vunpack.c.l.b16 %v69
    %v338 = vunpack.c.l.b16 %v70
    %v339 = vunpack.c.h.b16 %v70
    %v340 = vunpack.c.l.b16 %v71
    %v341 = vunpack.c.h.b16 %v71
    %v342 = vunpack.c.l.b16 %v72
    %v343 = vunpack.c.h.b16 %v72
    %v344 = vunpack.c.l.b16 %v73
    %v345 = vunpack.c.h.b16 %v73
    %v346 = vunpack.c.l.b16 %v74
    %v347 = vunpack.c.h.b16 %v74
    %v348 = vunpack.c.l.b16 %v75
    %v349 = vunpack.c.h.b16 %v75
    %v350 = vunpack.c.l.b16 %v76
    %v351 = vunpack.c.l.b16 %v77
    %v352 = vunpack.c.h.b16 %v77
    %v353 = vunpack.c.l.b16 %v78
    %v354 = vunpack.c.h.b16 %v78
    %v355 = vunpack.c.l.b16 %v79
    %v356 = vunpack.c.h.b16 %v79
    %v357 = vunpack.c.l.b16 %v80
    %v358 = vunpack.c.h.b16 %v80
    %v359 = vunpack.c.l.b16 %v81
    %v360 = vunpack.c.h.b16 %v81
    %v361 = vunpack.c.l.b16 %v82
    %v362 = vunpack.c.h.b16 %v82
    %v363 = vunpack.c.l.b16 %v83
    %v364 = vunpack.c.l.b16 %v84
    %v365 = vunpack.c.h.b16 %v84
    %v366 = vunpack.c.l.b16 %v85
    %v367 = vunpack.c.h.b16 %v85
    %v368 = vunpack.c.l.b16 %v86
    %v369 = vunpack.c.h.b16 %v86
    %v370 = vunpack.c.l.b16 %v87
    %v371 = vunpack.c.h.b16 %v87
    %v372 = vunpack.c.l.b16 %v88
    %v373 = vunpack.c.h.b16 %v88
    %v374 = vunpack.c.l.b16 %v89
    %v375 = vunpack.c.h.b16 %v89
    %v376 = vunpack.c.l.b16 %v90
    %v377 = vunpack.c.l.b16 %v91
    %v378 = vunpack.c.h.b16 %v91
    %v379 = vunpack.c.l.b16 %v92
    %v380 = vunpack.c.h.b16 %v92
    %v381 = vunpack.c.l.b16 %v93
    %v382 = vunpack.c.h.b16 %v93
    %v383 = vunpack.c.l.b16 %v94
    %v384 = vunpack.c.h.b16 %v94
    %v385 = vunpack.c.l.b16 %v95
    %v386 = vunpack.c.h.b16 %v95
    %v387 = vunpack.c.l.b16 %v96
    %v388 = vunpack.c.h.b16 %v96
    %v389 = vunpack.c.l.b16 %v97
    %v390 = vunpack.c.l.b16 %v98
    %v391 = vunpack.c.h.b16 %v98
    %v392 = vunpack.c.l.b16 %v99
    %v393 = vunpack.c.h.b16 %v99
    %v394 = vunpack.c.l.b16 %v100
    %v395 = vunpack.c.h.b16 %v100
    %v396 = vunpack.c.l.b16 %v101
    %v397 = vunpack.c.h.b16 %v101
    %v398 = vunpack.c.l.b16 %v102
    %v399 = vunpack.c.h.b16 %v102
    %v400 = vunpack.c.l.b16 %v103
    %v401 = vunpack.c.h.b16 %v103
    %v402 = vunpack.c.l.b16 %v104
    %v403 = vunpack.c.l.b16 %v105
    %v404 = vunpack.c.h.b16 %v105
    %v405 = vunpack.c.l.b16 %v106
    %v406 = vunpack.c.h.b16 %v106
    %v407 = vunpack.c.l.b16 %v107
    %v408 = vunpack.c.h.b16 %v107
    %v409 = vunpack.c.l.b16 %v108
    %v410 = vunpack.c.h.b16 %v108
    %v411 = vunpack.c.l.b16 %v109
    %v412 = vunpack.c.h.b16 %v109
    %v413 = vunpack.c.l.b16 %v110
    %v414 = vunpack.c.h.b16 %v110
    %v415 = vunpack.c.l.b16 %v111
    %v416 = vunpack.c.l.b16 %v112
    %v417 = vunpack.c.h.b16 %v112
    %v418 = vunpack.c.l.b16 %v113
    %v419 = vunpack.c.h.b16 %v113
    %v420 = vunpack.c.l.b16 %v114
    %v421 = vunpack.c.h.b16 %v114
    %v422 = vunpack.c.l.b16 %v115
    %v423 = vunpack.c.h.b16 %v115
    %v424 = vunpack.c.l.b16 %v116
    %v425 = vunpack.c.h.b16 %v116
    %v426 = vunpack.c.l.b16 %v117
    %v427 = vunpack.c.h.b16 %v117
    %v428 = vunpack.c.l.b16 %v118
    %v429 = vunpack.c.l.b16 %v119
    %v430 = vunpack.c.h.b16 %v119
    %v431 = vunpack.c.l.b16 %v120
    %v432 = vunpack.c.h.b16 %v120
    %v433 = vunpack.c.l.b16 %v121
    %v434 = vunpack.c.h.b16 %v121
    %v435 = vunpack.c.l.b16 %v122
    %v436 = vunpack.c.h.b16 %v122
    %v437 = vunpack.c.l.b16 %v123
    %v438 = vunpack.c.h.b16 %v123
    %v439 = vunpack.c.l.b16 %v124
    %v440 = vunpack.c.h.b16 %v124
    %v441 = vunpack.c.l.b16 %v125
    %v442 = vunpack.c.l.b16 %v126
    %v443 = vunpack.c.h.b16 %v126
    %v444 = vunpack.c.l.b16 %v127
    %v445 = vunpack.c.h.b16 %v127
    %v446 = vunpack.c.l.b16 %v128
    %v447 = vunpack.c.h.b16 %v128
    %v448 = vunpack.c.l.b16 %v129
    %v449 = vunpack.c.h.b16 %v129
    %v450 = vunpack.c.l.b16 %v130
    %v451 = vunpack.c.h.b16 %v130
    %v452 = vunpack.c.l.b16 %v131
    %v453 = vunpack.c.h.b16 %v131
    %v454 = vunpack.c.l.b16 %v132
    %v455 = vunpack.c.l.b16 %v133
    %v456 = vunpack.c.h.b16 %v133
    %v457 = vunpack.c.l.b16 %v134
    %v458 = vunpack.c.h.b16 %v134
    %v459 = vunpack.c.l.b16 %v135
    %v460 = vunpack.c.h.b16 %v135
    %v461 = vunpack.c.l.b16 %v136
    %v462 = vunpack.c.h.b16 %v136
    %v463 = vunpack.c.l.b16 %v137
    %v464 = vunpack.c.h.b16 %v137
    %v465 = vunpack.c.l.b16 %v138
    %v466 = vunpack.c.h.b16 %v138
    %v467 = vunpack.c.l.b16 %v139
    %v468 = vunpack.c.l.b16 %v140
    %v469 = vunpack.c.h.b16 %v140
    %v470 = vunpack.c.l.b16 %v141
    %v471 = vunpack.c.h.b16 %v141
    %v472 = vunpack.c.l.b16 %v142
    %v473 = vunpack.c.h.b16 %v142
    %v474 = vunpack.c.l.b16 %v143
    %v475 = vunpack.c.h.b16 %v143
    %v476 = vunpack.c.l.b16 %v144
    %v477 = vunpack.c.h.b16 %v144
    %v478 = vunpack.c.l.b16 %v145
    %v479 = vunpack.c.h.b16 %v145
    %v480 = vunpack.c.l.b16 %v146
    %v481 = vunpack.c.l.b16 %v147
    %v482 = vunpack.c.h.b16 %v147
    %v483 = vunpack.c.l.b16 %v148
    %v484 = vunpack.c.h.b16 %v148
    %v485 = vunpack.c.l.b16 %v149
    %v486 = vunpack.c.h.b16 %v149
    %v487 = vunpack.c.l.b16 %v150
    %v488 = vunpack.c.h.b16 %v150
    %v489 = vunpack.c.l.b16 %v151
    %v490 = vunpack.c.h.b16 %v151
    %v491 = vunpack.c.l.b16 %v152
    %v492 = vunpack.c.h.b16 %v152
    %v493 = vunpack.c.l.b16 %v153
    %v494 = vunpack.c.l.b16 %v154
    %v495 = vunpack.c.h.b16 %v154
    %v496 = vunpack.c.l.b16 %v155
    %v497 = vunpack.c.h.b16 %v155
    %v498 = vunpack.c.l.b16 %v156
    %v499 = vunpack.c.h.b16 %v156
    %v500 = vunpack.c.l.b16 %v157
    %v501 = vunpack.c.h.b16 %v157
    %v502 = vunpack.c.l.b16 %v158
    %v503 = vunpack.c.h.b16 %v158
    %v504 = vunpack.c.l.b16 %v159
    %v505 = vunpack.c.h.b16 %v159
    %v506 = vunpack.c.l.b16 %v160
    %v507 = vpack.c.b16 %v312, %v299
    %v508 = vpack.c.b16 %v313, %v300
    %v509 = vpack.c.b16 %v314, %v301
    %v510 = vpack.c.b16 %v315, %v302
    %v511 = vpack.c.b16 %v316, %v303
    %v512 = vpack.c.b16 %v317, %v304
    %v513 = vpack.c.b16 %v318, %v305
    %v514 = vpack.c.b16 %v319, %v306
    %v515 = vpack.c.b16 %v320, %v307
    %v516 = vpack.c.b16 %v321, %v308
    %v517 = vpack.c.b16 %v322, %v309
    %v518 = vpack.c.b16 %v323, %v310
    %v519 = vpack.c.b16 %v324, %v311
    %v520 = vpack.c.b16 %v338, %v325
    %v521 = vpack.c.b16 %v339, %v326
    %v522 = vpack.c.b16 %v340, %v327
    %v523 = vpack.c.b16 %v341, %v328
    %v524 = vpack.c.b16 %v342, %v329
    %v525 = vpack.c.b16 %v343, %v330
    %v526 = vpack.c.b16 %v344, %v331
    %v527 = vpack.c.b16 %v345, %v332
    %v528 = vpack.c.b16 %v346, %v333
    %v529 = vpack.c.b16 %v347, %v334
    %v530 = vpack.c.b16 %v348, %v335
    %v531 = vpack.c.b16 %v349, %v336
    %v532 = vpack.c.b16 %v350, %v337
    %v533 = vpack.c.b16 %v364, %v351
    %v534 = vpack.c.b16 %v365, %v352
    %v535 = vpack.c.b16 %v366, %v353
    %v536 = vpack.c.b16 %v367, %v354
    %v537 = vpack.c.b16 %v368, %v355
    %v538 = vpack.c.b16 %v369, %v356
    %v539 = vpack.c.b16 %v370, %v357
    %v540 = vpack.c.b16 %v371, %v358
    %v541 = vpack.c.b16 %v372, %v359
    %v542 = vpack.c.b16 %v373, %v360
    %v543 = vpack.c.b16 %v374, %v361
    %v544 = vpack.c.b16 %v375, %v362
    %v545 = vpack.c.b16 %v376, %v363
    %v546 = vpack.c.b16 %v390, %v377
    %v547 = vpack.c.b16 %v391, %v378
    %v548 = vpack.c.b16 %v392, %v379
    %v549 = vpack.c.b16 %v393, %v380
    %v550 = vpack.c.b16 %v394, %v381
    %v551 = vpack.c.b16 %v395, %v382
    %v552 = vpack.c.b16 %v396, %v383
    %v553 = vpack.c.b16 %v397, %v384
    %v554 = vpack.c.b16 %v398, %v385
    %v555 = vpack.c.b16 %v399, %v386
    %v556 = vpack.c.b16 %v400, %v387
    %v557 = vpack.c.b16 %v401, %v388
    %v558 = vpack.c.b16 %v402, %v389
    %v559 = vpack.c.b16 %v416, %v403
    %v560 = vpack.c.b16 %v417, %v404
    %v561 = vpack.c.b16 %v418, %v405
    %v562 = vpack.c.b16 %v419, %v406
    %v563 = vpack.c.b16 %v420, %v407
    %v564 = vpack.c.b16 %v421, %v408
    %v565 = vpack.c.b16 %v422, %v409
    %v566 = vpack.c.b16 %v423, %v410
    %v567 = vpack.c.b16 %v424, %v411
    %v568 = vpack.c.b16 %v425, %v412
    %v569 = vpack.c.b16 %v426, %v413
    %v570 = vpack.c.b16 %v427, %v414
    %v571 = vpack.c.b16 %v428, %v415
    %v572 = vpack.c.b16 %v442, %v429
    %v573 = vpack.c.b16 %v443, %v430
    %v574 = vpack.c.b16 %v444, %v431
    %v575 = vpack.c.b16 %v445, %v432
    %v576 = vpack.c.b16 %v446, %v433
    %v577 = vpack.c.b16 %v447, %v434
    %v578 = vpack.c.b16 %v448, %v435
    %v579 = vpack.c.b16 %v449, %v436
    %v580 = vpack.c.b16 %v450, %v437
    %v581 = vpack.c.b16 %v451, %v438
    %v582 = vpack.c.b16 %v452, %v439
    %v583 = vpack.c.b16 %v453, %v440
    %v584 = vpack.c.b16 %v454, %v441
    %v585 = vpack.c.b16 %v468, %v455
    %v586 = vpack.c.b16 %v469, %v456
    %v587 = vpack.c.b16 %v470, %v457
    %v588 = vpack.c.b16 %v471, %v458
    %v589 = vpack.c.b16 %v472, %v459
    %v590 = vpack.c.b16 %v473, %v460
    %v591 = vpack.c.b16 %v474, %v461
    %v592 = vpack.c.b16 %v475, %v462
    %v593 = vpack.c.b16 %v476, %v463
    %v594 = vpack.c.b16 %v477, %v464
    %v595 = vpack.c.b16 %v478, %v465
    %v596 = vpack.c.b16 %v479, %v466
    %v597 = vpack.c.b16 %v480, %v467
    %v598 = vpack.c.b16 %v494, %v481
    %v599 = vpack.c.b16 %v495, %v482
    %v600 = vpack.c.b16 %v496, %v483
    %v601 = vpack.c.b16 %v497, %v484
    %v602 = vpack.c.b16 %v498, %v485
    %v603 = vpack.c.b16 %v499, %v486
    %v604 = vpack.c.b16 %v500, %v487
    %v605 = vpack.c.b16 %v501, %v488
    %v606 = vpack.c.b16 %v502, %v489
    %v607 = vpack.c.b16 %v503, %v490
    %v608 = vpack.c.b16 %v504, %v491
    %v609 = vpack.c.b16 %v505, %v492
    %v610 = vpack.c.b16 %v506, %v493
    %715 = vmatprep.subr.bf16.mxu0 %v508
    %716 = vmatpush1.bf16.msra.mxu0 %v507
    %717 = vmatprep.subr.bf16.mxu0 %v521
    %718 = vmatpush1.bf16.msra.mxu0 %v520
    %719 = vmatprep.subr.bf16.mxu0 %v534
    %720 = vmatpush1.bf16.msra.mxu0 %v533
    %721 = vmatprep.subr.bf16.mxu0 %v547
    %722 = vmatpush1.bf16.msra.mxu0 %v546
    %723 = vmatprep.subr.bf16.mxu0 %v560
    %724 = vmatpush1.bf16.msra.mxu0 %v559
    %725 = vmatprep.subr.bf16.mxu0 %v573
    %726 = vmatpush1.bf16.msra.mxu0 %v572
    %727 = vmatprep.subr.bf16.mxu0 %v586
    %728 = vmatpush1.bf16.msra.mxu0 %v585
    %729 = vmatprep.subr.bf16.mxu0 %v599
    %730 = vmatpush1.bf16.msra.mxu0 %v598
    %731 = vmatprep.subr.bf16.mxu0 0
    %732 = vmatpush1.bf16.msra.mxu0 0
    %733 = vmatprep.subr.bf16.mxu0 0
    %734 = vmatpush1.bf16.msra.mxu0 0
    %735 = vmatprep.subr.bf16.mxu0 0
    %736 = vmatpush1.bf16.msra.mxu0 0
    %737 = vmatprep.subr.bf16.mxu0 0
    %738 = vmatpush1.bf16.msra.mxu0 0
    %739 = vmatprep.subr.bf16.mxu0 0
    %740 = vmatpush1.bf16.msra.mxu0 0
    %741 = vmatprep.subr.bf16.mxu0 0
    %742 = vmatpush1.bf16.msra.mxu0 0
    %743 = vmatprep.subr.bf16.mxu0 0
    %744 = vmatpush1.bf16.msra.mxu0 0
    %745 = vmatprep.subr.bf16.mxu0 0
    %746 = vmatpush1.bf16.msra.mxu0 0
    %747 = vmatprep.mubr.bf16.mxu0 0
    %748 = vmatmul.mubr.bf16.gmra.mrb[0].mxu0 %v48
    %v749 = vpop.f32.mrb[0].mxu0
    %v750 = vadd.f32 %v161, %v749
    %v751 = vpop.f32.mrb[0].mxu0
    %v752 = vadd.f32 %v162, %v751
    %v753 = vpop.f32.mrb[0].mxu0
    %v754 = vadd.f32 %v174, %v753
    %v755 = vpop.f32.mrb[0].mxu0
    %v756 = vadd.f32 %v175, %v755
    %757 = vdwg.mxu0
    %758 = vmatprep.subr.bf16.mxu0 %v510
    %759 = vmatpush1.bf16.msra.mxu0 %v509
    %760 = vmatprep.subr.bf16.mxu0 %v523
    %761 = vmatpush1.bf16.msra.mxu0 %v522
    %762 = vmatprep.subr.bf16.mxu0 %v536
    %763 = vmatpush1.bf16.msra.mxu0 %v535
    %764 = vmatprep.subr.bf16.mxu0 %v549
    %765 = vmatpush1.bf16.msra.mxu0 %v548
    %766 = vmatprep.subr.bf16.mxu0 %v562
    %767 = vmatpush1.bf16.msra.mxu0 %v561
    %768 = vmatprep.subr.bf16.mxu0 %v575
    %769 = vmatpush1.bf16.msra.mxu0 %v574
    %770 = vmatprep.subr.bf16.mxu0 %v588
    %771 = vmatpush1.bf16.msra.mxu0 %v587
    %772 = vmatprep.subr.bf16.mxu0 %v601
    %773 = vmatpush1.bf16.msra.mxu0 %v600
    %774 = vmatprep.subr.bf16.mxu0 0
    %775 = vmatpush1.bf16.msra.mxu0 0
    %776 = vmatprep.subr.bf16.mxu0 0
    %777 = vmatpush1.bf16.msra.mxu0 0
    %778 = vmatprep.subr.bf16.mxu0 0
    %779 = vmatpush1.bf16.msra.mxu0 0
    %780 = vmatprep.subr.bf16.mxu0 0
    %781 = vmatpush1.bf16.msra.mxu0 0
    %782 = vmatprep.subr.bf16.mxu0 0
    %783 = vmatpush1.bf16.msra.mxu0 0
    %784 = vmatprep.subr.bf16.mxu0 0
    %785 = vmatpush1.bf16.msra.mxu0 0
    %786 = vmatprep.subr.bf16.mxu0 0
    %787 = vmatpush1.bf16.msra.mxu0 0
    %788 = vmatprep.subr.bf16.mxu0 0
    %789 = vmatpush1.bf16.msra.mxu0 0
    %790 = vmatprep.mubr.bf16.mxu0 0
    %791 = vmatmul.mubr.bf16.gmra.mrb[0].mxu0 %v48
    %v792 = vpop.f32.mrb[0].mxu0
    %v793 = vadd.f32 %v163, %v792
    %v794 = vpop.f32.mrb[0].mxu0
    %v795 = vadd.f32 %v164, %v794
    %v796 = vpop.f32.mrb[0].mxu0
    %v797 = vadd.f32 %v176, %v796
    %v798 = vpop.f32.mrb[0].mxu0
    %v799 = vadd.f32 %v177, %v798
    %800 = vdwg.mxu0
    %801 = vmatprep.subr.bf16.mxu0 %v512
    %802 = vmatpush1.bf16.msra.mxu0 %v511
    %803 = vmatprep.subr.bf16.mxu0 %v525
    %804 = vmatpush1.bf16.msra.mxu0 %v524
    %805 = vmatprep.subr.bf16.mxu0 %v538
    %806 = vmatpush1.bf16.msra.mxu0 %v537
    %807 = vmatprep.subr.bf16.mxu0 %v551
    %808 = vmatpush1.bf16.msra.mxu0 %v550
    %809 = vmatprep.subr.bf16.mxu0 %v564
    %810 = vmatpush1.bf16.msra.mxu0 %v563
    %811 = vmatprep.subr.bf16.mxu0 %v577
    %812 = vmatpush1.bf16.msra.mxu0 %v576
    %813 = vmatprep.subr.bf16.mxu0 %v590
    %814 = vmatpush1.bf16.msra.mxu0 %v589
    %815 = vmatprep.subr.bf16.mxu0 %v603
    %816 = vmatpush1.bf16.msra.mxu0 %v602
    %817 = vmatprep.subr.bf16.mxu0 0
    %818 = vmatpush1.bf16.msra.mxu0 0
    %819 = vmatprep.subr.bf16.mxu0 0
    %820 = vmatpush1.bf16.msra.mxu0 0
    %821 = vmatprep.subr.bf16.mxu0 0
    %822 = vmatpush1.bf16.msra.mxu0 0
    %823 = vmatprep.subr.bf16.mxu0 0
    %824 = vmatpush1.bf16.msra.mxu0 0
    %825 = vmatprep.subr.bf16.mxu0 0
    %826 = vmatpush1.bf16.msra.mxu0 0
    %827 = vmatprep.subr.bf16.mxu0 0
    %828 = vmatpush1.bf16.msra.mxu0 0
    %829 = vmatprep.subr.bf16.mxu0 0
    %830 = vmatpush1.bf16.msra.mxu0 0
    %831 = vmatprep.subr.bf16.mxu0 0
    %832 = vmatpush1.bf16.msra.mxu0 0
    %833 = vmatprep.mubr.bf16.mxu0 0
    %834 = vmatmul.mubr.bf16.gmra.mrb[0].mxu0 %v48
    %v835 = vpop.f32.mrb[0].mxu0
    %v836 = vadd.f32 %v165, %v835
    %v837 = vpop.f32.mrb[0].mxu0
    %v838 = vadd.f32 %v166, %v837
    %v839 = vpop.f32.mrb[0].mxu0
    %v840 = vadd.f32 %v178, %v839
    %v841 = vpop.f32.mrb[0].mxu0
    %v842 = vadd.f32 %v179, %v841
    %843 = vdwg.mxu0
    %844 = vmatprep.subr.bf16.mxu0 %v514
    %845 = vmatpush1.bf16.msra.mxu0 %v513
    %846 = vmatprep.subr.bf16.mxu0 %v527
    %847 = vmatpush1.bf16.msra.mxu0 %v526
    %848 = vmatprep.subr.bf16.mxu0 %v540
    %849 = vmatpush1.bf16.msra.mxu0 %v539
    %850 = vmatprep.subr.bf16.mxu0 %v553
    %851 = vmatpush1.bf16.msra.mxu0 %v552
    %852 = vmatprep.subr.bf16.mxu0 %v566
    %853 = vmatpush1.bf16.msra.mxu0 %v565
    %854 = vmatprep.subr.bf16.mxu0 %v579
    %855 = vmatpush1.bf16.msra.mxu0 %v578
    %856 = vmatprep.subr.bf16.mxu0 %v592
    %857 = vmatpush1.bf16.msra.mxu0 %v591
    %858 = vmatprep.subr.bf16.mxu0 %v605
    %859 = vmatpush1.bf16.msra.mxu0 %v604
    %860 = vmatprep.subr.bf16.mxu0 0
    %861 = vmatpush1.bf16.msra.mxu0 0
    %862 = vmatprep.subr.bf16.mxu0 0
    %863 = vmatpush1.bf16.msra.mxu0 0
    %864 = vmatprep.subr.bf16.mxu0 0
    %865 = vmatpush1.bf16.msra.mxu0 0
    %866 = vmatprep.subr.bf16.mxu0 0
    %867 = vmatpush1.bf16.msra.mxu0 0
    %868 = vmatprep.subr.bf16.mxu0 0
    %869 = vmatpush1.bf16.msra.mxu0 0
    %870 = vmatprep.subr.bf16.mxu0 0
    %871 = vmatpush1.bf16.msra.mxu0 0
    %872 = vmatprep.subr.bf16.mxu0 0
    %873 = vmatpush1.bf16.msra.mxu0 0
    %874 = vmatprep.subr.bf16.mxu0 0
    %875 = vmatpush1.bf16.msra.mxu0 0
    %876 = vmatprep.mubr.bf16.mxu0 0
    %877 = vmatmul.mubr.bf16.gmra.mrb[0].mxu0 %v48
    %v878 = vpop.f32.mrb[0].mxu0
    %v879 = vadd.f32 %v167, %v878
    %v880 = vpop.f32.mrb[0].mxu0
    %v881 = vadd.f32 %v168, %v880
    %v882 = vpop.f32.mrb[0].mxu0
    %v883 = vadd.f32 %v180, %v882
    %v884 = vpop.f32.mrb[0].mxu0
    %v885 = vadd.f32 %v181, %v884
    %886 = vdwg.mxu0
    %887 = vmatprep.subr.bf16.mxu0 %v516
    %888 = vmatpush1.bf16.msra.mxu0 %v515
    %889 = vmatprep.subr.bf16.mxu0 %v529
    %890 = vmatpush1.bf16.msra.mxu0 %v528
    %891 = vmatprep.subr.bf16.mxu0 %v542
    %892 = vmatpush1.bf16.msra.mxu0 %v541
    %893 = vmatprep.subr.bf16.mxu0 %v555
    %894 = vmatpush1.bf16.msra.mxu0 %v554
    %895 = vmatprep.subr.bf16.mxu0 %v568
    %896 = vmatpush1.bf16.msra.mxu0 %v567
    %897 = vmatprep.subr.bf16.mxu0 %v581
    %898 = vmatpush1.bf16.msra.mxu0 %v580
    %899 = vmatprep.subr.bf16.mxu0 %v594
    %900 = vmatpush1.bf16.msra.mxu0 %v593
    %901 = vmatprep.subr.bf16.mxu0 %v607
    %902 = vmatpush1.bf16.msra.mxu0 %v606
    %903 = vmatprep.subr.bf16.mxu0 0
    %904 = vmatpush1.bf16.msra.mxu0 0
    %905 = vmatprep.subr.bf16.mxu0 0
    %906 = vmatpush1.bf16.msra.mxu0 0
    %907 = vmatprep.subr.bf16.mxu0 0
    %908 = vmatpush1.bf16.msra.mxu0 0
    %909 = vmatprep.subr.bf16.mxu0 0
    %910 = vmatpush1.bf16.msra.mxu0 0
    %911 = vmatprep.subr.bf16.mxu0 0
    %912 = vmatpush1.bf16.msra.mxu0 0
    %913 = vmatprep.subr.bf16.mxu0 0
    %914 = vmatpush1.bf16.msra.mxu0 0
    %915 = vmatprep.subr.bf16.mxu0 0
    %916 = vmatpush1.bf16.msra.mxu0 0
    %917 = vmatprep.subr.bf16.mxu0 0
    %918 = vmatpush1.bf16.msra.mxu0 0
    %919 = vmatprep.mubr.bf16.mxu0 0
    %920 = vmatmul.mubr.bf16.gmra.mrb[0].mxu0 %v48
    %v921 = vpop.f32.mrb[0].mxu0
    %v922 = vadd.f32 %v169, %v921
    %v923 = vpop.f32.mrb[0].mxu0
    %v924 = vadd.f32 %v170, %v923
    %v925 = vpop.f32.mrb[0].mxu0
    %v926 = vadd.f32 %v182, %v925
    %v927 = vpop.f32.mrb[0].mxu0
    %v928 = vadd.f32 %v183, %v927
    %929 = vdwg.mxu0
    %930 = vmatprep.subr.bf16.mxu0 %v518
    %931 = vmatpush1.bf16.msra.mxu0 %v517
    %932 = vmatprep.subr.bf16.mxu0 %v531
    %933 = vmatpush1.bf16.msra.mxu0 %v530
    %934 = vmatprep.subr.bf16.mxu0 %v544
    %935 = vmatpush1.bf16.msra.mxu0 %v543
    %936 = vmatprep.subr.bf16.mxu0 %v557
    %937 = vmatpush1.bf16.msra.mxu0 %v556
    %938 = vmatprep.subr.bf16.mxu0 %v570
    %939 = vmatpush1.bf16.msra.mxu0 %v569
    %940 = vmatprep.subr.bf16.mxu0 %v583
    %941 = vmatpush1.bf16.msra.mxu0 %v582
    %942 = vmatprep.subr.bf16.mxu0 %v596
    %943 = vmatpush1.bf16.msra.mxu0 %v595
    %944 = vmatprep.subr.bf16.mxu0 %v609
    %945 = vmatpush1.bf16.msra.mxu0 %v608
    %946 = vmatprep.subr.bf16.mxu0 0
    %947 = vmatpush1.bf16.msra.mxu0 0
    %948 = vmatprep.subr.bf16.mxu0 0
    %949 = vmatpush1.bf16.msra.mxu0 0
    %950 = vmatprep.subr.bf16.mxu0 0
    %951 = vmatpush1.bf16.msra.mxu0 0
    %952 = vmatprep.subr.bf16.mxu0 0
    %953 = vmatpush1.bf16.msra.mxu0 0
    %954 = vmatprep.subr.bf16.mxu0 0
    %955 = vmatpush1.bf16.msra.mxu0 0
    %956 = vmatprep.subr.bf16.mxu0 0
    %957 = vmatpush1.bf16.msra.mxu0 0
    %958 = vmatprep.subr.bf16.mxu0 0
    %959 = vmatpush1.bf16.msra.mxu0 0
    %960 = vmatprep.subr.bf16.mxu0 0
    %961 = vmatpush1.bf16.msra.mxu0 0
    %962 = vmatprep.mubr.bf16.mxu0 0
    %963 = vmatmul.mubr.bf16.gmra.mrb[0].mxu0 %v48
    %v964 = vpop.f32.mrb[0].mxu0
    %v965 = vadd.f32 %v171, %v964
    %v966 = vpop.f32.mrb[0].mxu0
    %v967 = vadd.f32 %v172, %v966
    %v968 = vpop.f32.mrb[0].mxu0
    %v969 = vadd.f32 %v184, %v968
    %v970 = vpop.f32.mrb[0].mxu0
    %v971 = vadd.f32 %v185, %v970
    %972 = vdwg.mxu0
    %973 = vmatprep.subr.bf16.mxu0 0
    %974 = vmatpush1.bf16.msra.mxu0 %v519
    %975 = vmatprep.subr.bf16.mxu0 0
    %976 = vmatpush1.bf16.msra.mxu0 %v532
    %977 = vmatprep.subr.bf16.mxu0 0
    %978 = vmatpush1.bf16.msra.mxu0 %v545
    %979 = vmatprep.subr.bf16.mxu0 0
    %980 = vmatpush1.bf16.msra.mxu0 %v558
    %981 = vmatprep.subr.bf16.mxu0 0
    %982 = vmatpush1.bf16.msra.mxu0 %v571
    %983 = vmatprep.subr.bf16.mxu0 0
    %984 = vmatpush1.bf16.msra.mxu0 %v584
    %985 = vmatprep.subr.bf16.mxu0 0
    %986 = vmatpush1.bf16.msra.mxu0 %v597
    %987 = vmatprep.subr.bf16.mxu0 0
    %988 = vmatpush1.bf16.msra.mxu0 %v610
    %989 = vmatprep.subr.bf16.mxu0 0
    %990 = vmatpush1.bf16.msra.mxu0 0
    %991 = vmatprep.subr.bf16.mxu0 0
    %992 = vmatpush1.bf16.msra.mxu0 0
    %993 = vmatprep.subr.bf16.mxu0 0
    %994 = vmatpush1.bf16.msra.mxu0 0
    %995 = vmatprep.subr.bf16.mxu0 0
    %996 = vmatpush1.bf16.msra.mxu0 0
    %997 = vmatprep.subr.bf16.mxu0 0
    %998 = vmatpush1.bf16.msra.mxu0 0
    %999 = vmatprep.subr.bf16.mxu0 0
    %1000 = vmatpush1.bf16.msra.mxu0 0
    %1001 = vmatprep.subr.bf16.mxu0 0
    %1002 = vmatpush1.bf16.msra.mxu0 0
    %1003 = vmatprep.subr.bf16.mxu0 0
    %1004 = vmatpush1.bf16.msra.mxu0 0
    %1005 = vmatprep.mubr.bf16.mxu0 0
    %1006 = vmatmul.mubr.bf16.gmra.mrb[0].mxu0 %v48
    %v1007 = vpop.f32.mrb[0].mxu0
    %v1008 = vadd.f32 %v173, %v1007
    %v1009 = vpop.f32.mrb[0].mxu0
    %v1010 = vpop.f32.mrb[0].mxu0
    %v1011 = vadd.f32 %v186, %v1010
    %v1012 = vpop.f32.mrb[0].mxu0
    %1013 = vdwg.mxu0
    %v1014 = vpack.c.bf16 %v754, %v750
    %v1015 = vpack.c.bf16 %v840, %v836
    %v1016 = vpack.c.bf16 %v926, %v922
    %1017 = vmatprep.subr.bf16.mxu0 0
    %1018 = vmatpush1.bf16.xpose.msra.mxu0 %v1015
    %1019 = vmatprep.subr.bf16.mxu0 0
    %1020 = vmatpush1.bf16.xpose.msra.mxu0 0
    %1021 = vmatprep.subr.bf16.mxu0 0
    %1022 = vmatpush1.bf16.xpose.msra.mxu0 0
    %1023 = vmatprep.subr.bf16.mxu0 0
    %1024 = vmatpush1.bf16.xpose.msra.mxu0 0
    %1025 = vmatprep.subr.bf16.mxu0 0
    %1026 = vmatpush1.bf16.xpose.msra.mxu0 0
    %1027 = vmatprep.subr.bf16.mxu0 0
    %1028 = vmatpush1.bf16.xpose.msra.mxu0 0
    %1029 = vmatprep.subr.bf16.mxu0 0
    %1030 = vmatpush1.bf16.xpose.msra.mxu0 0
    %1031 = vmatprep.subr.bf16.mxu0 0
    %1032 = vmatpush1.bf16.xpose.msra.mxu0 0
    %1033 = vmatprep.subr.bf16.mxu0 0
    %1034 = vmatpush1.bf16.xpose.msra.mxu0 0
    %1035 = vmatprep.subr.bf16.mxu0 0
    %1036 = vmatpush1.bf16.xpose.msra.mxu0 0
    %1037 = vmatprep.subr.bf16.mxu0 0
    %1038 = vmatpush1.bf16.xpose.msra.mxu0 0
    %1039 = vmatprep.subr.bf16.mxu0 0
    %1040 = vmatpush1.bf16.xpose.msra.mxu0 0
    %1041 = vmatprep.subr.bf16.mxu0 0
    %1042 = vmatpush1.bf16.xpose.msra.mxu0 0
    %1043 = vmatprep.subr.bf16.mxu0 0
    %1044 = vmatpush1.bf16.xpose.msra.mxu0 0
    %1045 = vmatprep.subr.bf16.mxu0 0
    %1046 = vmatpush1.bf16.xpose.msra.mxu0 0
    %1047 = vmatprep.subr.bf16.mxu0 0
    %1048 = vmatpush1.bf16.xpose.msra.mxu0 0
    %1049 = vmatprep.mubr.bf16.mxu0 0
    %1050 = vmatmul.mubr.bf16.gmra.mrb[0].mxu0 %v1014
    %v1051 = vpop.f32.mrb[0].mxu0
    %v1052 = vadd.f32 0.0, %v1051
    %v1053 = vpop.f32.mrb[0].mxu0
    %v1054 = vpop.f32.mrb[0].mxu0
    %v1055 = vadd.f32 0.0, %v1054
    %v1056 = vpop.f32.mrb[0].mxu0
    %1057 = vdwg.mxu0
    %v1058 = vmul.f32 %v1052, 0.17677669
    %v1059 = vmul.f32 %v1055, 0.17677669
    %1062 = vrot.lane.b32.xlu0 %v46, 64
    %v1063 = vpop.permute.xlu0 %1062
    %1064 = vrot.lane.b32.xlu0 %v47, 64
    %v1065 = vpop.permute.xlu0 %1064
    %v1068 = vadd.f32 %v1058, %v1063
    %v1069 = vadd.f32 %v1059, %v1065
    %vm1070 = vcmask 130048
    %v1071 = vsel %vm1070, %v1068, -inf
    %1072 = vmax.xlane.f32.xlu0 %v1071
    %v1073 = vpop.xlane.xlu0 %1072
    %v1074 = vsel %vm1070, %v1069, -inf
    %1075 = vmax.xlane.f32.xlu0 %v1074
    %v1076 = vpop.xlane.xlu0 %1075
    %v1077 = vsub.f32 %v1068, %v1073
    %v1078 = vsub.f32 %v1069, %v1076
    %v1079 = vmul.f32 %v1077, 1.442695
    %v1080 = vpow.pop %v1079
    %v1081 = vmul.f32 %v1078, 1.442695
    %v1082 = vpow.pop %v1081
    %v1083 = vsel %vm1070, %v1080, 0.0
    %1084 = vadd.xlane.f32.xlu0 %v1083
    %v1085 = vpop.xlane.xlu0 %1084
    %v1086 = vsel %vm1070, %v1082, 0.0
    %1087 = vadd.xlane.f32.xlu0 %v1086
    %v1088 = vpop.xlane.xlu0 %1087
    %v1089 = vrcp.pop %v1085
    %v1090 = vrcp.pop %v1088
    %v1091 = vmul.f32 %v1080, %v1089
    %v1092 = vmul.f32 %v1082, %v1090
    %v1093 = vpack.c.bf16 %v1092, %v1091
    %v1094 = vpack.c.bf16 %v756, %v752
    %v1095 = vpack.c.bf16 %v842, %v838
    %v1096 = vpack.c.bf16 %v928, %v924
    %1097 = vmatprep.subr.bf16.mxu0 0
    %1098 = vmatpush1.bf16.xpose.msra.mxu0 %v1095
    %1099 = vmatprep.subr.bf16.mxu0 0
    %1100 = vmatpush1.bf16.xpose.msra.mxu0 0
    %1101 = vmatprep.subr.bf16.mxu0 0
    %1102 = vmatpush1.bf16.xpose.msra.mxu0 0
    %1103 = vmatprep.subr.bf16.mxu0 0
    %1104 = vmatpush1.bf16.xpose.msra.mxu0 0
    %1105 = vmatprep.subr.bf16.mxu0 0
    %1106 = vmatpush1.bf16.xpose.msra.mxu0 0
    %1107 = vmatprep.subr.bf16.mxu0 0
    %1108 = vmatpush1.bf16.xpose.msra.mxu0 0
    %1109 = vmatprep.subr.bf16.mxu0 0
    %1110 = vmatpush1.bf16.xpose.msra.mxu0 0
    %1111 = vmatprep.subr.bf16.mxu0 0
    %1112 = vmatpush1.bf16.xpose.msra.mxu0 0
    %1113 = vmatprep.subr.bf16.mxu0 0
    %1114 = vmatpush1.bf16.xpose.msra.mxu0 0
    %1115 = vmatprep.subr.bf16.mxu0 0
    %1116 = vmatpush1.bf16.xpose.msra.mxu0 0
    %1117 = vmatprep.subr.bf16.mxu0 0
    %1118 = vmatpush1.bf16.xpose.msra.mxu0 0
    %1119 = vmatprep.subr.bf16.mxu0 0
    %1120 = vmatpush1.bf16.xpose.msra.mxu0 0
    %1121 = vmatprep.subr.bf16.mxu0 0
    %1122 = vmatpush1.bf16.xpose.msra.mxu0 0
    %1123 = vmatprep.subr.bf16.mxu0 0
    %1124 = vmatpush1.bf16.xpose.msra.mxu0 0
    %1125 = vmatprep.subr.bf16.mxu0 0
    %1126 = vmatpush1.bf16.xpose.msra.mxu0 0
    %1127 = vmatprep.subr.bf16.mxu0 0
    %1128 = vmatpush1.bf16.xpose.msra.mxu0 0
    %1129 = vmatprep.mubr.bf16.mxu0 0
    %1130 = vmatmul.mubr.bf16.gmra.mrb[0].mxu0 %v1094
    %v1131 = vpop.f32.mrb[0].mxu0
    %v1132 = vadd.f32 0.0, %v1131
    %v1133 = vpop.f32.mrb[0].mxu0
    %v1134 = vpop.f32.mrb[0].mxu0
    %v1135 = vadd.f32 0.0, %v1134
    %v1136 = vpop.f32.mrb[0].mxu0
    %1137 = vdwg.mxu0
    %v1138 = vmul.f32 %v1132, 0.17677669
    %v1139 = vmul.f32 %v1135, 0.17677669
    %v1140 = vadd.f32 %v1138, %v1063
    %v1141 = vadd.f32 %v1139, %v1065
    %v1142 = vsel %vm1070, %v1140, -inf
    %1143 = vmax.xlane.f32.xlu0 %v1142
    %v1144 = vpop.xlane.xlu0 %1143
    %v1145 = vsel %vm1070, %v1141, -inf
    %1146 = vmax.xlane.f32.xlu0 %v1145
    %v1147 = vpop.xlane.xlu0 %1146
    %v1148 = vsub.f32 %v1140, %v1144
    %v1149 = vsub.f32 %v1141, %v1147
    %v1150 = vmul.f32 %v1148, 1.442695
    %v1151 = vpow.pop %v1150
    %v1152 = vmul.f32 %v1149, 1.442695
    %v1153 = vpow.pop %v1152
    %v1154 = vsel %vm1070, %v1151, 0.0
    %1155 = vadd.xlane.f32.xlu0 %v1154
    %v1156 = vpop.xlane.xlu0 %1155
    %v1157 = vsel %vm1070, %v1153, 0.0
    %1158 = vadd.xlane.f32.xlu0 %v1157
    %v1159 = vpop.xlane.xlu0 %1158
    %v1160 = vrcp.pop %v1156
    %v1161 = vrcp.pop %v1159
    %v1162 = vmul.f32 %v1151, %v1160
    %v1163 = vmul.f32 %v1153, %v1161
    %v1164 = vpack.c.bf16 %v1163, %v1162
    %v1166 = vsel %vm1070, %v1164, 0
    %1168 = vmatprep.subr.bf16.mxu0 0
    %1169 = vmatpush1.bf16.msra.mxu0 %v1096
    %1170 = vmatprep.subr.bf16.mxu0 0
    %1171 = vmatpush1.bf16.msra.mxu0 0
    %1172 = vmatprep.subr.bf16.mxu0 0
    %1173 = vmatpush1.bf16.msra.mxu0 0
    %1174 = vmatprep.subr.bf16.mxu0 0
    %1175 = vmatpush1.bf16.msra.mxu0 0
    %1176 = vmatprep.subr.bf16.mxu0 0
    %1177 = vmatpush1.bf16.msra.mxu0 0
    %1178 = vmatprep.subr.bf16.mxu0 0
    %1179 = vmatpush1.bf16.msra.mxu0 0
    %1180 = vmatprep.subr.bf16.mxu0 0
    %1181 = vmatpush1.bf16.msra.mxu0 0
    %1182 = vmatprep.subr.bf16.mxu0 0
    %1183 = vmatpush1.bf16.msra.mxu0 0
    %1184 = vmatprep.subr.bf16.mxu0 0
    %1185 = vmatpush1.bf16.msra.mxu0 0
    %1186 = vmatprep.subr.bf16.mxu0 0
    %1187 = vmatpush1.bf16.msra.mxu0 0
    %1188 = vmatprep.subr.bf16.mxu0 0
    %1189 = vmatpush1.bf16.msra.mxu0 0
    %1190 = vmatprep.subr.bf16.mxu0 0
    %1191 = vmatpush1.bf16.msra.mxu0 0
    %1192 = vmatprep.subr.bf16.mxu0 0
    %1193 = vmatpush1.bf16.msra.mxu0 0
    %1194 = vmatprep.subr.bf16.mxu0 0
    %1195 = vmatpush1.bf16.msra.mxu0 0
    %1196 = vmatprep.subr.bf16.mxu0 0
    %1197 = vmatpush1.bf16.msra.mxu0 0
    %1198 = vmatprep.subr.bf16.mxu0 0
    %1199 = vmatpush1.bf16.msra.mxu0 0
    %1200 = vmatprep.mubr.bf16.mxu0 0
    %1201 = vmatmul.mubr.bf16.gmra.mrb[0].mxu0 %v1166
    %v1202 = vpop.f32.mrb[0].mxu0
    %v1203 = vadd.f32 0.0, %v1202
    %v1204 = vpop.f32.mrb[0].mxu0
    %v1205 = vpop.f32.mrb[0].mxu0
    %v1206 = vadd.f32 0.0, %v1205
    %v1207 = vpop.f32.mrb[0].mxu0
    %1208 = vdwg.mxu0
    %v1210 = vsel %vm1070, %v1093, 0
    %1212 = vmatprep.subr.bf16.mxu0 0
    %1213 = vmatpush1.bf16.msra.mxu0 %v1016
    %1214 = vmatprep.subr.bf16.mxu0 0
    %1215 = vmatpush1.bf16.msra.mxu0 0
    %1216 = vmatprep.subr.bf16.mxu0 0
    %1217 = vmatpush1.bf16.msra.mxu0 0
    %1218 = vmatprep.subr.bf16.mxu0 0
    %1219 = vmatpush1.bf16.msra.mxu0 0
    %1220 = vmatprep.subr.bf16.mxu0 0
    %1221 = vmatpush1.bf16.msra.mxu0 0
    %1222 = vmatprep.subr.bf16.mxu0 0
    %1223 = vmatpush1.bf16.msra.mxu0 0
    %1224 = vmatprep.subr.bf16.mxu0 0
    %1225 = vmatpush1.bf16.msra.mxu0 0
    %1226 = vmatprep.subr.bf16.mxu0 0
    %1227 = vmatpush1.bf16.msra.mxu0 0
    %1228 = vmatprep.subr.bf16.mxu0 0
    %1229 = vmatpush1.bf16.msra.mxu0 0
    %1230 = vmatprep.subr.bf16.mxu0 0
    %1231 = vmatpush1.bf16.msra.mxu0 0
    %1232 = vmatprep.subr.bf16.mxu0 0
    %1233 = vmatpush1.bf16.msra.mxu0 0
    %1234 = vmatprep.subr.bf16.mxu0 0
    %1235 = vmatpush1.bf16.msra.mxu0 0
    %1236 = vmatprep.subr.bf16.mxu0 0
    %1237 = vmatpush1.bf16.msra.mxu0 0
    %1238 = vmatprep.subr.bf16.mxu0 0
    %1239 = vmatpush1.bf16.msra.mxu0 0
    %1240 = vmatprep.subr.bf16.mxu0 0
    %1241 = vmatpush1.bf16.msra.mxu0 0
    %1242 = vmatprep.subr.bf16.mxu0 0
    %1243 = vmatpush1.bf16.msra.mxu0 0
    %1244 = vmatprep.mubr.bf16.mxu0 0
    %1245 = vmatmul.mubr.bf16.gmra.mrb[0].mxu0 %v1210
    %v1246 = vpop.f32.mrb[0].mxu0
    %v1247 = vadd.f32 %v1203, %v1246
    %v1248 = vpop.f32.mrb[0].mxu0
    %v1249 = vpop.f32.mrb[0].mxu0
    %v1250 = vadd.f32 %v1206, %v1249
    %v1251 = vpop.f32.mrb[0].mxu0
    %1252 = vdwg.mxu0
    %v1253 = vpack.c.bf16 %v797, %v793
    %v1254 = vpack.c.bf16 %v883, %v879
    %v1255 = vpack.c.bf16 %v969, %v965
    %1256 = vmatprep.subr.bf16.mxu0 0
    %1257 = vmatpush1.bf16.xpose.msra.mxu0 %v1254
    %1258 = vmatprep.subr.bf16.mxu0 0
    %1259 = vmatpush1.bf16.xpose.msra.mxu0 0
    %1260 = vmatprep.subr.bf16.mxu0 0
    %1261 = vmatpush1.bf16.xpose.msra.mxu0 0
    %1262 = vmatprep.subr.bf16.mxu0 0
    %1263 = vmatpush1.bf16.xpose.msra.mxu0 0
    %1264 = vmatprep.subr.bf16.mxu0 0
    %1265 = vmatpush1.bf16.xpose.msra.mxu0 0
    %1266 = vmatprep.subr.bf16.mxu0 0
    %1267 = vmatpush1.bf16.xpose.msra.mxu0 0
    %1268 = vmatprep.subr.bf16.mxu0 0
    %1269 = vmatpush1.bf16.xpose.msra.mxu0 0
    %1270 = vmatprep.subr.bf16.mxu0 0
    %1271 = vmatpush1.bf16.xpose.msra.mxu0 0
    %1272 = vmatprep.subr.bf16.mxu0 0
    %1273 = vmatpush1.bf16.xpose.msra.mxu0 0
    %1274 = vmatprep.subr.bf16.mxu0 0
    %1275 = vmatpush1.bf16.xpose.msra.mxu0 0
    %1276 = vmatprep.subr.bf16.mxu0 0
    %1277 = vmatpush1.bf16.xpose.msra.mxu0 0
    %1278 = vmatprep.subr.bf16.mxu0 0
    %1279 = vmatpush1.bf16.xpose.msra.mxu0 0
    %1280 = vmatprep.subr.bf16.mxu0 0
    %1281 = vmatpush1.bf16.xpose.msra.mxu0 0
    %1282 = vmatprep.subr.bf16.mxu0 0
    %1283 = vmatpush1.bf16.xpose.msra.mxu0 0
    %1284 = vmatprep.subr.bf16.mxu0 0
    %1285 = vmatpush1.bf16.xpose.msra.mxu0 0
    %1286 = vmatprep.subr.bf16.mxu0 0
    %1287 = vmatpush1.bf16.xpose.msra.mxu0 0
    %1288 = vmatprep.mubr.bf16.mxu0 0
    %1289 = vmatmul.mubr.bf16.gmra.mrb[0].mxu0 %v1253
    %v1290 = vpop.f32.mrb[0].mxu0
    %v1291 = vadd.f32 0.0, %v1290
    %v1292 = vpop.f32.mrb[0].mxu0
    %v1293 = vpop.f32.mrb[0].mxu0
    %v1294 = vadd.f32 0.0, %v1293
    %v1295 = vpop.f32.mrb[0].mxu0
    %1296 = vdwg.mxu0
    %v1297 = vmul.f32 %v1291, 0.17677669
    %v1298 = vmul.f32 %v1294, 0.17677669
    %v1299 = vadd.f32 %v1297, %v1063
    %v1300 = vadd.f32 %v1298, %v1065
    %v1301 = vsel %vm1070, %v1299, -inf
    %1302 = vmax.xlane.f32.xlu0 %v1301
    %v1303 = vpop.xlane.xlu0 %1302
    %v1304 = vsel %vm1070, %v1300, -inf
    %1305 = vmax.xlane.f32.xlu0 %v1304
    %v1306 = vpop.xlane.xlu0 %1305
    %v1307 = vsub.f32 %v1299, %v1303
    %v1308 = vsub.f32 %v1300, %v1306
    %v1309 = vmul.f32 %v1307, 1.442695
    %v1310 = vpow.pop %v1309
    %v1311 = vmul.f32 %v1308, 1.442695
    %v1312 = vpow.pop %v1311
    %v1313 = vsel %vm1070, %v1310, 0.0
    %1314 = vadd.xlane.f32.xlu0 %v1313
    %v1315 = vpop.xlane.xlu0 %1314
    %v1316 = vsel %vm1070, %v1312, 0.0
    %1317 = vadd.xlane.f32.xlu0 %v1316
    %v1318 = vpop.xlane.xlu0 %1317
    %v1319 = vrcp.pop %v1315
    %v1320 = vrcp.pop %v1318
    %v1321 = vmul.f32 %v1310, %v1319
    %v1322 = vmul.f32 %v1312, %v1320
    %v1323 = vpack.c.bf16 %v1322, %v1321
    %v1325 = vsel %vm1070, %v1323, 0
    %1327 = vmatprep.subr.bf16.mxu0 0
    %1328 = vmatpush1.bf16.msra.mxu0 %v1255
    %1329 = vmatprep.subr.bf16.mxu0 0
    %1330 = vmatpush1.bf16.msra.mxu0 0
    %1331 = vmatprep.subr.bf16.mxu0 0
    %1332 = vmatpush1.bf16.msra.mxu0 0
    %1333 = vmatprep.subr.bf16.mxu0 0
    %1334 = vmatpush1.bf16.msra.mxu0 0
    %1335 = vmatprep.subr.bf16.mxu0 0
    %1336 = vmatpush1.bf16.msra.mxu0 0
    %1337 = vmatprep.subr.bf16.mxu0 0
    %1338 = vmatpush1.bf16.msra.mxu0 0
    %1339 = vmatprep.subr.bf16.mxu0 0
    %1340 = vmatpush1.bf16.msra.mxu0 0
    %1341 = vmatprep.subr.bf16.mxu0 0
    %1342 = vmatpush1.bf16.msra.mxu0 0
    %1343 = vmatprep.subr.bf16.mxu0 0
    %1344 = vmatpush1.bf16.msra.mxu0 0
    %1345 = vmatprep.subr.bf16.mxu0 0
    %1346 = vmatpush1.bf16.msra.mxu0 0
    %1347 = vmatprep.subr.bf16.mxu0 0
    %1348 = vmatpush1.bf16.msra.mxu0 0
    %1349 = vmatprep.subr.bf16.mxu0 0
    %1350 = vmatpush1.bf16.msra.mxu0 0
    %1351 = vmatprep.subr.bf16.mxu0 0
    %1352 = vmatpush1.bf16.msra.mxu0 0
    %1353 = vmatprep.subr.bf16.mxu0 0
    %1354 = vmatpush1.bf16.msra.mxu0 0
    %1355 = vmatprep.subr.bf16.mxu0 0
    %1356 = vmatpush1.bf16.msra.mxu0 0
    %1357 = vmatprep.subr.bf16.mxu0 0
    %1358 = vmatpush1.bf16.msra.mxu0 0
    %1359 = vmatprep.mubr.bf16.mxu0 0
    %1360 = vmatmul.mubr.bf16.gmra.mrb[0].mxu0 %v1325
    %v1361 = vpop.f32.mrb[0].mxu0
    %v1362 = vadd.f32 0.0, %v1361
    %v1363 = vpop.f32.mrb[0].mxu0
    %v1364 = vpop.f32.mrb[0].mxu0
    %v1365 = vadd.f32 0.0, %v1364
    %v1366 = vpop.f32.mrb[0].mxu0
    %1367 = vdwg.mxu0
    %v1368 = vadd.f32 %v1247, %v1362
    %v1369 = vadd.f32 %v1250, %v1365
    %v1370 = vpack.c.bf16 %v799, %v795
    %v1371 = vpack.c.bf16 %v885, %v881
    %v1372 = vpack.c.bf16 %v971, %v967
    %1373 = vmatprep.subr.bf16.mxu0 0
    %1374 = vmatpush1.bf16.xpose.msra.mxu0 %v1371
    %1375 = vmatprep.subr.bf16.mxu0 0
    %1376 = vmatpush1.bf16.xpose.msra.mxu0 0
    %1377 = vmatprep.subr.bf16.mxu0 0
    %1378 = vmatpush1.bf16.xpose.msra.mxu0 0
    %1379 = vmatprep.subr.bf16.mxu0 0
    %1380 = vmatpush1.bf16.xpose.msra.mxu0 0
    %1381 = vmatprep.subr.bf16.mxu0 0
    %1382 = vmatpush1.bf16.xpose.msra.mxu0 0
    %1383 = vmatprep.subr.bf16.mxu0 0
    %1384 = vmatpush1.bf16.xpose.msra.mxu0 0
    %1385 = vmatprep.subr.bf16.mxu0 0
    %1386 = vmatpush1.bf16.xpose.msra.mxu0 0
    %1387 = vmatprep.subr.bf16.mxu0 0
    %1388 = vmatpush1.bf16.xpose.msra.mxu0 0
    %1389 = vmatprep.subr.bf16.mxu0 0
    %1390 = vmatpush1.bf16.xpose.msra.mxu0 0
    %1391 = vmatprep.subr.bf16.mxu0 0
    %1392 = vmatpush1.bf16.xpose.msra.mxu0 0
    %1393 = vmatprep.subr.bf16.mxu0 0
    %1394 = vmatpush1.bf16.xpose.msra.mxu0 0
    %1395 = vmatprep.subr.bf16.mxu0 0
    %1396 = vmatpush1.bf16.xpose.msra.mxu0 0
    %1397 = vmatprep.subr.bf16.mxu0 0
    %1398 = vmatpush1.bf16.xpose.msra.mxu0 0
    %1399 = vmatprep.subr.bf16.mxu0 0
    %1400 = vmatpush1.bf16.xpose.msra.mxu0 0
    %1401 = vmatprep.subr.bf16.mxu0 0
    %1402 = vmatpush1.bf16.xpose.msra.mxu0 0
    %1403 = vmatprep.subr.bf16.mxu0 0
    %1404 = vmatpush1.bf16.xpose.msra.mxu0 0
    %1405 = vmatprep.mubr.bf16.mxu0 0
    %1406 = vmatmul.mubr.bf16.gmra.mrb[0].mxu0 %v1370
    %v1407 = vpop.f32.mrb[0].mxu0
    %v1408 = vadd.f32 0.0, %v1407
    %v1409 = vpop.f32.mrb[0].mxu0
    %v1410 = vpop.f32.mrb[0].mxu0
    %v1411 = vadd.f32 0.0, %v1410
    %v1412 = vpop.f32.mrb[0].mxu0
    %1413 = vdwg.mxu0
    %v1414 = vmul.f32 %v1408, 0.17677669
    %v1415 = vmul.f32 %v1411, 0.17677669
    %v1416 = vadd.f32 %v1414, %v1063
    %v1417 = vadd.f32 %v1415, %v1065
    %v1418 = vsel %vm1070, %v1416, -inf
    %1419 = vmax.xlane.f32.xlu0 %v1418
    %v1420 = vpop.xlane.xlu0 %1419
    %v1421 = vsel %vm1070, %v1417, -inf
    %1422 = vmax.xlane.f32.xlu0 %v1421
    %v1423 = vpop.xlane.xlu0 %1422
    %v1424 = vsub.f32 %v1416, %v1420
    %v1425 = vsub.f32 %v1417, %v1423
    %v1426 = vmul.f32 %v1424, 1.442695
    %v1427 = vpow.pop %v1426
    %v1428 = vmul.f32 %v1425, 1.442695
    %v1429 = vpow.pop %v1428
    %v1430 = vsel %vm1070, %v1427, 0.0
    %1431 = vadd.xlane.f32.xlu0 %v1430
    %v1432 = vpop.xlane.xlu0 %1431
    %v1433 = vsel %vm1070, %v1429, 0.0
    %1434 = vadd.xlane.f32.xlu0 %v1433
    %v1435 = vpop.xlane.xlu0 %1434
    %v1436 = vrcp.pop %v1432
    %v1437 = vrcp.pop %v1435
    %v1438 = vmul.f32 %v1427, %v1436
    %v1439 = vmul.f32 %v1429, %v1437
    %v1440 = vpack.c.bf16 %v1439, %v1438
    %v1442 = vsel %vm1070, %v1440, 0
    %1444 = vmatprep.subr.bf16.mxu0 0
    %1445 = vmatpush1.bf16.msra.mxu0 %v1372
    %1446 = vmatprep.subr.bf16.mxu0 0
    %1447 = vmatpush1.bf16.msra.mxu0 0
    %1448 = vmatprep.subr.bf16.mxu0 0
    %1449 = vmatpush1.bf16.msra.mxu0 0
    %1450 = vmatprep.subr.bf16.mxu0 0
    %1451 = vmatpush1.bf16.msra.mxu0 0
    %1452 = vmatprep.subr.bf16.mxu0 0
    %1453 = vmatpush1.bf16.msra.mxu0 0
    %1454 = vmatprep.subr.bf16.mxu0 0
    %1455 = vmatpush1.bf16.msra.mxu0 0
    %1456 = vmatprep.subr.bf16.mxu0 0
    %1457 = vmatpush1.bf16.msra.mxu0 0
    %1458 = vmatprep.subr.bf16.mxu0 0
    %1459 = vmatpush1.bf16.msra.mxu0 0
    %1460 = vmatprep.subr.bf16.mxu0 0
    %1461 = vmatpush1.bf16.msra.mxu0 0
    %1462 = vmatprep.subr.bf16.mxu0 0
    %1463 = vmatpush1.bf16.msra.mxu0 0
    %1464 = vmatprep.subr.bf16.mxu0 0
    %1465 = vmatpush1.bf16.msra.mxu0 0
    %1466 = vmatprep.subr.bf16.mxu0 0
    %1467 = vmatpush1.bf16.msra.mxu0 0
    %1468 = vmatprep.subr.bf16.mxu0 0
    %1469 = vmatpush1.bf16.msra.mxu0 0
    %1470 = vmatprep.subr.bf16.mxu0 0
    %1471 = vmatpush1.bf16.msra.mxu0 0
    %1472 = vmatprep.subr.bf16.mxu0 0
    %1473 = vmatpush1.bf16.msra.mxu0 0
    %1474 = vmatprep.subr.bf16.mxu0 0
    %1475 = vmatpush1.bf16.msra.mxu0 0
    %1476 = vmatprep.mubr.bf16.mxu0 0
    %1477 = vmatmul.mubr.bf16.gmra.mrb[0].mxu0 %v1442
    %v1478 = vpop.f32.mrb[0].mxu0
    %v1479 = vadd.f32 0.0, %v1478
    %v1480 = vpop.f32.mrb[0].mxu0
    %v1481 = vpop.f32.mrb[0].mxu0
    %v1482 = vadd.f32 0.0, %v1481
    %v1483 = vpop.f32.mrb[0].mxu0
    %1484 = vdwg.mxu0
    %v1485 = vadd.f32 %v1368, %v1479
    %v1486 = vadd.f32 %v1369, %v1482
    %v1487 = vpack.c.bf16 %v1486, %v1485
    %v1488 = vld [vmem:[#allocation2 + $0x34] sm:$0xff]
    %v1489 = vld [vmem:[#allocation2 + $0x3c] sm:$0xff]
    %v1490 = vld [vmem:[#allocation2 + $0x44] sm:$0xff]
    %v1491 = vld [vmem:[#allocation2 + $0x4c] sm:$0xff]
    %v1492 = vld [vmem:[#allocation2 + $0x54] sm:$0xff]
    %v1493 = vld [vmem:[#allocation2 + $0x5c] sm:$0xff]
    %v1494 = vld [vmem:[#allocation2 + $0xa0] sm:$0xff]
    %v1495 = vld [vmem:[#allocation2 + $0xa8] sm:$0xff]
    %v1496 = vld [vmem:[#allocation2 + $0xb0] sm:$0xff]
    %v1497 = vld [vmem:[#allocation2 + $0xb8] sm:$0xff]
    %v1498 = vld [vmem:[#allocation2 + $0xc0] sm:$0xff]
    %v1499 = vld [vmem:[#allocation2 + $0xc8] sm:$0xff]
    %v1500 = vld [vmem:[#allocation2 + $0x10c] sm:$0xff]
    %v1501 = vld [vmem:[#allocation2 + $0x114] sm:$0xff]
    %v1502 = vld [vmem:[#allocation2 + $0x11c] sm:$0xff]
    %v1503 = vld [vmem:[#allocation2 + $0x124] sm:$0xff]
    %v1504 = vld [vmem:[#allocation2 + $0x12c] sm:$0xff]
    %v1505 = vld [vmem:[#allocation2 + $0x134] sm:$0xff]
    %v1506 = vld [vmem:[#allocation2 + $0x178] sm:$0xff]
    %v1507 = vld [vmem:[#allocation2 + $0x180] sm:$0xff]
    %v1508 = vld [vmem:[#allocation2 + $0x188] sm:$0xff]
    %v1509 = vld [vmem:[#allocation2 + $0x190] sm:$0xff]
    %v1510 = vld [vmem:[#allocation2 + $0x198] sm:$0xff]
    %v1511 = vld [vmem:[#allocation2 + $0x1a0] sm:$0xff]
    %v1512 = vld [vmem:[#allocation2 + $0x1e4] sm:$0xff]
    %v1513 = vld [vmem:[#allocation2 + $0x1ec] sm:$0xff]
    %v1514 = vld [vmem:[#allocation2 + $0x1f4] sm:$0xff]
    %v1515 = vld [vmem:[#allocation2 + $0x1fc] sm:$0xff]
    %v1516 = vld [vmem:[#allocation2 + $0x204] sm:$0xff]
    %v1517 = vld [vmem:[#allocation2 + $0x20c] sm:$0xff]
    %v1518 = vld [vmem:[#allocation2 + $0x250] sm:$0xff]
    %v1519 = vld [vmem:[#allocation2 + $0x258] sm:$0xff]
    %v1520 = vld [vmem:[#allocation2 + $0x260] sm:$0xff]
    %v1521 = vld [vmem:[#allocation2 + $0x268] sm:$0xff]
    %v1522 = vld [vmem:[#allocation2 + $0x270] sm:$0xff]
    %v1523 = vld [vmem:[#allocation2 + $0x278] sm:$0xff]
    %v1524 = vld [vmem:[#allocation2 + $0x2bc] sm:$0xff]
    %v1525 = vld [vmem:[#allocation2 + $0x2c4] sm:$0xff]
    %v1526 = vld [vmem:[#allocation2 + $0x2cc] sm:$0xff]
    %v1527 = vld [vmem:[#allocation2 + $0x2d4] sm:$0xff]
    %v1528 = vld [vmem:[#allocation2 + $0x2dc] sm:$0xff]
    %v1529 = vld [vmem:[#allocation2 + $0x2e4] sm:$0xff]
    %v1530 = vld [vmem:[#allocation2 + $0x328] sm:$0xff]
    %v1531 = vld [vmem:[#allocation2 + $0x330] sm:$0xff]
    %v1532 = vld [vmem:[#allocation2 + $0x338] sm:$0xff]
    %v1533 = vld [vmem:[#allocation2 + $0x340] sm:$0xff]
    %v1534 = vld [vmem:[#allocation2 + $0x348] sm:$0xff]
    %v1535 = vld [vmem:[#allocation2 + $0x350] sm:$0xff]
    %v1536 = vld [vmem:[#allocation2 + $0x394] sm:$0xff]
    %v1537 = vld [vmem:[#allocation2 + $0x39c] sm:$0xff]
    %v1538 = vld [vmem:[#allocation2 + $0x3a4] sm:$0xff]
    %v1539 = vld [vmem:[#allocation2 + $0x3ac] sm:$0xff]
    %v1540 = vld [vmem:[#allocation2 + $0x3b4] sm:$0xff]
    %v1541 = vld [vmem:[#allocation2 + $0x3bc] sm:$0xff]
    %v1542 = vld [vmem:[#allocation2 + $0x400] sm:$0xff]
    %v1543 = vld [vmem:[#allocation2 + $0x408] sm:$0xff]
    %v1544 = vld [vmem:[#allocation2 + $0x410] sm:$0xff]
    %v1545 = vld [vmem:[#allocation2 + $0x418] sm:$0xff]
    %v1546 = vld [vmem:[#allocation2 + $0x420] sm:$0xff]
    %v1547 = vld [vmem:[#allocation2 + $0x428] sm:$0xff]
    %v1548 = vld [vmem:[#allocation2 + $0x46c] sm:$0xff]
    %v1549 = vld [vmem:[#allocation2 + $0x474] sm:$0xff]
    %v1550 = vld [vmem:[#allocation2 + $0x47c] sm:$0xff]
    %v1551 = vld [vmem:[#allocation2 + $0x484] sm:$0xff]
    %v1552 = vld [vmem:[#allocation2 + $0x48c] sm:$0xff]
    %v1553 = vld [vmem:[#allocation2 + $0x494] sm:$0xff]
    %v1554 = vld [vmem:[#allocation2 + $0x4d8] sm:$0xff]
    %v1555 = vld [vmem:[#allocation2 + $0x4e0] sm:$0xff]
    %v1556 = vld [vmem:[#allocation2 + $0x4e8] sm:$0xff]
    %v1557 = vld [vmem:[#allocation2 + $0x4f0] sm:$0xff]
    %v1558 = vld [vmem:[#allocation2 + $0x4f8] sm:$0xff]
    %v1559 = vld [vmem:[#allocation2 + $0x500] sm:$0xff]
    %v1560 = vld [vmem:[#allocation2 + $0x544] sm:$0xff]
    %v1561 = vld [vmem:[#allocation2 + $0x54c] sm:$0xff]
    %v1562 = vld [vmem:[#allocation2 + $0x554] sm:$0xff]
    %v1563 = vld [vmem:[#allocation2 + $0x55c] sm:$0xff]
    %v1564 = vld [vmem:[#allocation2 + $0x564] sm:$0xff]
    %v1565 = vld [vmem:[#allocation2 + $0x56c] sm:$0xff]
    %v1566 = vld [vmem:[#allocation2 + $0x5b0] sm:$0xff]
    %v1567 = vld [vmem:[#allocation2 + $0x5b8] sm:$0xff]
    %v1568 = vld [vmem:[#allocation2 + $0x5c0] sm:$0xff]
    %v1569 = vld [vmem:[#allocation2 + $0x5c8] sm:$0xff]
    %v1570 = vld [vmem:[#allocation2 + $0x5d0] sm:$0xff]
    %v1571 = vld [vmem:[#allocation2 + $0x5d8] sm:$0xff]
    %v1572 = vld [vmem:[#allocation2 + $0x61c] sm:$0xff]
    %v1573 = vld [vmem:[#allocation2 + $0x624] sm:$0xff]
    %v1574 = vld [vmem:[#allocation2 + $0x62c] sm:$0xff]
    %v1575 = vld [vmem:[#allocation2 + $0x634] sm:$0xff]
    %v1576 = vld [vmem:[#allocation2 + $0x63c] sm:$0xff]
    %v1577 = vld [vmem:[#allocation2 + $0x644] sm:$0xff]
    %v1578 = vld [vmem:[#allocation2 + $0x688] sm:$0xff]
    %v1579 = vld [vmem:[#allocation2 + $0x690] sm:$0xff]
    %v1580 = vld [vmem:[#allocation2 + $0x698] sm:$0xff]
    %v1581 = vld [vmem:[#allocation2 + $0x6a0] sm:$0xff]
    %v1582 = vld [vmem:[#allocation2 + $0x6a8] sm:$0xff]
    %v1583 = vld [vmem:[#allocation2 + $0x6b0] sm:$0xff]
    %v1584 = vld [vmem:[#allocation5 + $0x68] sm:$0xff]
    %v1585 = vld [vmem:[#allocation5 + $0x70] sm:$0xff]
    %v1586 = vld [vmem:[#allocation5 + $0x78] sm:$0xff]
    %v1587 = vld [vmem:[#allocation5 + $0x80] sm:$0xff]
    %v1588 = vld [vmem:[#allocation5 + $0x88] sm:$0xff]
    %v1589 = vld [vmem:[#allocation5 + $0x90] sm:$0xff]
    %v1590 = vld [vmem:[#allocation5 + $0x98] sm:$0xff]
    %v1591 = vld [vmem:[#allocation5 + $0xa0] sm:$0xff]
    %v1592 = vld [vmem:[#allocation5 + $0xa8] sm:$0xff]
    %v1593 = vld [vmem:[#allocation5 + $0xb0] sm:$0xff]
    %v1594 = vld [vmem:[#allocation5 + $0xb8] sm:$0xff]
    %v1595 = vld [vmem:[#allocation5 + $0xc0] sm:$0xff]
    %v1596 = vld [vmem:[#allocation5 + $0x140] sm:$0xff]
    %v1597 = vld [vmem:[#allocation5 + $0x148] sm:$0xff]
    %v1598 = vld [vmem:[#allocation5 + $0x150] sm:$0xff]
    %v1599 = vld [vmem:[#allocation5 + $0x158] sm:$0xff]
    %v1600 = vld [vmem:[#allocation5 + $0x160] sm:$0xff]
    %v1601 = vld [vmem:[#allocation5 + $0x168] sm:$0xff]
    %v1602 = vld [vmem:[#allocation5 + $0x170] sm:$0xff]
    %v1603 = vld [vmem:[#allocation5 + $0x178] sm:$0xff]
    %v1604 = vld [vmem:[#allocation5 + $0x180] sm:$0xff]
    %v1605 = vld [vmem:[#allocation5 + $0x188] sm:$0xff]
    %v1606 = vld [vmem:[#allocation5 + $0x190] sm:$0xff]
    %v1607 = vld [vmem:[#allocation5 + $0x198] sm:$0xff]
    %v1704 = vunpack.c.l.b16 %v1488
    %v1705 = vunpack.c.h.b16 %v1488
    %v1706 = vunpack.c.l.b16 %v1489
    %v1707 = vunpack.c.h.b16 %v1489
    %v1708 = vunpack.c.l.b16 %v1490
    %v1709 = vunpack.c.h.b16 %v1490
    %v1710 = vunpack.c.l.b16 %v1491
    %v1711 = vunpack.c.h.b16 %v1491
    %v1712 = vunpack.c.l.b16 %v1492
    %v1713 = vunpack.c.h.b16 %v1492
    %v1714 = vunpack.c.l.b16 %v1493
    %v1715 = vunpack.c.h.b16 %v1493
    %v1716 = vunpack.c.l.b16 %v1494
    %v1717 = vunpack.c.h.b16 %v1494
    %v1718 = vunpack.c.l.b16 %v1495
    %v1719 = vunpack.c.h.b16 %v1495
    %v1720 = vunpack.c.l.b16 %v1496
    %v1721 = vunpack.c.h.b16 %v1496
    %v1722 = vunpack.c.l.b16 %v1497
    %v1723 = vunpack.c.h.b16 %v1497
    %v1724 = vunpack.c.l.b16 %v1498
    %v1725 = vunpack.c.h.b16 %v1498
    %v1726 = vunpack.c.l.b16 %v1499
    %v1727 = vunpack.c.h.b16 %v1499
    %v1728 = vunpack.c.l.b16 %v1500
    %v1729 = vunpack.c.h.b16 %v1500
    %v1730 = vunpack.c.l.b16 %v1501
    %v1731 = vunpack.c.h.b16 %v1501
    %v1732 = vunpack.c.l.b16 %v1502
    %v1733 = vunpack.c.h.b16 %v1502
    %v1734 = vunpack.c.l.b16 %v1503
    %v1735 = vunpack.c.h.b16 %v1503
    %v1736 = vunpack.c.l.b16 %v1504
    %v1737 = vunpack.c.h.b16 %v1504
    %v1738 = vunpack.c.l.b16 %v1505
    %v1739 = vunpack.c.h.b16 %v1505
    %v1740 = vunpack.c.l.b16 %v1506
    %v1741 = vunpack.c.h.b16 %v1506
    %v1742 = vunpack.c.l.b16 %v1507
    %v1743 = vunpack.c.h.b16 %v1507
    %v1744 = vunpack.c.l.b16 %v1508
    %v1745 = vunpack.c.h.b16 %v1508
    %v1746 = vunpack.c.l.b16 %v1509
    %v1747 = vunpack.c.h.b16 %v1509
    %v1748 = vunpack.c.l.b16 %v1510
    %v1749 = vunpack.c.h.b16 %v1510
    %v1750 = vunpack.c.l.b16 %v1511
    %v1751 = vunpack.c.h.b16 %v1511
    %v1752 = vunpack.c.l.b16 %v1512
    %v1753 = vunpack.c.h.b16 %v1512
    %v1754 = vunpack.c.l.b16 %v1513
    %v1755 = vunpack.c.h.b16 %v1513
    %v1756 = vunpack.c.l.b16 %v1514
    %v1757 = vunpack.c.h.b16 %v1514
    %v1758 = vunpack.c.l.b16 %v1515
    %v1759 = vunpack.c.h.b16 %v1515
    %v1760 = vunpack.c.l.b16 %v1516
    %v1761 = vunpack.c.h.b16 %v1516
    %v1762 = vunpack.c.l.b16 %v1517
    %v1763 = vunpack.c.h.b16 %v1517
    %v1764 = vunpack.c.l.b16 %v1518
    %v1765 = vunpack.c.h.b16 %v1518
    %v1766 = vunpack.c.l.b16 %v1519
    %v1767 = vunpack.c.h.b16 %v1519
    %v1768 = vunpack.c.l.b16 %v1520
    %v1769 = vunpack.c.h.b16 %v1520
    %v1770 = vunpack.c.l.b16 %v1521
    %v1771 = vunpack.c.h.b16 %v1521
    %v1772 = vunpack.c.l.b16 %v1522
    %v1773 = vunpack.c.h.b16 %v1522
    %v1774 = vunpack.c.l.b16 %v1523
    %v1775 = vunpack.c.h.b16 %v1523
    %v1776 = vunpack.c.l.b16 %v1524
    %v1777 = vunpack.c.h.b16 %v1524
    %v1778 = vunpack.c.l.b16 %v1525
    %v1779 = vunpack.c.h.b16 %v1525
    %v1780 = vunpack.c.l.b16 %v1526
    %v1781 = vunpack.c.h.b16 %v1526
    %v1782 = vunpack.c.l.b16 %v1527
    %v1783 = vunpack.c.h.b16 %v1527
    %v1784 = vunpack.c.l.b16 %v1528
    %v1785 = vunpack.c.h.b16 %v1528
    %v1786 = vunpack.c.l.b16 %v1529
    %v1787 = vunpack.c.h.b16 %v1529
    %v1788 = vunpack.c.l.b16 %v1530
    %v1789 = vunpack.c.h.b16 %v1530
    %v1790 = vunpack.c.l.b16 %v1531
    %v1791 = vunpack.c.h.b16 %v1531
    %v1792 = vunpack.c.l.b16 %v1532
    %v1793 = vunpack.c.h.b16 %v1532
    %v1794 = vunpack.c.l.b16 %v1533
    %v1795 = vunpack.c.h.b16 %v1533
    %v1796 = vunpack.c.l.b16 %v1534
    %v1797 = vunpack.c.h.b16 %v1534
    %v1798 = vunpack.c.l.b16 %v1535
    %v1799 = vunpack.c.h.b16 %v1535
    %v1800 = vunpack.c.l.b16 %v1536
    %v1801 = vunpack.c.h.b16 %v1536
    %v1802 = vunpack.c.l.b16 %v1537
    %v1803 = vunpack.c.h.b16 %v1537
    %v1804 = vunpack.c.l.b16 %v1538
    %v1805 = vunpack.c.h.b16 %v1538
    %v1806 = vunpack.c.l.b16 %v1539
    %v1807 = vunpack.c.h.b16 %v1539
    %v1808 = vunpack.c.l.b16 %v1540
    %v1809 = vunpack.c.h.b16 %v1540
    %v1810 = vunpack.c.l.b16 %v1541
    %v1811 = vunpack.c.h.b16 %v1541
    %v1812 = vunpack.c.l.b16 %v1542
    %v1813 = vunpack.c.h.b16 %v1542
    %v1814 = vunpack.c.l.b16 %v1543
    %v1815 = vunpack.c.h.b16 %v1543
    %v1816 = vunpack.c.l.b16 %v1544
    %v1817 = vunpack.c.h.b16 %v1544
    %v1818 = vunpack.c.l.b16 %v1545
    %v1819 = vunpack.c.h.b16 %v1545
    %v1820 = vunpack.c.l.b16 %v1546
    %v1821 = vunpack.c.h.b16 %v1546
    %v1822 = vunpack.c.l.b16 %v1547
    %v1823 = vunpack.c.h.b16 %v1547
    %v1824 = vunpack.c.l.b16 %v1548
    %v1825 = vunpack.c.h.b16 %v1548
    %v1826 = vunpack.c.l.b16 %v1549
    %v1827 = vunpack.c.h.b16 %v1549
    %v1828 = vunpack.c.l.b16 %v1550
    %v1829 = vunpack.c.h.b16 %v1550
    %v1830 = vunpack.c.l.b16 %v1551
    %v1831 = vunpack.c.h.b16 %v1551
    %v1832 = vunpack.c.l.b16 %v1552
    %v1833 = vunpack.c.h.b16 %v1552
    %v1834 = vunpack.c.l.b16 %v1553
    %v1835 = vunpack.c.h.b16 %v1553
    %v1836 = vunpack.c.l.b16 %v1554
    %v1837 = vunpack.c.h.b16 %v1554
    %v1838 = vunpack.c.l.b16 %v1555
    %v1839 = vunpack.c.h.b16 %v1555
    %v1840 = vunpack.c.l.b16 %v1556
    %v1841 = vunpack.c.h.b16 %v1556
    %v1842 = vunpack.c.l.b16 %v1557
    %v1843 = vunpack.c.h.b16 %v1557
    %v1844 = vunpack.c.l.b16 %v1558
    %v1845 = vunpack.c.h.b16 %v1558
    %v1846 = vunpack.c.l.b16 %v1559
    %v1847 = vunpack.c.h.b16 %v1559
    %v1848 = vunpack.c.l.b16 %v1560
    %v1849 = vunpack.c.h.b16 %v1560
    %v1850 = vunpack.c.l.b16 %v1561
    %v1851 = vunpack.c.h.b16 %v1561
    %v1852 = vunpack.c.l.b16 %v1562
    %v1853 = vunpack.c.h.b16 %v1562
    %v1854 = vunpack.c.l.b16 %v1563
    %v1855 = vunpack.c.h.b16 %v1563
    %v1856 = vunpack.c.l.b16 %v1564
    %v1857 = vunpack.c.h.b16 %v1564
    %v1858 = vunpack.c.l.b16 %v1565
    %v1859 = vunpack.c.h.b16 %v1565
    %v1860 = vunpack.c.l.b16 %v1566
    %v1861 = vunpack.c.h.b16 %v1566
    %v1862 = vunpack.c.l.b16 %v1567
    %v1863 = vunpack.c.h.b16 %v1567
    %v1864 = vunpack.c.l.b16 %v1568
    %v1865 = vunpack.c.h.b16 %v1568
    %v1866 = vunpack.c.l.b16 %v1569
    %v1867 = vunpack.c.h.b16 %v1569
    %v1868 = vunpack.c.l.b16 %v1570
    %v1869 = vunpack.c.h.b16 %v1570
    %v1870 = vunpack.c.l.b16 %v1571
    %v1871 = vunpack.c.h.b16 %v1571
    %v1872 = vunpack.c.l.b16 %v1572
    %v1873 = vunpack.c.h.b16 %v1572
    %v1874 = vunpack.c.l.b16 %v1573
    %v1875 = vunpack.c.h.b16 %v1573
    %v1876 = vunpack.c.l.b16 %v1574
    %v1877 = vunpack.c.h.b16 %v1574
    %v1878 = vunpack.c.l.b16 %v1575
    %v1879 = vunpack.c.h.b16 %v1575
    %v1880 = vunpack.c.l.b16 %v1576
    %v1881 = vunpack.c.h.b16 %v1576
    %v1882 = vunpack.c.l.b16 %v1577
    %v1883 = vunpack.c.h.b16 %v1577
    %v1884 = vunpack.c.l.b16 %v1578
    %v1885 = vunpack.c.h.b16 %v1578
    %v1886 = vunpack.c.l.b16 %v1579
    %v1887 = vunpack.c.h.b16 %v1579
    %v1888 = vunpack.c.l.b16 %v1580
    %v1889 = vunpack.c.h.b16 %v1580
    %v1890 = vunpack.c.l.b16 %v1581
    %v1891 = vunpack.c.h.b16 %v1581
    %v1892 = vunpack.c.l.b16 %v1582
    %v1893 = vunpack.c.h.b16 %v1582
    %v1894 = vunpack.c.l.b16 %v1583
    %v1895 = vunpack.c.h.b16 %v1583
    %v1896 = vpack.c.b16 %v1716, %v1704
    %v1897 = vpack.c.b16 %v1717, %v1705
    %v1898 = vpack.c.b16 %v1718, %v1706
    %v1899 = vpack.c.b16 %v1719, %v1707
    %v1900 = vpack.c.b16 %v1720, %v1708
    %v1901 = vpack.c.b16 %v1721, %v1709
    %v1902 = vpack.c.b16 %v1722, %v1710
    %v1903 = vpack.c.b16 %v1723, %v1711
    %v1904 = vpack.c.b16 %v1724, %v1712
    %v1905 = vpack.c.b16 %v1725, %v1713
    %v1906 = vpack.c.b16 %v1726, %v1714
    %v1907 = vpack.c.b16 %v1727, %v1715
    %v1908 = vpack.c.b16 %v1740, %v1728
    %v1909 = vpack.c.b16 %v1741, %v1729
    %v1910 = vpack.c.b16 %v1742, %v1730
    %v1911 = vpack.c.b16 %v1743, %v1731
    %v1912 = vpack.c.b16 %v1744, %v1732
    %v1913 = vpack.c.b16 %v1745, %v1733
    %v1914 = vpack.c.b16 %v1746, %v1734
    %v1915 = vpack.c.b16 %v1747, %v1735
    %v1916 = vpack.c.b16 %v1748, %v1736
    %v1917 = vpack.c.b16 %v1749, %v1737
    %v1918 = vpack.c.b16 %v1750, %v1738
    %v1919 = vpack.c.b16 %v1751, %v1739
    %v1920 = vpack.c.b16 %v1764, %v1752
    %v1921 = vpack.c.b16 %v1765, %v1753
    %v1922 = vpack.c.b16 %v1766, %v1754
    %v1923 = vpack.c.b16 %v1767, %v1755
    %v1924 = vpack.c.b16 %v1768, %v1756
    %v1925 = vpack.c.b16 %v1769, %v1757
    %v1926 = vpack.c.b16 %v1770, %v1758
    %v1927 = vpack.c.b16 %v1771, %v1759
    %v1928 = vpack.c.b16 %v1772, %v1760
    %v1929 = vpack.c.b16 %v1773, %v1761
    %v1930 = vpack.c.b16 %v1774, %v1762
    %v1931 = vpack.c.b16 %v1775, %v1763
    %v1932 = vpack.c.b16 %v1788, %v1776
    %v1933 = vpack.c.b16 %v1789, %v1777
    %v1934 = vpack.c.b16 %v1790, %v1778
    %v1935 = vpack.c.b16 %v1791, %v1779
    %v1936 = vpack.c.b16 %v1792, %v1780
    %v1937 = vpack.c.b16 %v1793, %v1781
    %v1938 = vpack.c.b16 %v1794, %v1782
    %v1939 = vpack.c.b16 %v1795, %v1783
    %v1940 = vpack.c.b16 %v1796, %v1784
    %v1941 = vpack.c.b16 %v1797, %v1785
    %v1942 = vpack.c.b16 %v1798, %v1786
    %v1943 = vpack.c.b16 %v1799, %v1787
    %v1944 = vpack.c.b16 %v1812, %v1800
    %v1945 = vpack.c.b16 %v1813, %v1801
    %v1946 = vpack.c.b16 %v1814, %v1802
    %v1947 = vpack.c.b16 %v1815, %v1803
    %v1948 = vpack.c.b16 %v1816, %v1804
    %v1949 = vpack.c.b16 %v1817, %v1805
    %v1950 = vpack.c.b16 %v1818, %v1806
    %v1951 = vpack.c.b16 %v1819, %v1807
    %v1952 = vpack.c.b16 %v1820, %v1808
    %v1953 = vpack.c.b16 %v1821, %v1809
    %v1954 = vpack.c.b16 %v1822, %v1810
    %v1955 = vpack.c.b16 %v1823, %v1811
    %v1956 = vpack.c.b16 %v1836, %v1824
    %v1957 = vpack.c.b16 %v1837, %v1825
    %v1958 = vpack.c.b16 %v1838, %v1826
    %v1959 = vpack.c.b16 %v1839, %v1827
    %v1960 = vpack.c.b16 %v1840, %v1828
    %v1961 = vpack.c.b16 %v1841, %v1829
    %v1962 = vpack.c.b16 %v1842, %v1830
    %v1963 = vpack.c.b16 %v1843, %v1831
    %v1964 = vpack.c.b16 %v1844, %v1832
    %v1965 = vpack.c.b16 %v1845, %v1833
    %v1966 = vpack.c.b16 %v1846, %v1834
    %v1967 = vpack.c.b16 %v1847, %v1835
    %v1968 = vpack.c.b16 %v1860, %v1848
    %v1969 = vpack.c.b16 %v1861, %v1849
    %v1970 = vpack.c.b16 %v1862, %v1850
    %v1971 = vpack.c.b16 %v1863, %v1851
    %v1972 = vpack.c.b16 %v1864, %v1852
    %v1973 = vpack.c.b16 %v1865, %v1853
    %v1974 = vpack.c.b16 %v1866, %v1854
    %v1975 = vpack.c.b16 %v1867, %v1855
    %v1976 = vpack.c.b16 %v1868, %v1856
    %v1977 = vpack.c.b16 %v1869, %v1857
    %v1978 = vpack.c.b16 %v1870, %v1858
    %v1979 = vpack.c.b16 %v1871, %v1859
    %v1980 = vpack.c.b16 %v1884, %v1872
    %v1981 = vpack.c.b16 %v1885, %v1873
    %v1982 = vpack.c.b16 %v1886, %v1874
    %v1983 = vpack.c.b16 %v1887, %v1875
    %v1984 = vpack.c.b16 %v1888, %v1876
    %v1985 = vpack.c.b16 %v1889, %v1877
    %v1986 = vpack.c.b16 %v1890, %v1878
    %v1987 = vpack.c.b16 %v1891, %v1879
    %v1988 = vpack.c.b16 %v1892, %v1880
    %v1989 = vpack.c.b16 %v1893, %v1881
    %v1990 = vpack.c.b16 %v1894, %v1882
    %v1991 = vpack.c.b16 %v1895, %v1883
    %2088 = vmatprep.subr.bf16.mxu0 %v1897
    %2089 = vmatpush1.bf16.msra.mxu0 %v1896
    %2090 = vmatprep.subr.bf16.mxu0 %v1909
    %2091 = vmatpush1.bf16.msra.mxu0 %v1908
    %2092 = vmatprep.subr.bf16.mxu0 %v1921
    %2093 = vmatpush1.bf16.msra.mxu0 %v1920
    %2094 = vmatprep.subr.bf16.mxu0 %v1933
    %2095 = vmatpush1.bf16.msra.mxu0 %v1932
    %2096 = vmatprep.subr.bf16.mxu0 %v1945
    %2097 = vmatpush1.bf16.msra.mxu0 %v1944
    %2098 = vmatprep.subr.bf16.mxu0 %v1957
    %2099 = vmatpush1.bf16.msra.mxu0 %v1956
    %2100 = vmatprep.subr.bf16.mxu0 %v1969
    %2101 = vmatpush1.bf16.msra.mxu0 %v1968
    %2102 = vmatprep.subr.bf16.mxu0 %v1981
    %2103 = vmatpush1.bf16.msra.mxu0 %v1980
    %2104 = vmatprep.subr.bf16.mxu0 0
    %2105 = vmatpush1.bf16.msra.mxu0 0
    %2106 = vmatprep.subr.bf16.mxu0 0
    %2107 = vmatpush1.bf16.msra.mxu0 0
    %2108 = vmatprep.subr.bf16.mxu0 0
    %2109 = vmatpush1.bf16.msra.mxu0 0
    %2110 = vmatprep.subr.bf16.mxu0 0
    %2111 = vmatpush1.bf16.msra.mxu0 0
    %2112 = vmatprep.subr.bf16.mxu0 0
    %2113 = vmatpush1.bf16.msra.mxu0 0
    %2114 = vmatprep.subr.bf16.mxu0 0
    %2115 = vmatpush1.bf16.msra.mxu0 0
    %2116 = vmatprep.subr.bf16.mxu0 0
    %2117 = vmatpush1.bf16.msra.mxu0 0
    %2118 = vmatprep.subr.bf16.mxu0 0
    %2119 = vmatpush1.bf16.msra.mxu0 0
    %2120 = vmatprep.mubr.bf16.mxu0 0
    %2121 = vmatmul.mubr.bf16.gmra.mrb[0].mxu0 %v1487
    %v2122 = vpop.f32.mrb[0].mxu0
    %v2123 = vadd.f32 %v1584, %v2122
    %v2124 = vpop.f32.mrb[0].mxu0
    %v2125 = vadd.f32 %v1585, %v2124
    %v2126 = vpop.f32.mrb[0].mxu0
    %v2127 = vadd.f32 %v1596, %v2126
    %v2128 = vpop.f32.mrb[0].mxu0
    %v2129 = vadd.f32 %v1597, %v2128
    %2130 = vdwg.mxu0
    %2131 = vmatprep.subr.bf16.mxu0 %v1899
    %2132 = vmatpush1.bf16.msra.mxu0 %v1898
    %2133 = vmatprep.subr.bf16.mxu0 %v1911
    %2134 = vmatpush1.bf16.msra.mxu0 %v1910
    %2135 = vmatprep.subr.bf16.mxu0 %v1923
    %2136 = vmatpush1.bf16.msra.mxu0 %v1922
    %2137 = vmatprep.subr.bf16.mxu0 %v1935
    %2138 = vmatpush1.bf16.msra.mxu0 %v1934
    %2139 = vmatprep.subr.bf16.mxu0 %v1947
    %2140 = vmatpush1.bf16.msra.mxu0 %v1946
    %2141 = vmatprep.subr.bf16.mxu0 %v1959
    %2142 = vmatpush1.bf16.msra.mxu0 %v1958
    %2143 = vmatprep.subr.bf16.mxu0 %v1971
    %2144 = vmatpush1.bf16.msra.mxu0 %v1970
    %2145 = vmatprep.subr.bf16.mxu0 %v1983
    %2146 = vmatpush1.bf16.msra.mxu0 %v1982
    %2147 = vmatprep.subr.bf16.mxu0 0
    %2148 = vmatpush1.bf16.msra.mxu0 0
    %2149 = vmatprep.subr.bf16.mxu0 0
    %2150 = vmatpush1.bf16.msra.mxu0 0
    %2151 = vmatprep.subr.bf16.mxu0 0
    %2152 = vmatpush1.bf16.msra.mxu0 0
    %2153 = vmatprep.subr.bf16.mxu0 0
    %2154 = vmatpush1.bf16.msra.mxu0 0
    %2155 = vmatprep.subr.bf16.mxu0 0
    %2156 = vmatpush1.bf16.msra.mxu0 0
    %2157 = vmatprep.subr.bf16.mxu0 0
    %2158 = vmatpush1.bf16.msra.mxu0 0
    %2159 = vmatprep.subr.bf16.mxu0 0
    %2160 = vmatpush1.bf16.msra.mxu0 0
    %2161 = vmatprep.subr.bf16.mxu0 0
    %2162 = vmatpush1.bf16.msra.mxu0 0
    %2163 = vmatprep.mubr.bf16.mxu0 0
    %2164 = vmatmul.mubr.bf16.gmra.mrb[0].mxu0 %v1487
    %v2165 = vpop.f32.mrb[0].mxu0
    %v2166 = vadd.f32 %v1586, %v2165
    %v2167 = vpop.f32.mrb[0].mxu0
    %v2168 = vadd.f32 %v1587, %v2167
    %v2169 = vpop.f32.mrb[0].mxu0
    %v2170 = vadd.f32 %v1598, %v2169
    %v2171 = vpop.f32.mrb[0].mxu0
    %v2172 = vadd.f32 %v1599, %v2171
    %2173 = vdwg.mxu0
    %2174 = vmatprep.subr.bf16.mxu0 %v1901
    %2175 = vmatpush1.bf16.msra.mxu0 %v1900
    %2176 = vmatprep.subr.bf16.mxu0 %v1913
    %2177 = vmatpush1.bf16.msra.mxu0 %v1912
    %2178 = vmatprep.subr.bf16.mxu0 %v1925
    %2179 = vmatpush1.bf16.msra.mxu0 %v1924
    %2180 = vmatprep.subr.bf16.mxu0 %v1937
    %2181 = vmatpush1.bf16.msra.mxu0 %v1936
    %2182 = vmatprep.subr.bf16.mxu0 %v1949
    %2183 = vmatpush1.bf16.msra.mxu0 %v1948
    %2184 = vmatprep.subr.bf16.mxu0 %v1961
    %2185 = vmatpush1.bf16.msra.mxu0 %v1960
    %2186 = vmatprep.subr.bf16.mxu0 %v1973
    %2187 = vmatpush1.bf16.msra.mxu0 %v1972
    %2188 = vmatprep.subr.bf16.mxu0 %v1985
    %2189 = vmatpush1.bf16.msra.mxu0 %v1984
    %2190 = vmatprep.subr.bf16.mxu0 0
    %2191 = vmatpush1.bf16.msra.mxu0 0
    %2192 = vmatprep.subr.bf16.mxu0 0
    %2193 = vmatpush1.bf16.msra.mxu0 0
    %2194 = vmatprep.subr.bf16.mxu0 0
    %2195 = vmatpush1.bf16.msra.mxu0 0
    %2196 = vmatprep.subr.bf16.mxu0 0
    %2197 = vmatpush1.bf16.msra.mxu0 0
    %2198 = vmatprep.subr.bf16.mxu0 0
    %2199 = vmatpush1.bf16.msra.mxu0 0
    %2200 = vmatprep.subr.bf16.mxu0 0
    %2201 = vmatpush1.bf16.msra.mxu0 0
    %2202 = vmatprep.subr.bf16.mxu0 0
    %2203 = vmatpush1.bf16.msra.mxu0 0
    %2204 = vmatprep.subr.bf16.mxu0 0
    %2205 = vmatpush1.bf16.msra.mxu0 0
    %2206 = vmatprep.mubr.bf16.mxu0 0
    %2207 = vmatmul.mubr.bf16.gmra.mrb[0].mxu0 %v1487
    %v2208 = vpop.f32.mrb[0].mxu0
    %v2209 = vadd.f32 %v1588, %v2208
    %v2210 = vpop.f32.mrb[0].mxu0
    %v2211 = vadd.f32 %v1589, %v2210
    %v2212 = vpop.f32.mrb[0].mxu0
    %v2213 = vadd.f32 %v1600, %v2212
    %v2214 = vpop.f32.mrb[0].mxu0
    %v2215 = vadd.f32 %v1601, %v2214
    %2216 = vdwg.mxu0
    %2217 = vmatprep.subr.bf16.mxu0 %v1903
    %2218 = vmatpush1.bf16.msra.mxu0 %v1902
    %2219 = vmatprep.subr.bf16.mxu0 %v1915
    %2220 = vmatpush1.bf16.msra.mxu0 %v1914
    %2221 = vmatprep.subr.bf16.mxu0 %v1927
    %2222 = vmatpush1.bf16.msra.mxu0 %v1926
    %2223 = vmatprep.subr.bf16.mxu0 %v1939
    %2224 = vmatpush1.bf16.msra.mxu0 %v1938
    %2225 = vmatprep.subr.bf16.mxu0 %v1951
    %2226 = vmatpush1.bf16.msra.mxu0 %v1950
    %2227 = vmatprep.subr.bf16.mxu0 %v1963
    %2228 = vmatpush1.bf16.msra.mxu0 %v1962
    %2229 = vmatprep.subr.bf16.mxu0 %v1975
    %2230 = vmatpush1.bf16.msra.mxu0 %v1974
    %2231 = vmatprep.subr.bf16.mxu0 %v1987
    %2232 = vmatpush1.bf16.msra.mxu0 %v1986
    %2233 = vmatprep.subr.bf16.mxu0 0
    %2234 = vmatpush1.bf16.msra.mxu0 0
    %2235 = vmatprep.subr.bf16.mxu0 0
    %2236 = vmatpush1.bf16.msra.mxu0 0
    %2237 = vmatprep.subr.bf16.mxu0 0
    %2238 = vmatpush1.bf16.msra.mxu0 0
    %2239 = vmatprep.subr.bf16.mxu0 0
    %2240 = vmatpush1.bf16.msra.mxu0 0
    %2241 = vmatprep.subr.bf16.mxu0 0
    %2242 = vmatpush1.bf16.msra.mxu0 0
    %2243 = vmatprep.subr.bf16.mxu0 0
    %2244 = vmatpush1.bf16.msra.mxu0 0
    %2245 = vmatprep.subr.bf16.mxu0 0
    %2246 = vmatpush1.bf16.msra.mxu0 0
    %2247 = vmatprep.subr.bf16.mxu0 0
    %2248 = vmatpush1.bf16.msra.mxu0 0
    %2249 = vmatprep.mubr.bf16.mxu0 0
    %2250 = vmatmul.mubr.bf16.gmra.mrb[0].mxu0 %v1487
    %v2251 = vpop.f32.mrb[0].mxu0
    %v2252 = vadd.f32 %v1590, %v2251
    %v2253 = vpop.f32.mrb[0].mxu0
    %v2254 = vadd.f32 %v1591, %v2253
    %v2255 = vpop.f32.mrb[0].mxu0
    %v2256 = vadd.f32 %v1602, %v2255
    %v2257 = vpop.f32.mrb[0].mxu0
    %v2258 = vadd.f32 %v1603, %v2257
    %2259 = vdwg.mxu0
    %2260 = vmatprep.subr.bf16.mxu0 %v1905
    %2261 = vmatpush1.bf16.msra.mxu0 %v1904
    %2262 = vmatprep.subr.bf16.mxu0 %v1917
    %2263 = vmatpush1.bf16.msra.mxu0 %v1916
    %2264 = vmatprep.subr.bf16.mxu0 %v1929
    %2265 = vmatpush1.bf16.msra.mxu0 %v1928
    %2266 = vmatprep.subr.bf16.mxu0 %v1941
    %2267 = vmatpush1.bf16.msra.mxu0 %v1940
    %2268 = vmatprep.subr.bf16.mxu0 %v1953
    %2269 = vmatpush1.bf16.msra.mxu0 %v1952
    %2270 = vmatprep.subr.bf16.mxu0 %v1965
    %2271 = vmatpush1.bf16.msra.mxu0 %v1964
    %2272 = vmatprep.subr.bf16.mxu0 %v1977
    %2273 = vmatpush1.bf16.msra.mxu0 %v1976
    %2274 = vmatprep.subr.bf16.mxu0 %v1989
    %2275 = vmatpush1.bf16.msra.mxu0 %v1988
    %2276 = vmatprep.subr.bf16.mxu0 0
    %2277 = vmatpush1.bf16.msra.mxu0 0
    %2278 = vmatprep.subr.bf16.mxu0 0
    %2279 = vmatpush1.bf16.msra.mxu0 0
    %2280 = vmatprep.subr.bf16.mxu0 0
    %2281 = vmatpush1.bf16.msra.mxu0 0
    %2282 = vmatprep.subr.bf16.mxu0 0
    %2283 = vmatpush1.bf16.msra.mxu0 0
    %2284 = vmatprep.subr.bf16.mxu0 0
    %2285 = vmatpush1.bf16.msra.mxu0 0
    %2286 = vmatprep.subr.bf16.mxu0 0
    %2287 = vmatpush1.bf16.msra.mxu0 0
    %2288 = vmatprep.subr.bf16.mxu0 0
    %2289 = vmatpush1.bf16.msra.mxu0 0
    %2290 = vmatprep.subr.bf16.mxu0 0
    %2291 = vmatpush1.bf16.msra.mxu0 0
    %2292 = vmatprep.mubr.bf16.mxu0 0
    %2293 = vmatmul.mubr.bf16.gmra.mrb[0].mxu0 %v1487
    %v2294 = vpop.f32.mrb[0].mxu0
    %v2295 = vadd.f32 %v1592, %v2294
    %v2296 = vpop.f32.mrb[0].mxu0
    %v2297 = vadd.f32 %v1593, %v2296
    %v2298 = vpop.f32.mrb[0].mxu0
    %v2299 = vadd.f32 %v1604, %v2298
    %v2300 = vpop.f32.mrb[0].mxu0
    %v2301 = vadd.f32 %v1605, %v2300
    %2302 = vdwg.mxu0
    %2303 = vmatprep.subr.bf16.mxu0 %v1907
    %2304 = vmatpush1.bf16.msra.mxu0 %v1906
    %2305 = vmatprep.subr.bf16.mxu0 %v1919
    %2306 = vmatpush1.bf16.msra.mxu0 %v1918
    %2307 = vmatprep.subr.bf16.mxu0 %v1931
    %2308 = vmatpush1.bf16.msra.mxu0 %v1930
    %2309 = vmatprep.subr.bf16.mxu0 %v1943
    %2310 = vmatpush1.bf16.msra.mxu0 %v1942
    %2311 = vmatprep.subr.bf16.mxu0 %v1955
    %2312 = vmatpush1.bf16.msra.mxu0 %v1954
    %2313 = vmatprep.subr.bf16.mxu0 %v1967
    %2314 = vmatpush1.bf16.msra.mxu0 %v1966
    %2315 = vmatprep.subr.bf16.mxu0 %v1979
    %2316 = vmatpush1.bf16.msra.mxu0 %v1978
    %2317 = vmatprep.subr.bf16.mxu0 %v1991
    %2318 = vmatpush1.bf16.msra.mxu0 %v1990
    %2319 = vmatprep.subr.bf16.mxu0 0
    %2320 = vmatpush1.bf16.msra.mxu0 0
    %2321 = vmatprep.subr.bf16.mxu0 0
    %2322 = vmatpush1.bf16.msra.mxu0 0
    %2323 = vmatprep.subr.bf16.mxu0 0
    %2324 = vmatpush1.bf16.msra.mxu0 0
    %2325 = vmatprep.subr.bf16.mxu0 0
    %2326 = vmatpush1.bf16.msra.mxu0 0
    %2327 = vmatprep.subr.bf16.mxu0 0
    %2328 = vmatpush1.bf16.msra.mxu0 0
    %2329 = vmatprep.subr.bf16.mxu0 0
    %2330 = vmatpush1.bf16.msra.mxu0 0
    %2331 = vmatprep.subr.bf16.mxu0 0
    %2332 = vmatpush1.bf16.msra.mxu0 0
    %2333 = vmatprep.subr.bf16.mxu0 0
    %2334 = vmatpush1.bf16.msra.mxu0 0
    %2335 = vmatprep.mubr.bf16.mxu0 0
    %2336 = vmatmul.mubr.bf16.gmra.mrb[0].mxu0 %v1487
    %v2337 = vpop.f32.mrb[0].mxu0
    %v2338 = vadd.f32 %v1594, %v2337
    %v2339 = vpop.f32.mrb[0].mxu0
    %v2340 = vadd.f32 %v1595, %v2339
    %v2341 = vpop.f32.mrb[0].mxu0
    %v2342 = vadd.f32 %v1606, %v2341
    %v2343 = vpop.f32.mrb[0].mxu0
    %v2344 = vadd.f32 %v1607, %v2343
    %2345 = vdwg.mxu0
    %v2346 = vpack.c.bf16 %v2127, %v2123
    %v2347 = vpack.c.bf16 %v2213, %v2209
    %v2348 = vpack.c.bf16 %v2299, %v2295
    %2349 = vmatprep.subr.bf16.mxu0 0
    %2350 = vmatpush1.bf16.xpose.msra.mxu0 %v2347
    %2351 = vmatprep.subr.bf16.mxu0 0
    %2352 = vmatpush1.bf16.xpose.msra.mxu0 0
    %2353 = vmatprep.subr.bf16.mxu0 0
    %2354 = vmatpush1.bf16.xpose.msra.mxu0 0
    %2355 = vmatprep.subr.bf16.mxu0 0
    %2356 = vmatpush1.bf16.xpose.msra.mxu0 0
    %2357 = vmatprep.subr.bf16.mxu0 0
    %2358 = vmatpush1.bf16.xpose.msra.mxu0 0
    %2359 = vmatprep.subr.bf16.mxu0 0
    %2360 = vmatpush1.bf16.xpose.msra.mxu0 0
    %2361 = vmatprep.subr.bf16.mxu0 0
    %2362 = vmatpush1.bf16.xpose.msra.mxu0 0
    %2363 = vmatprep.subr.bf16.mxu0 0
    %2364 = vmatpush1.bf16.xpose.msra.mxu0 0
    %2365 = vmatprep.subr.bf16.mxu0 0
    %2366 = vmatpush1.bf16.xpose.msra.mxu0 0
    %2367 = vmatprep.subr.bf16.mxu0 0
    %2368 = vmatpush1.bf16.xpose.msra.mxu0 0
    %2369 = vmatprep.subr.bf16.mxu0 0
    %2370 = vmatpush1.bf16.xpose.msra.mxu0 0
    %2371 = vmatprep.subr.bf16.mxu0 0
    %2372 = vmatpush1.bf16.xpose.msra.mxu0 0
    %2373 = vmatprep.subr.bf16.mxu0 0
    %2374 = vmatpush1.bf16.xpose.msra.mxu0 0
    %2375 = vmatprep.subr.bf16.mxu0 0
    %2376 = vmatpush1.bf16.xpose.msra.mxu0 0
    %2377 = vmatprep.subr.bf16.mxu0 0
    %2378 = vmatpush1.bf16.xpose.msra.mxu0 0
    %2379 = vmatprep.subr.bf16.mxu0 0
    %2380 = vmatpush1.bf16.xpose.msra.mxu0 0
    %2381 = vmatprep.mubr.bf16.mxu0 0
    %2382 = vmatmul.mubr.bf16.gmra.mrb[0].mxu0 %v2346
    %v2383 = vpop.f32.mrb[0].mxu0
    %v2384 = vadd.f32 0.0, %v2383
    %v2385 = vpop.f32.mrb[0].mxu0
    %v2386 = vpop.f32.mrb[0].mxu0
    %v2387 = vadd.f32 0.0, %v2386
    %v2388 = vpop.f32.mrb[0].mxu0
    %2389 = vdwg.mxu0
    %v2390 = vmul.f32 %v2384, 0.17677669
    %v2391 = vmul.f32 %v2387, 0.17677669
    %v2392 = vadd.f32 %v2390, %v1063
    %v2393 = vadd.f32 %v2391, %v1065
    %v2394 = vsel %vm1070, %v2392, -inf
    %2395 = vmax.xlane.f32.xlu0 %v2394
    %v2396 = vpop.xlane.xlu0 %2395
    %v2397 = vsel %vm1070, %v2393, -inf
    %2398 = vmax.xlane.f32.xlu0 %v2397
    %v2399 = vpop.xlane.xlu0 %2398
    %v2400 = vsub.f32 %v2392, %v2396
    %v2401 = vsub.f32 %v2393, %v2399
    %v2402 = vmul.f32 %v2400, 1.442695
    %v2403 = vpow.pop %v2402
    %v2404 = vmul.f32 %v2401, 1.442695
    %v2405 = vpow.pop %v2404
    %v2406 = vsel %vm1070, %v2403, 0.0
    %2407 = vadd.xlane.f32.xlu0 %v2406
    %v2408 = vpop.xlane.xlu0 %2407
    %v2409 = vsel %vm1070, %v2405, 0.0
    %2410 = vadd.xlane.f32.xlu0 %v2409
    %v2411 = vpop.xlane.xlu0 %2410
    %v2412 = vrcp.pop %v2408
    %v2413 = vrcp.pop %v2411
    %v2414 = vmul.f32 %v2403, %v2412
    %v2415 = vmul.f32 %v2405, %v2413
    %v2416 = vpack.c.bf16 %v2415, %v2414
    %v2417 = vpack.c.bf16 %v2129, %v2125
    %v2418 = vpack.c.bf16 %v2215, %v2211
    %v2419 = vpack.c.bf16 %v2301, %v2297
    %2420 = vmatprep.subr.bf16.mxu0 0
    %2421 = vmatpush1.bf16.xpose.msra.mxu0 %v2418
    %2422 = vmatprep.subr.bf16.mxu0 0
    %2423 = vmatpush1.bf16.xpose.msra.mxu0 0
    %2424 = vmatprep.subr.bf16.mxu0 0
    %2425 = vmatpush1.bf16.xpose.msra.mxu0 0
    %2426 = vmatprep.subr.bf16.mxu0 0
    %2427 = vmatpush1.bf16.xpose.msra.mxu0 0
    %2428 = vmatprep.subr.bf16.mxu0 0
    %2429 = vmatpush1.bf16.xpose.msra.mxu0 0
    %2430 = vmatprep.subr.bf16.mxu0 0
    %2431 = vmatpush1.bf16.xpose.msra.mxu0 0
    %2432 = vmatprep.subr.bf16.mxu0 0
    %2433 = vmatpush1.bf16.xpose.msra.mxu0 0
    %2434 = vmatprep.subr.bf16.mxu0 0
    %2435 = vmatpush1.bf16.xpose.msra.mxu0 0
    %2436 = vmatprep.subr.bf16.mxu0 0
    %2437 = vmatpush1.bf16.xpose.msra.mxu0 0
    %2438 = vmatprep.subr.bf16.mxu0 0
    %2439 = vmatpush1.bf16.xpose.msra.mxu0 0
    %2440 = vmatprep.subr.bf16.mxu0 0
    %2441 = vmatpush1.bf16.xpose.msra.mxu0 0
    %2442 = vmatprep.subr.bf16.mxu0 0
    %2443 = vmatpush1.bf16.xpose.msra.mxu0 0
    %2444 = vmatprep.subr.bf16.mxu0 0
    %2445 = vmatpush1.bf16.xpose.msra.mxu0 0
    %2446 = vmatprep.subr.bf16.mxu0 0
    %2447 = vmatpush1.bf16.xpose.msra.mxu0 0
    %2448 = vmatprep.subr.bf16.mxu0 0
    %2449 = vmatpush1.bf16.xpose.msra.mxu0 0
    %2450 = vmatprep.subr.bf16.mxu0 0
    %2451 = vmatpush1.bf16.xpose.msra.mxu0 0
    %2452 = vmatprep.mubr.bf16.mxu0 0
    %2453 = vmatmul.mubr.bf16.gmra.mrb[0].mxu0 %v2417
    %v2454 = vpop.f32.mrb[0].mxu0
    %v2455 = vadd.f32 0.0, %v2454
    %v2456 = vpop.f32.mrb[0].mxu0
    %v2457 = vpop.f32.mrb[0].mxu0
    %v2458 = vadd.f32 0.0, %v2457
    %v2459 = vpop.f32.mrb[0].mxu0
    %2460 = vdwg.mxu0
    %v2461 = vmul.f32 %v2455, 0.17677669
    %v2462 = vmul.f32 %v2458, 0.17677669
    %v2463 = vadd.f32 %v2461, %v1063
    %v2464 = vadd.f32 %v2462, %v1065
    %v2465 = vsel %vm1070, %v2463, -inf
    %2466 = vmax.xlane.f32.xlu0 %v2465
    %v2467 = vpop.xlane.xlu0 %2466
    %v2468 = vsel %vm1070, %v2464, -inf
    %2469 = vmax.xlane.f32.xlu0 %v2468
    %v2470 = vpop.xlane.xlu0 %2469
    %v2471 = vsub.f32 %v2463, %v2467
    %v2472 = vsub.f32 %v2464, %v2470
    %v2473 = vmul.f32 %v2471, 1.442695
    %v2474 = vpow.pop %v2473
    %v2475 = vmul.f32 %v2472, 1.442695
    %v2476 = vpow.pop %v2475
    %v2477 = vsel %vm1070, %v2474, 0.0
    %2478 = vadd.xlane.f32.xlu0 %v2477
    %v2479 = vpop.xlane.xlu0 %2478
    %v2480 = vsel %vm1070, %v2476, 0.0
    %2481 = vadd.xlane.f32.xlu0 %v2480
    %v2482 = vpop.xlane.xlu0 %2481
    %v2483 = vrcp.pop %v2479
    %v2484 = vrcp.pop %v2482
    %v2485 = vmul.f32 %v2474, %v2483
    %v2486 = vmul.f32 %v2476, %v2484
    %v2487 = vpack.c.bf16 %v2486, %v2485
    %v2489 = vsel %vm1070, %v2487, 0
    %2491 = vmatprep.subr.bf16.mxu0 0
    %2492 = vmatpush1.bf16.msra.mxu0 %v2419
    %2493 = vmatprep.subr.bf16.mxu0 0
    %2494 = vmatpush1.bf16.msra.mxu0 0
    %2495 = vmatprep.subr.bf16.mxu0 0
    %2496 = vmatpush1.bf16.msra.mxu0 0
    %2497 = vmatprep.subr.bf16.mxu0 0
    %2498 = vmatpush1.bf16.msra.mxu0 0
    %2499 = vmatprep.subr.bf16.mxu0 0
    %2500 = vmatpush1.bf16.msra.mxu0 0
    %2501 = vmatprep.subr.bf16.mxu0 0
    %2502 = vmatpush1.bf16.msra.mxu0 0
    %2503 = vmatprep.subr.bf16.mxu0 0
    %2504 = vmatpush1.bf16.msra.mxu0 0
    %2505 = vmatprep.subr.bf16.mxu0 0
    %2506 = vmatpush1.bf16.msra.mxu0 0
    %2507 = vmatprep.subr.bf16.mxu0 0
    %2508 = vmatpush1.bf16.msra.mxu0 0
    %2509 = vmatprep.subr.bf16.mxu0 0
    %2510 = vmatpush1.bf16.msra.mxu0 0
    %2511 = vmatprep.subr.bf16.mxu0 0
    %2512 = vmatpush1.bf16.msra.mxu0 0
    %2513 = vmatprep.subr.bf16.mxu0 0
    %2514 = vmatpush1.bf16.msra.mxu0 0
    %2515 = vmatprep.subr.bf16.mxu0 0
    %2516 = vmatpush1.bf16.msra.mxu0 0
    %2517 = vmatprep.subr.bf16.mxu0 0
    %2518 = vmatpush1.bf16.msra.mxu0 0
    %2519 = vmatprep.subr.bf16.mxu0 0
    %2520 = vmatpush1.bf16.msra.mxu0 0
    %2521 = vmatprep.subr.bf16.mxu0 0
    %2522 = vmatpush1.bf16.msra.mxu0 0
    %2523 = vmatprep.mubr.bf16.mxu0 0
    %2524 = vmatmul.mubr.bf16.gmra.mrb[0].mxu0 %v2489
    %v2525 = vpop.f32.mrb[0].mxu0
    %v2526 = vadd.f32 0.0, %v2525
    %v2527 = vpop.f32.mrb[0].mxu0
    %v2528 = vpop.f32.mrb[0].mxu0
    %v2529 = vadd.f32 0.0, %v2528
    %v2530 = vpop.f32.mrb[0].mxu0
    %2531 = vdwg.mxu0
    %v2533 = vsel %vm1070, %v2416, 0
    %2535 = vmatprep.subr.bf16.mxu0 0
    %2536 = vmatpush1.bf16.msra.mxu0 %v2348
    %2537 = vmatprep.subr.bf16.mxu0 0
    %2538 = vmatpush1.bf16.msra.mxu0 0
    %2539 = vmatprep.subr.bf16.mxu0 0
    %2540 = vmatpush1.bf16.msra.mxu0 0
    %2541 = vmatprep.subr.bf16.mxu0 0
    %2542 = vmatpush1.bf16.msra.mxu0 0
    %2543 = vmatprep.subr.bf16.mxu0 0
    %2544 = vmatpush1.bf16.msra.mxu0 0
    %2545 = vmatprep.subr.bf16.mxu0 0
    %2546 = vmatpush1.bf16.msra.mxu0 0
    %2547 = vmatprep.subr.bf16.mxu0 0
    %2548 = vmatpush1.bf16.msra.mxu0 0
    %2549 = vmatprep.subr.bf16.mxu0 0
    %2550 = vmatpush1.bf16.msra.mxu0 0
    %2551 = vmatprep.subr.bf16.mxu0 0
    %2552 = vmatpush1.bf16.msra.mxu0 0
    %2553 = vmatprep.subr.bf16.mxu0 0
    %2554 = vmatpush1.bf16.msra.mxu0 0
    %2555 = vmatprep.subr.bf16.mxu0 0
    %2556 = vmatpush1.bf16.msra.mxu0 0
    %2557 = vmatprep.subr.bf16.mxu0 0
    %2558 = vmatpush1.bf16.msra.mxu0 0
    %2559 = vmatprep.subr.bf16.mxu0 0
    %2560 = vmatpush1.bf16.msra.mxu0 0
    %2561 = vmatprep.subr.bf16.mxu0 0
    %2562 = vmatpush1.bf16.msra.mxu0 0
    %2563 = vmatprep.subr.bf16.mxu0 0
    %2564 = vmatpush1.bf16.msra.mxu0 0
    %2565 = vmatprep.subr.bf16.mxu0 0
    %2566 = vmatpush1.bf16.msra.mxu0 0
    %2567 = vmatprep.mubr.bf16.mxu0 0
    %2568 = vmatmul.mubr.bf16.gmra.mrb[0].mxu0 %v2533
    %v2569 = vpop.f32.mrb[0].mxu0
    %v2570 = vadd.f32 %v2526, %v2569
    %v2571 = vpop.f32.mrb[0].mxu0
    %v2572 = vpop.f32.mrb[0].mxu0
    %v2573 = vadd.f32 %v2529, %v2572
    %v2574 = vpop.f32.mrb[0].mxu0
    %2575 = vdwg.mxu0
    %v2576 = vpack.c.bf16 %v2170, %v2166
    %v2577 = vpack.c.bf16 %v2256, %v2252
    %v2578 = vpack.c.bf16 %v2342, %v2338
    %2579 = vmatprep.subr.bf16.mxu0 0
    %2580 = vmatpush1.bf16.xpose.msra.mxu0 %v2577
    %2581 = vmatprep.subr.bf16.mxu0 0
    %2582 = vmatpush1.bf16.xpose.msra.mxu0 0
    %2583 = vmatprep.subr.bf16.mxu0 0
    %2584 = vmatpush1.bf16.xpose.msra.mxu0 0
    %2585 = vmatprep.subr.bf16.mxu0 0
    %2586 = vmatpush1.bf16.xpose.msra.mxu0 0
    %2587 = vmatprep.subr.bf16.mxu0 0
    %2588 = vmatpush1.bf16.xpose.msra.mxu0 0
    %2589 = vmatprep.subr.bf16.mxu0 0
    %2590 = vmatpush1.bf16.xpose.msra.mxu0 0
    %2591 = vmatprep.subr.bf16.mxu0 0
    %2592 = vmatpush1.bf16.xpose.msra.mxu0 0
    %2593 = vmatprep.subr.bf16.mxu0 0
    %2594 = vmatpush1.bf16.xpose.msra.mxu0 0
    %2595 = vmatprep.subr.bf16.mxu0 0
    %2596 = vmatpush1.bf16.xpose.msra.mxu0 0
    %2597 = vmatprep.subr.bf16.mxu0 0
    %2598 = vmatpush1.bf16.xpose.msra.mxu0 0
    %2599 = vmatprep.subr.bf16.mxu0 0
    %2600 = vmatpush1.bf16.xpose.msra.mxu0 0
    %2601 = vmatprep.subr.bf16.mxu0 0
    %2602 = vmatpush1.bf16.xpose.msra.mxu0 0
    %2603 = vmatprep.subr.bf16.mxu0 0
    %2604 = vmatpush1.bf16.xpose.msra.mxu0 0
    %2605 = vmatprep.subr.bf16.mxu0 0
    %2606 = vmatpush1.bf16.xpose.msra.mxu0 0
    %2607 = vmatprep.subr.bf16.mxu0 0
    %2608 = vmatpush1.bf16.xpose.msra.mxu0 0
    %2609 = vmatprep.subr.bf16.mxu0 0
    %2610 = vmatpush1.bf16.xpose.msra.mxu0 0
    %2611 = vmatprep.mubr.bf16.mxu0 0
    %2612 = vmatmul.mubr.bf16.gmra.mrb[0].mxu0 %v2576
    %v2613 = vpop.f32.mrb[0].mxu0
    %v2614 = vadd.f32 0.0, %v2613
    %v2615 = vpop.f32.mrb[0].mxu0
    %v2616 = vpop.f32.mrb[0].mxu0
    %v2617 = vadd.f32 0.0, %v2616
    %v2618 = vpop.f32.mrb[0].mxu0
    %2619 = vdwg.mxu0
    %v2620 = vmul.f32 %v2614, 0.17677669
    %v2621 = vmul.f32 %v2617, 0.17677669
    %v2622 = vadd.f32 %v2620, %v1063
    %v2623 = vadd.f32 %v2621, %v1065
    %v2624 = vsel %vm1070, %v2622, -inf
    %2625 = vmax.xlane.f32.xlu0 %v2624
    %v2626 = vpop.xlane.xlu0 %2625
    %v2627 = vsel %vm1070, %v2623, -inf
    %2628 = vmax.xlane.f32.xlu0 %v2627
    %v2629 = vpop.xlane.xlu0 %2628
    %v2630 = vsub.f32 %v2622, %v2626
    %v2631 = vsub.f32 %v2623, %v2629
    %v2632 = vmul.f32 %v2630, 1.442695
    %v2633 = vpow.pop %v2632
    %v2634 = vmul.f32 %v2631, 1.442695
    %v2635 = vpow.pop %v2634
    %v2636 = vsel %vm1070, %v2633, 0.0
    %2637 = vadd.xlane.f32.xlu0 %v2636
    %v2638 = vpop.xlane.xlu0 %2637
    %v2639 = vsel %vm1070, %v2635, 0.0
    %2640 = vadd.xlane.f32.xlu0 %v2639
    %v2641 = vpop.xlane.xlu0 %2640
    %v2642 = vrcp.pop %v2638
    %v2643 = vrcp.pop %v2641
    %v2644 = vmul.f32 %v2633, %v2642
    %v2645 = vmul.f32 %v2635, %v2643
    %v2646 = vpack.c.bf16 %v2645, %v2644
    %v2648 = vsel %vm1070, %v2646, 0
    %2650 = vmatprep.subr.bf16.mxu0 0
    %2651 = vmatpush1.bf16.msra.mxu0 %v2578
    %2652 = vmatprep.subr.bf16.mxu0 0
    %2653 = vmatpush1.bf16.msra.mxu0 0
    %2654 = vmatprep.subr.bf16.mxu0 0
    %2655 = vmatpush1.bf16.msra.mxu0 0
    %2656 = vmatprep.subr.bf16.mxu0 0
    %2657 = vmatpush1.bf16.msra.mxu0 0
    %2658 = vmatprep.subr.bf16.mxu0 0
    %2659 = vmatpush1.bf16.msra.mxu0 0
    %2660 = vmatprep.subr.bf16.mxu0 0
    %2661 = vmatpush1.bf16.msra.mxu0 0
    %2662 = vmatprep.subr.bf16.mxu0 0
    %2663 = vmatpush1.bf16.msra.mxu0 0
    %2664 = vmatprep.subr.bf16.mxu0 0
    %2665 = vmatpush1.bf16.msra.mxu0 0
    %2666 = vmatprep.subr.bf16.mxu0 0
    %2667 = vmatpush1.bf16.msra.mxu0 0
    %2668 = vmatprep.subr.bf16.mxu0 0
    %2669 = vmatpush1.bf16.msra.mxu0 0
    %2670 = vmatprep.subr.bf16.mxu0 0
    %2671 = vmatpush1.bf16.msra.mxu0 0
    %2672 = vmatprep.subr.bf16.mxu0 0
    %2673 = vmatpush1.bf16.msra.mxu0 0
    %2674 = vmatprep.subr.bf16.mxu0 0
    %2675 = vmatpush1.bf16.msra.mxu0 0
    %2676 = vmatprep.subr.bf16.mxu0 0
    %2677 = vmatpush1.bf16.msra.mxu0 0
    %2678 = vmatprep.subr.bf16.mxu0 0
    %2679 = vmatpush1.bf16.msra.mxu0 0
    %2680 = vmatprep.subr.bf16.mxu0 0
    %2681 = vmatpush1.bf16.msra.mxu0 0
    %2682 = vmatprep.mubr.bf16.mxu0 0
    %2683 = vmatmul.mubr.bf16.gmra.mrb[0].mxu0 %v2648
    %v2684 = vpop.f32.mrb[0].mxu0
    %v2685 = vadd.f32 0.0, %v2684
    %v2686 = vpop.f32.mrb[0].mxu0
    %v2687 = vpop.f32.mrb[0].mxu0
    %v2688 = vadd.f32 0.0, %v2687
    %v2689 = vpop.f32.mrb[0].mxu0
    %2690 = vdwg.mxu0
    %v2691 = vadd.f32 %v2570, %v2685
    %v2692 = vadd.f32 %v2573, %v2688
    %v2693 = vpack.c.bf16 %v2172, %v2168
    %v2694 = vpack.c.bf16 %v2258, %v2254
    %v2695 = vpack.c.bf16 %v2344, %v2340
    %2696 = vmatprep.subr.bf16.mxu0 0
    %2697 = vmatpush1.bf16.xpose.msra.mxu0 %v2694
    %2698 = vmatprep.subr.bf16.mxu0 0
    %2699 = vmatpush1.bf16.xpose.msra.mxu0 0
    %2700 = vmatprep.subr.bf16.mxu0 0
    %2701 = vmatpush1.bf16.xpose.msra.mxu0 0
    %2702 = vmatprep.subr.bf16.mxu0 0
    %2703 = vmatpush1.bf16.xpose.msra.mxu0 0
    %2704 = vmatprep.subr.bf16.mxu0 0
    %2705 = vmatpush1.bf16.xpose.msra.mxu0 0
    %2706 = vmatprep.subr.bf16.mxu0 0
    %2707 = vmatpush1.bf16.xpose.msra.mxu0 0
    %2708 = vmatprep.subr.bf16.mxu0 0
    %2709 = vmatpush1.bf16.xpose.msra.mxu0 0
    %2710 = vmatprep.subr.bf16.mxu0 0
    %2711 = vmatpush1.bf16.xpose.msra.mxu0 0
    %2712 = vmatprep.subr.bf16.mxu0 0
    %2713 = vmatpush1.bf16.xpose.msra.mxu0 0
    %2714 = vmatprep.subr.bf16.mxu0 0
    %2715 = vmatpush1.bf16.xpose.msra.mxu0 0
    %2716 = vmatprep.subr.bf16.mxu0 0
    %2717 = vmatpush1.bf16.xpose.msra.mxu0 0
    %2718 = vmatprep.subr.bf16.mxu0 0
    %2719 = vmatpush1.bf16.xpose.msra.mxu0 0
    %2720 = vmatprep.subr.bf16.mxu0 0
    %2721 = vmatpush1.bf16.xpose.msra.mxu0 0
    %2722 = vmatprep.subr.bf16.mxu0 0
    %2723 = vmatpush1.bf16.xpose.msra.mxu0 0
    %2724 = vmatprep.subr.bf16.mxu0 0
    %2725 = vmatpush1.bf16.xpose.msra.mxu0 0
    %2726 = vmatprep.subr.bf16.mxu0 0
    %2727 = vmatpush1.bf16.xpose.msra.mxu0 0
    %2728 = vmatprep.mubr.bf16.mxu0 0
    %2729 = vmatmul.mubr.bf16.gmra.mrb[0].mxu0 %v2693
    %v2730 = vpop.f32.mrb[0].mxu0
    %v2731 = vadd.f32 0.0, %v2730
    %v2732 = vpop.f32.mrb[0].mxu0
    %v2733 = vpop.f32.mrb[0].mxu0
    %v2734 = vadd.f32 0.0, %v2733
    %v2735 = vpop.f32.mrb[0].mxu0
    %2736 = vdwg.mxu0
    %v2737 = vmul.f32 %v2731, 0.17677669
    %v2738 = vmul.f32 %v2734, 0.17677669
    %v2739 = vadd.f32 %v2737, %v1063
    %v2740 = vadd.f32 %v2738, %v1065
    %v2741 = vsel %vm1070, %v2739, -inf
    %2742 = vmax.xlane.f32.xlu0 %v2741
    %v2743 = vpop.xlane.xlu0 %2742
    %v2744 = vsel %vm1070, %v2740, -inf
    %2745 = vmax.xlane.f32.xlu0 %v2744
    %v2746 = vpop.xlane.xlu0 %2745
    %v2747 = vsub.f32 %v2739, %v2743
    %v2748 = vsub.f32 %v2740, %v2746
    %v2749 = vmul.f32 %v2747, 1.442695
    %v2750 = vpow.pop %v2749
    %v2751 = vmul.f32 %v2748, 1.442695
    %v2752 = vpow.pop %v2751
    %v2753 = vsel %vm1070, %v2750, 0.0
    %2754 = vadd.xlane.f32.xlu0 %v2753
    %v2755 = vpop.xlane.xlu0 %2754
    %v2756 = vsel %vm1070, %v2752, 0.0
    %2757 = vadd.xlane.f32.xlu0 %v2756
    %v2758 = vpop.xlane.xlu0 %2757
    %v2759 = vrcp.pop %v2755
    %v2760 = vrcp.pop %v2758
    %v2761 = vmul.f32 %v2750, %v2759
    %v2762 = vmul.f32 %v2752, %v2760
    %v2763 = vpack.c.bf16 %v2762, %v2761
    %v2765 = vsel %vm1070, %v2763, 0
    %2767 = vmatprep.subr.bf16.mxu0 0
    %2768 = vmatpush1.bf16.msra.mxu0 %v2695
    %2769 = vmatprep.subr.bf16.mxu0 0
    %2770 = vmatpush1.bf16.msra.mxu0 0
    %2771 = vmatprep.subr.bf16.mxu0 0
    %2772 = vmatpush1.bf16.msra.mxu0 0
    %2773 = vmatprep.subr.bf16.mxu0 0
    %2774 = vmatpush1.bf16.msra.mxu0 0
    %2775 = vmatprep.subr.bf16.mxu0 0
    %2776 = vmatpush1.bf16.msra.mxu0 0
    %2777 = vmatprep.subr.bf16.mxu0 0
    %2778 = vmatpush1.bf16.msra.mxu0 0
    %2779 = vmatprep.subr.bf16.mxu0 0
    %2780 = vmatpush1.bf16.msra.mxu0 0
    %2781 = vmatprep.subr.bf16.mxu0 0
    %2782 = vmatpush1.bf16.msra.mxu0 0
    %2783 = vmatprep.subr.bf16.mxu0 0
    %2784 = vmatpush1.bf16.msra.mxu0 0
    %2785 = vmatprep.subr.bf16.mxu0 0
    %2786 = vmatpush1.bf16.msra.mxu0 0
    %2787 = vmatprep.subr.bf16.mxu0 0
    %2788 = vmatpush1.bf16.msra.mxu0 0
    %2789 = vmatprep.subr.bf16.mxu0 0
    %2790 = vmatpush1.bf16.msra.mxu0 0
    %2791 = vmatprep.subr.bf16.mxu0 0
    %2792 = vmatpush1.bf16.msra.mxu0 0
    %2793 = vmatprep.subr.bf16.mxu0 0
    %2794 = vmatpush1.bf16.msra.mxu0 0
    %2795 = vmatprep.subr.bf16.mxu0 0
    %2796 = vmatpush1.bf16.msra.mxu0 0
    %2797 = vmatprep.subr.bf16.mxu0 0
    %2798 = vmatpush1.bf16.msra.mxu0 0
    %2799 = vmatprep.mubr.bf16.mxu0 0
    %2800 = vmatmul.mubr.bf16.gmra.mrb[0].mxu0 %v2765
    %v2801 = vpop.f32.mrb[0].mxu0
    %v2802 = vadd.f32 0.0, %v2801
    %v2803 = vpop.f32.mrb[0].mxu0
    %v2804 = vpop.f32.mrb[0].mxu0
    %v2805 = vadd.f32 0.0, %v2804
    %v2806 = vpop.f32.mrb[0].mxu0
    %2807 = vdwg.mxu0
    %v2808 = vadd.f32 %v2691, %v2802
    %v2809 = vadd.f32 %v2692, %v2805
    %v2810 = vpack.c.bf16 %v2809, %v2808
    %v2811 = vld [vmem:[#allocation2 + $0x64] sm:$0xf]
    %v2812 = vld [vmem:[#allocation2 + $0xd0] sm:$0xf]
    %v2813 = vld [vmem:[#allocation2 + $0x13c] sm:$0xf]
    %v2814 = vld [vmem:[#allocation2 + $0x1a8] sm:$0xf]
    %v2815 = vld [vmem:[#allocation2 + $0x214] sm:$0xf]
    %v2816 = vld [vmem:[#allocation2 + $0x280] sm:$0xf]
    %v2817 = vld [vmem:[#allocation2 + $0x2ec] sm:$0xf]
    %v2818 = vld [vmem:[#allocation2 + $0x358] sm:$0xf]
    %v2819 = vld [vmem:[#allocation2 + $0x3c4] sm:$0xf]
    %v2820 = vld [vmem:[#allocation2 + $0x430] sm:$0xf]
    %v2821 = vld [vmem:[#allocation2 + $0x49c] sm:$0xf]
    %v2822 = vld [vmem:[#allocation2 + $0x508] sm:$0xf]
    %v2823 = vld [vmem:[#allocation2 + $0x574] sm:$0xf]
    %v2824 = vld [vmem:[#allocation2 + $0x5e0] sm:$0xf]
    %v2825 = vld [vmem:[#allocation2 + $0x64c] sm:$0xf]
    %v2826 = vld [vmem:[#allocation2 + $0x6b8] sm:$0xf]
    %v2827 = vld [vmem:[#allocation5 + $0xc8] sm:$0xff]
    %v2828 = vld [vmem:[#allocation5 + $0x1a0] sm:$0xff]
    %v2845 = vunpack.c.l.b16 %v2811
    %v2846 = vunpack.c.l.b16 %v2812
    %v2847 = vunpack.c.l.b16 %v2813
    %v2848 = vunpack.c.l.b16 %v2814
    %v2849 = vunpack.c.l.b16 %v2815
    %v2850 = vunpack.c.l.b16 %v2816
    %v2851 = vunpack.c.l.b16 %v2817
    %v2852 = vunpack.c.l.b16 %v2818
    %v2853 = vunpack.c.l.b16 %v2819
    %v2854 = vunpack.c.l.b16 %v2820
    %v2855 = vunpack.c.l.b16 %v2821
    %v2856 = vunpack.c.l.b16 %v2822
    %v2857 = vunpack.c.l.b16 %v2823
    %v2858 = vunpack.c.l.b16 %v2824
    %v2859 = vunpack.c.l.b16 %v2825
    %v2860 = vunpack.c.l.b16 %v2826
    %v2861 = vpack.c.b16 %v2846, %v2845
    %v2862 = vpack.c.b16 %v2848, %v2847
    %v2863 = vpack.c.b16 %v2850, %v2849
    %v2864 = vpack.c.b16 %v2852, %v2851
    %v2865 = vpack.c.b16 %v2854, %v2853
    %v2866 = vpack.c.b16 %v2856, %v2855
    %v2867 = vpack.c.b16 %v2858, %v2857
    %v2868 = vpack.c.b16 %v2860, %v2859
    %2877 = vmatprep.subr.bf16.mxu0 0
    %2878 = vmatpush1.bf16.msra.mxu0 %v2861
    %2879 = vmatprep.subr.bf16.mxu0 0
    %2880 = vmatpush1.bf16.msra.mxu0 %v2862
    %2881 = vmatprep.subr.bf16.mxu0 0
    %2882 = vmatpush1.bf16.msra.mxu0 %v2863
    %2883 = vmatprep.subr.bf16.mxu0 0
    %2884 = vmatpush1.bf16.msra.mxu0 %v2864
    %2885 = vmatprep.subr.bf16.mxu0 0
    %2886 = vmatpush1.bf16.msra.mxu0 %v2865
    %2887 = vmatprep.subr.bf16.mxu0 0
    %2888 = vmatpush1.bf16.msra.mxu0 %v2866
    %2889 = vmatprep.subr.bf16.mxu0 0
    %2890 = vmatpush1.bf16.msra.mxu0 %v2867
    %2891 = vmatprep.subr.bf16.mxu0 0
    %2892 = vmatpush1.bf16.msra.mxu0 %v2868
    %2893 = vmatprep.subr.bf16.mxu0 0
    %2894 = vmatpush1.bf16.msra.mxu0 0
    %2895 = vmatprep.subr.bf16.mxu0 0
    %2896 = vmatpush1.bf16.msra.mxu0 0
    %2897 = vmatprep.subr.bf16.mxu0 0
    %2898 = vmatpush1.bf16.msra.mxu0 0
    %2899 = vmatprep.subr.bf16.mxu0 0
    %2900 = vmatpush1.bf16.msra.mxu0 0
    %2901 = vmatprep.subr.bf16.mxu0 0
    %2902 = vmatpush1.bf16.msra.mxu0 0
    %2903 = vmatprep.subr.bf16.mxu0 0
    %2904 = vmatpush1.bf16.msra.mxu0 0
    %2905 = vmatprep.subr.bf16.mxu0 0
    %2906 = vmatpush1.bf16.msra.mxu0 0
    %2907 = vmatprep.subr.bf16.mxu0 0
    %2908 = vmatpush1.bf16.msra.mxu0 0
    %2909 = vmatprep.mubr.bf16.mxu0 0
    %2910 = vmatmul.mubr.bf16.gmra.mrb[0].mxu0 %v2810
    %v2911 = vpop.f32.mrb[0].mxu0
    %v2912 = vadd.f32 %v2827, %v2911
    %v2913 = vpop.f32.mrb[0].mxu0
    %v2914 = vpop.f32.mrb[0].mxu0
    %v2915 = vadd.f32 %v2828, %v2914
    %v2916 = vpop.f32.mrb[0].mxu0
    %2917 = vdwg.mxu0
    %2920 = vrot.lane.b32.xlu0 %v1008, 32
    %v2921 = vpop.permute.xlu0 %2920
    %2922 = vrot.lane.b32.xlu0 %v1011, 32
    %v2923 = vpop.permute.xlu0 %2922
    %v2926 = vadd.f32 %v2912, %v2921
    %v2927 = vadd.f32 %v2915, %v2923
    %v2928 = vxor.u32 %v2926, 2147483648
    %v2929 = vxor.u32 %v2927, 2147483648
    %v2930 = vmul.f32 %v2928, 1.442695
    %v2931 = vpow.pop %v2930
    %v2932 = vmul.f32 %v2929, 1.442695
    %v2933 = vpow.pop %v2932
    %v2934 = vadd.f32 %v2931, 1.0
    %v2935 = vadd.f32 %v2933, 1.0
    %v2936 = vrcp.pop %v2934
    %v2937 = vmul.f32 1.0, %v2936
    %v2938 = vrcp.pop %v2935
    %v2939 = vmul.f32 1.0, %v2938
    %2940 = vrot.lane.b32.xlu0 %v1008, 96
    %v2941 = vpop.permute.xlu0 %2940
    %2942 = vrot.lane.b32.xlu0 %v1011, 96
    %v2943 = vpop.permute.xlu0 %2942
    %v2946 = vmul.f32 %v2937, %v2941
    %v2947 = vmul.f32 %v2939, %v2943
    %2950 = vrot.lane.b32.xlu0 %v2946, 64
    %v2951 = vpop.permute.xlu0 %2950
    %2952 = vrot.lane.b32.xlu0 %v2947, 64
    %v2953 = vpop.permute.xlu0 %2952
    %v2956 = vadd.f32 %v2912, %v2951
    %v2957 = vadd.f32 %v2915, %v2953
    %v2958 = vtanh.pop %v2956
    %v2959 = vtanh.pop %v2957
    %v2960 = vsub.f32 1.0, %v2937
    %v2961 = vsub.f32 1.0, %v2939
    %2964 = vrot.lane.b32.xlu0 %v2958, 96
    %v2965 = vpop.permute.xlu0 %2964
    %2966 = vrot.lane.b32.xlu0 %v2959, 96
    %v2967 = vpop.permute.xlu0 %2966
    %v2970 = vmul.f32 %v2960, %v2965
    %v2971 = vmul.f32 %v2961, %v2967
    %2972 = vrot.lane.b32.xlu0 %v46, 32
    %v2973 = vpop.permute.xlu0 %2972
    %2974 = vrot.lane.b32.xlu0 %v47, 32
    %v2975 = vpop.permute.xlu0 %2974
    %v2978 = vmul.f32 %v2937, %v2973
    %v2979 = vmul.f32 %v2939, %v2975
    %v2980 = vadd.f32 %v2970, %v2978
    %v2981 = vadd.f32 %v2971, %v2979
    %v2982 = vpack.c.bf16 %v2981, %v2980
    %v2983 = vld [vmem:[#allocation2 + $0x68] sm:$0xf]
    %v2984 = vld [vmem:[#allocation2 + $0xd4] sm:$0xf]
    %v2985 = vld [vmem:[#allocation2 + $0x140] sm:$0xf]
    %v2986 = vld [vmem:[#allocation2 + $0x1ac] sm:$0xf]
    %v2987 = vld [vmem:[#allocation5 + $0xd0] sm:$0xff]
    %v2988 = vld [vmem:[#allocation5 + $0x1a8] sm:$0xff]
    %2990 = vrot.lane.b32.xlu0 %v2982, 64
    %v2991 = vpop.permute.xlu0 %2990
    %v2996 = vunpack.c.l.b16 %v2983
    %v2997 = vunpack.c.l.b16 %v2984
    %v2998 = vunpack.c.l.b16 %v2985
    %v2999 = vunpack.c.l.b16 %v2986
    %v3000 = vpack.c.b16 %v2997, %v2996
    %v3001 = vpack.c.b16 %v2999, %v2998
    %vm3004 = vcmask 261120
    %v3006 = vsel %vm3004, %v2991, 0
    %3008 = vmatprep.subr.bf16.mxu0 0
    %3009 = vmatpush1.bf16.msra.mxu0 %v3000
    %3010 = vmatprep.subr.bf16.mxu0 0
    %3011 = vmatpush1.bf16.msra.mxu0 %v3001
    %3012 = vmatprep.subr.bf16.mxu0 0
    %3013 = vmatpush1.bf16.msra.mxu0 0
    %3014 = vmatprep.subr.bf16.mxu0 0
    %3015 = vmatpush1.bf16.msra.mxu0 0
    %3016 = vmatprep.subr.bf16.mxu0 0
    %3017 = vmatpush1.bf16.msra.mxu0 0
    %3018 = vmatprep.subr.bf16.mxu0 0
    %3019 = vmatpush1.bf16.msra.mxu0 0
    %3020 = vmatprep.subr.bf16.mxu0 0
    %3021 = vmatpush1.bf16.msra.mxu0 0
    %3022 = vmatprep.subr.bf16.mxu0 0
    %3023 = vmatpush1.bf16.msra.mxu0 0
    %3024 = vmatprep.subr.bf16.mxu0 0
    %3025 = vmatpush1.bf16.msra.mxu0 0
    %3026 = vmatprep.subr.bf16.mxu0 0
    %3027 = vmatpush1.bf16.msra.mxu0 0
    %3028 = vmatprep.subr.bf16.mxu0 0
    %3029 = vmatpush1.bf16.msra.mxu0 0
    %3030 = vmatprep.subr.bf16.mxu0 0
    %3031 = vmatpush1.bf16.msra.mxu0 0
    %3032 = vmatprep.subr.bf16.mxu0 0
    %3033 = vmatpush1.bf16.msra.mxu0 0
    %3034 = vmatprep.subr.bf16.mxu0 0
    %3035 = vmatpush1.bf16.msra.mxu0 0
    %3036 = vmatprep.subr.bf16.mxu0 0
    %3037 = vmatpush1.bf16.msra.mxu0 0
    %3038 = vmatprep.subr.bf16.mxu0 0
    %3039 = vmatpush1.bf16.msra.mxu0 0
    %3040 = vmatprep.mubr.bf16.mxu0 0
    %3041 = vmatmul.mubr.bf16.gmra.mrb[0].mxu0 %v3006
    %v3042 = vpop.f32.mrb[0].mxu0
    %v3043 = vadd.f32 %v2987, %v3042
    %v3044 = vpop.f32.mrb[0].mxu0
    %v3045 = vpop.f32.mrb[0].mxu0
    %v3046 = vadd.f32 %v2988, %v3045
    %v3047 = vpop.f32.mrb[0].mxu0
    %3048 = vdwg.mxu0
    %v3049 = vmax.f32 %v3043, 0.0
    %v3050 = vmax.f32 %v3046, 0.0
    %3051 = vst [vmem:[%s3] sm:$0xff] %v3049
    %3052 = vst [vmem:[%s3 + $0x8] sm:$0xff] %v3050
    %3055 = vrot.lane.b32.xlu0 %v2980, 64
    %v3056 = vpop.permute.xlu0 %3055
    %3057 = vrot.lane.b32.xlu0 %v2981, 64
    %v3058 = vpop.permute.xlu0 %3057
    %3061 = vst.msk [vmem:[#allocation7] sm:$0xff] %vm3004, %v3056
    %3062 = vst.msk [vmem:[#allocation7 + $0x8] sm:$0xff] %vm3004, %v3058
    // Predicated region
    $region22: #{drgn_forward.1} parent=1 // pred_check
      _
    $region23: #{drgn_forward.1} parent=1 // pred_check_branch
      %3064 = sbr.rel (0) target = $region25
    $region24: #{drgn_forward.1} parent=1 // pred_region
      _
    $region25: #{drgn_forward.1} parent=1 // pred_fallthru
      _
    // Predicated region
    $region26: #{drgn_forward.1} parent=1 // pred_check
      _
    $region27: #{drgn_forward.1} parent=1 // pred_check_branch
      %3066 = sbr.rel (0) target = $region29
    $region28: #{drgn_forward.1} parent=1 // pred_region
      %s3068 = ssub.s32 256, 256
      %3069 = vsyncadd [#allocation4], %s3068
      %s3070 = sshll.u32 [#allocation7], 4
      %s3071 = int_to_ptr.vmem [resolvable:$true] %s3070
      %3076 = dma.vmem_to_hbm [thread:$0]  %s3071, 256, %s4, [#allocation4], 128, 128, 8
    $region29: #{drgn_forward.1} parent=1 // pred_fallthru
      _
    // Predicated region
    $region30: #{drgn_forward.1} parent=1 // pred_check
      _
    $region31: #{drgn_forward.1} parent=1 // pred_check_branch
      %3078 = sbr.rel (0) target = $region33
    $region32: #{drgn_forward.1} parent=1 // pred_region
      _
    $region33: #{drgn_forward.1} parent=1 // pred_fallthru
      _
    // Predicated region
    $region34: #{drgn_forward.1} parent=1 // pred_check
      _
    $region35: #{drgn_forward.1} parent=1 // pred_check_branch
      %3080 = sbr.rel (0) target = $region37
    $region36: #{drgn_forward.1} parent=1 // pred_region
      %3081 = dma.done [#allocation4], 256
    $region37: #{drgn_forward.1} parent=1 // pred_fallthru
      _
    %3082 = vsyncpa [#allocation3], 1
    %3083 = vsyncpa [#allocation6], 1
    %3084 = vsyncpa [#allocation4], 1

</llo_original>
